<compile_context>
chip_gen: v7x
topology: tpu7x:2x2x1
jax: 0.10.0
libtpu: 0.0.40
codegen_flags: <defaults>
</compile_context>

<pallas_src>
import functools

import jax
import jax.numpy as jnp
from jax import lax
from jax.experimental import pallas as pl
from jax.experimental.pallas import tpu as pltpu


def _round_up(x, m):
    return (x + m - 1) // m * m


def _vmem_capacity_bytes():
    """Physical VMEM per TensorCore; conservative 64 MiB (v7x) fallback."""
    try:
        info = pltpu.get_tpu_info()
        for name in ("vmem_capacity_bytes", "vmem_size_bytes", "vmem_bytes"):
            val = getattr(info, name, None)
            if val:
                return int(val)
    except Exception:
        pass
    return 64 << 20


def _classifier_kernel(adj_ref, q_ref, out_ref, *, mxu_dtype, graphs_per_group):
    """Fused hot path for B graphs per grid step.

    adj_ref : (B, N, N) bf16  zero-padded 0/1 sub-graph adjacencies
    q_ref   : (B, N, C) f32   zero-padded soft assignments q[count:count1, :]
    out_ref : (B//P, C, L) f32 lane-packed slab; graph j of group g occupies
        lanes [j*(3C+1), (j+1)*(3C+1)):  cols 0:C -> qkq, C:2C -> qkq2,
        2C:3C -> qkq3, col 3C -> bin11 (as a length-C column).
    """
    bg, c_rows, lanes = out_ref.shape
    b, n, _ = adj_ref.shape
    _, _, c = q_ref.shape
    pw = 3 * c + 1                               # per-graph packed lane width

    A = adj_ref[...].astype(jnp.float32)         # (B, N, N) f32 for VPU math
    q = q_ref[...]                               # (B, N, C) f32

    # norm_adjsub = np.linalg.norm(adjsub, axis=1); adjsub /= sqrt(norm+1e-3)
    # numpy broadcasts the per-ROW norm over the LAST axis, i.e. column j is
    # scaled by cs[j] = rsqrt(||row j|| + 1e-3).  rsqrt -> EUP slot.
    cs = lax.rsqrt(jnp.sqrt(jnp.sum(A * A, axis=2, keepdims=True)) + 0.001)  # (B,N,1)

    A_m = adj_ref[...].astype(mxu_dtype)         # exact for 0/1 adjacency

    # adjsub1 = scaled adjacency row-sum = A @ cs  (one MXU matvec, no N^2
    # VALU multiplies; kz itself is never materialized).
    deg = jnp.einsum('bij,bjk->bik', A_m, cs.astype(mxu_dtype),
                     preferred_element_type=jnp.float32)                     # (B,N,1)
    # Semantic choice (documented): rsqrt(0) would be inf for zero-padded or
    # isolated nodes (the numpy eig path would produce inf/NaN); clamp to 0.
    t = jnp.where(deg > 0.0, lax.rsqrt(deg), 0.0)                            # (B,N,1)
    w = cs * t                                                               # (B,N,1)

    def kz_apply(pk):
        # kz @ pk  with  kz = diag(t) @ A @ diag(cs*t)  applied as scalings
        # around a single A @ (.) matmul; f32 accumulation on the MXU.
        return t * jnp.einsum('bij,bjc->bic', A_m, (w * pk).astype(mxu_dtype),
                              preferred_element_type=jnp.float32)

    p1 = kz_apply(q)                              # kz   q
    p2 = kz_apply(p1)                             # kz^2 q   (pass mxu_dtype=f32
    p3 = kz_apply(p2)                             # kz^3 q    for an exact chain)

    # Single MXU pass for all three q^T (.) contractions (contract node axis).
    p_all = jnp.concatenate([p1, p2, p3], axis=-1).astype(mxu_dtype)         # (B,N,3C)
    r = jnp.einsum('bnc,bnd->bcd', q.astype(mxu_dtype), p_all,
                   preferred_element_type=jnp.float32)                       # (B,C,3C)

    # bin11 = torch.sum(q_sub, 0) — kept exact on the f32 VPU/XLU path and
    # appended as one extra lane column per graph.
    bin_col = jnp.sum(q, axis=1)[..., None]                                  # (B,C,1)
    graph_blk = jnp.concatenate([r, bin_col], axis=-1)                       # (B,C,3C+1)

    # Lane-dense packing: `graphs_per_group` graphs side by side per 128-lane
    # group -> one unmasked full-width store / one writeback DMA per step.
    grouped = graph_blk.reshape(bg, graphs_per_group, c, pw)
    parts = [grouped[:, j] for j in range(graphs_per_group)]
    used = graphs_per_group * pw
    if lanes > used:
        parts.append(jnp.zeros((bg, c, lanes - used), jnp.float32))
    out_ref[...] = jnp.concatenate(parts, axis=-1)


def classifier_hotpath_batched(adjs, qs, *, mxu_dtype=jnp.bfloat16,
                               graphs_per_step=None, interpret=False):
    """Fused kernel, batched over G zero-padded sub-graphs.

    adjs : (G, N, N)  0/1 adjacency, zero rows/cols for padded nodes
    qs   : (G, N, C)  soft assignment, zero rows for padded nodes
    Returns qkq, qkq2, qkq3 : (G, C, C) and bin11 : (G, C), all float32.
    """
    g, n, n2 = adjs.shape
    assert n == n2
    gq, nq, c = qs.shape
    assert gq == g and nq == n

    pw = 3 * c + 1                                  # qkq | qkq2 | qkq3 | bin11
    lanes = max(128, _round_up(pw, 128))
    p = max(1, lanes // pw)                         # graphs per 128-lane group
    rows = c

    # ---- per-graph VMEM working set (bytes) and device-aware budget --------
    mxu_bytes = jnp.dtype(mxu_dtype).itemsize
    per_graph_bytes = (
        2 * n * n * 2                      # adj input block, double-buffered bf16
        + 2 * n * c * 4                    # q input block, double-buffered f32
        + n * n * (4 + mxu_bytes)          # f32 copy of A + MXU-dtype copy
        + (8 * n * c + 4 * n * 3 * c) * 4  # p-chain / scaled / packed temporaries
        + 12 * n * 4                       # cs / deg / t / w
        + 2 * rows * lanes * 4 // p        # output slab share, double-buffered
        + 512)

    cap = _vmem_capacity_bytes()
    usable = max(16 << 20, min(cap - (16 << 20), 96 << 20))   # ~48 MiB v7x, 96 v5e/v6e
    budget = usable // 2

    b_fit = max(p, int(budget // per_graph_bytes) // p * p)
    if graphs_per_step is None:
        # >= 2 grid steps when possible so both v7x TensorCores get work.
        graphs_per_step = max(p, _round_up(pl.cdiv(g, 2), p))
    b = max(p, min(b_fit, _round_up(graphs_per_step, p)))
    assert b % p == 0

    g_pad = _round_up(g, b)
    grid = g_pad // b
    n_groups = g_pad // p
    bg = b // p

    # 0/1 adjacency is exact in bf16 -> halve the dominant HBM stream.
    adj_in = adjs.astype(jnp.bfloat16)
    q_in = qs.astype(jnp.float32)
    if g_pad != g:
        adj_in = jnp.pad(adj_in, ((0, g_pad - g), (0, 0), (0, 0)))
        q_in = jnp.pad(q_in, ((0, g_pad - g), (0, 0), (0, 0)))

    vmem_limit = int(min(usable, max(32 << 20, per_graph_bytes * b + (4 << 20))))

    flops_per_graph = 2 * n * n * (2 + 3 * c) + 2 * n * c * (3 * c) + 10 * n * c
    cost = pl.CostEstimate(
        flops=int(g_pad * flops_per_graph),
        transcendentals=int(g_pad * 3 * n),
        bytes_accessed=int(g_pad * n * n * 2 + g_pad * n * c * 4
                           + n_groups * rows * lanes * 4))

    kernel = functools.partial(_classifier_kernel, mxu_dtype=mxu_dtype,
                               graphs_per_group=p)
    # NOTE: if a profile shows exposed DMA at this block size, the adjacency
    # in_spec can take pipeline_mode=pl.Buffered(3) — sweep, don't assume.
    slab = pl.pallas_call(
        kernel,
        grid=(grid,),
        in_specs=[
            pl.BlockSpec((b, n, n), lambda i: (i, 0, 0)),
            pl.BlockSpec((b, n, c), lambda i: (i, 0, 0)),
        ],
        out_specs=pl.BlockSpec((bg, rows, lanes), lambda i: (i, 0, 0)),
        out_shape=jax.ShapeDtypeStruct((n_groups, rows, lanes), jnp.float32),
        compiler_params=pltpu.CompilerParams(
            dimension_semantics=("parallel",),
            vmem_limit_bytes=vmem_limit),
        cost_estimate=cost,
        interpret=interpret,
    )(adj_in, q_in)

    # Unpack the lane-packed slab back to per-graph tensors (XLA side).
    packed = slab[:, :, :p * pw].reshape(n_groups, rows, p, pw)
    per_graph = packed.transpose(0, 2, 1, 3).reshape(n_groups * p, rows, pw)[:g]
    qkq = per_graph[:, :, 0:c]
    qkq2 = per_graph[:, :, c:2 * c]
    qkq3 = per_graph[:, :, 2 * c:3 * c]
    bin11 = per_graph[:, :, 3 * c]
    return qkq, qkq2, qkq3, bin11


def classifier_hotpath(adjsub, q_sub, **kwargs):
    """Single-graph convenience wrapper (batch of one)."""
    qkq, qkq2, qkq3, bin11 = classifier_hotpath_batched(
        adjsub[None], q_sub[None], **kwargs)
    return qkq[0], qkq2[0], qkq3[0], bin11[0]


def _reference(adjsub, q_sub):
    """Plain-JAX reference mirroring the torch/numpy code (unpadded graph)."""
    A = adjsub.astype(jnp.float32)
    q = q_sub.astype(jnp.float32)
    norm = jnp.linalg.norm(A, axis=1)
    A = A / jnp.sqrt(norm + 0.001)
    deg = jnp.sum(A, axis=1)
    T = jnp.diag(deg ** -0.5)
    kz = T @ A @ T
    kz2 = kz @ kz
    kz3 = kz @ kz2
    qkq = q.T @ kz @ q
    qkq2 = q.T @ kz2 @ q
    qkq3 = q.T @ kz3 @ q
    bin11 = jnp.sum(q, axis=0)
    return qkq, qkq2, qkq3, bin11


if __name__ == "__main__":
    # Deterministic synthetic sub-graphs consistent with the forward:
    # G=13 selected sub-graphs zero-padded to Nmax=16 nodes, C=8 cluster
    # centers.  Real nodes carry self-loops (so deg>0 as in the reference).
    NMAX, C = 16, 8
    sizes = [16, 12, 9, 16, 7, 14, 16, 10, 13, 8, 16, 11, 15]
    key = jax.random.PRNGKey(0)

    adjs, qs = [], []
    for gi, nsz in enumerate(sizes):
        ka, kq = jax.random.split(jax.random.fold_in(key, gi))
        raw = jax.random.bernoulli(ka, p=0.3, shape=(nsz, nsz)).astype(jnp.float32)
        a = jnp.clip(raw + raw.T + jnp.eye(nsz, dtype=jnp.float32), 0.0, 1.0)
        qg = jax.nn.softmax(jax.random.normal(kq, (nsz, C)), axis=-1)
        adjs.append(jnp.zeros((NMAX, NMAX), jnp.float32).at[:nsz, :nsz].set(a))
        qs.append(jnp.zeros((NMAX, C), jnp.float32).at[:nsz, :].set(qg))
    adjs = jnp.stack(adjs)
    qs = jnp.stack(qs)

    # Default path: bf16 MXU operands (exact 0/1 adjacency), f32 accumulation.
    qkq, qkq2, qkq3, bin11 = jax.block_until_ready(
        classifier_hotpath_batched(adjs, qs))
    # Exact-semantics path: f32 MXU operands end-to-end.
    f_qkq, f_qkq2, f_qkq3, f_bin11 = jax.block_until_ready(
        classifier_hotpath_batched(adjs, qs, mxu_dtype=jnp.float32))

    for gi, nsz in enumerate(sizes):
        r_qkq, r_qkq2, r_qkq3, r_bin = _reference(adjs[gi, :nsz, :nsz],
                                                  qs[gi, :nsz, :])
        assert jnp.allclose(f_qkq[gi], r_qkq, rtol=1e-4, atol=1e-4)
        assert jnp.allclose(f_qkq2[gi], r_qkq2, rtol=1e-4, atol=1e-4)
        assert jnp.allclose(f_qkq3[gi], r_qkq3, rtol=1e-4, atol=1e-4)
        assert jnp.allclose(f_bin11[gi], r_bin, rtol=1e-5, atol=1e-5)
        assert jnp.allclose(qkq[gi], r_qkq, rtol=5e-2, atol=5e-2)
        assert jnp.allclose(qkq2[gi], r_qkq2, rtol=5e-2, atol=5e-2)
        assert jnp.allclose(qkq3[gi], r_qkq3, rtol=5e-2, atol=5e-2)
        assert jnp.allclose(bin11[gi], r_bin, rtol=1e-5, atol=1e-5)

    print("KERNEL_OK")
</pallas_src>

<mosaic_0001>
module attributes {stable_mosaic.version = 11 : i64} {
  func.func @_classifier_kernel(%arg0: i32, %arg1: memref<10x16x16xbf16, #tpu.memory_space<vmem>>, %arg2: memref<10x16x8xf32, #tpu.memory_space<vmem>>, %arg3: memref<2x8x128xf32, #tpu.memory_space<vmem>>) attributes {dimension_semantics = [#tpu.dimension_semantics<parallel>], iteration_bounds = array<i64: 2>, scalar_prefetch = 0 : i64, scratch_operands = 0 : i64, tpu.core_type = #tpu.core_type<tc>, window_params = [{transform_indices = @transform_0, window_bounds = array<i64: 10, 16, 16>}, {transform_indices = @transform_1, window_bounds = array<i64: 10, 16, 8>}, {transform_indices = @transform_2, window_bounds = array<i64: 2, 8, 128>}]} {
    %c0 = arith.constant 0 : index
    %c0_0 = arith.constant 0 : index
    %c0_1 = arith.constant 0 : index
    %0 = vector.load %arg1[%c0, %c0_0, %c0_1] : memref<10x16x16xbf16, #tpu.memory_space<vmem>>, vector<10x16x16xbf16>
    %1 = arith.extf %0 : vector<10x16x16xbf16> to vector<10x16x16xf32>
    %c0_2 = arith.constant 0 : index
    %c0_3 = arith.constant 0 : index
    %c0_4 = arith.constant 0 : index
    %2 = vector.load %arg2[%c0_2, %c0_3, %c0_4] : memref<10x16x8xf32, #tpu.memory_space<vmem>>, vector<10x16x8xf32>
    %3 = arith.mulf %1, %1 : vector<10x16x16xf32>
    %cst = arith.constant dense<0.000000e+00> : vector<10x16xf32>
    %4 = vector.multi_reduction <add>, %3, %cst [2] : vector<10x16x16xf32> to vector<10x16xf32>
    %5 = vector.shape_cast %4 : vector<10x16xf32> to vector<10x16x1xf32>
    %6 = math.sqrt %5 : vector<10x16x1xf32>
    %cst_5 = arith.constant 1.000000e-03 : f32
    %7 = vector.broadcast %cst_5 : f32 to vector<10x16x1xf32>
    %8 = arith.addf %6, %7 : vector<10x16x1xf32>
    %9 = math.rsqrt %8 : vector<10x16x1xf32>
    %c0_6 = arith.constant 0 : index
    %c0_7 = arith.constant 0 : index
    %c0_8 = arith.constant 0 : index
    %10 = vector.load %arg1[%c0_6, %c0_7, %c0_8] : memref<10x16x16xbf16, #tpu.memory_space<vmem>>, vector<10x16x16xbf16>
    %11 = arith.truncf %9 : vector<10x16x1xf32> to vector<10x16x1xbf16>
    "tpu.trace_start"() <{level = 10 : i32, message = "bij,bjk->bik"}> : () -> ()
    %cst_9 = arith.constant dense<0.000000e+00> : vector<10x16x1xf32>
    %12 = tpu.matmul %10, %11, %cst_9 {dimension_numbers = #tpu.dot_dimension_numbers<[2], [1], [1], [2], [0, 0, 0, 1, 1, 2], [0], [0]>} : vector<10x16x16xbf16>, vector<10x16x1xbf16>, vector<10x16x1xf32> -> vector<10x16x1xf32>
    %cst_10 = arith.constant 0.000000e+00 : f32
    "tpu.trace_stop"() : () -> ()
    %13 = vector.broadcast %cst_10 : f32 to vector<10x16x1xf32>
    %14 = arith.cmpf ogt, %12, %13 : vector<10x16x1xf32>
    %15 = math.rsqrt %12 : vector<10x16x1xf32>
    %cst_11 = arith.constant 0.000000e+00 : f32
    %16 = vector.broadcast %cst_11 : f32 to vector<10x16x1xf32>
    %17 = arith.select %14, %15, %16 : vector<10x16x1xi1>, vector<10x16x1xf32>
    %18 = arith.mulf %9, %17 : vector<10x16x1xf32>
    %19 = vector.broadcast %18 : vector<10x16x1xf32> to vector<10x16x8xf32>
    %20 = arith.mulf %19, %2 : vector<10x16x8xf32>
    %21 = arith.truncf %20 : vector<10x16x8xf32> to vector<10x16x8xbf16>
    "tpu.trace_start"() <{level = 10 : i32, message = "bij,bjc->bic"}> : () -> ()
    %cst_12 = arith.constant dense<0.000000e+00> : vector<10x16x8xf32>
    %22 = tpu.matmul %10, %21, %cst_12 {dimension_numbers = #tpu.dot_dimension_numbers<[2], [1], [1], [2], [0, 0, 0, 1, 1, 2], [0], [0]>} : vector<10x16x16xbf16>, vector<10x16x8xbf16>, vector<10x16x8xf32> -> vector<10x16x8xf32>
    "tpu.trace_stop"() : () -> ()
    %23 = vector.broadcast %17 : vector<10x16x1xf32> to vector<10x16x8xf32>
    %24 = arith.mulf %23, %22 : vector<10x16x8xf32>
    %25 = vector.broadcast %18 : vector<10x16x1xf32> to vector<10x16x8xf32>
    %26 = arith.mulf %25, %24 : vector<10x16x8xf32>
    %27 = arith.truncf %26 : vector<10x16x8xf32> to vector<10x16x8xbf16>
    "tpu.trace_start"() <{level = 10 : i32, message = "bij,bjc->bic"}> : () -> ()
    %cst_13 = arith.constant dense<0.000000e+00> : vector<10x16x8xf32>
    %28 = tpu.matmul %10, %27, %cst_13 {dimension_numbers = #tpu.dot_dimension_numbers<[2], [1], [1], [2], [0, 0, 0, 1, 1, 2], [0], [0]>} : vector<10x16x16xbf16>, vector<10x16x8xbf16>, vector<10x16x8xf32> -> vector<10x16x8xf32>
    "tpu.trace_stop"() : () -> ()
    %29 = vector.broadcast %17 : vector<10x16x1xf32> to vector<10x16x8xf32>
    %30 = arith.mulf %29, %28 : vector<10x16x8xf32>
    %31 = vector.broadcast %18 : vector<10x16x1xf32> to vector<10x16x8xf32>
    %32 = arith.mulf %31, %30 : vector<10x16x8xf32>
    %33 = arith.truncf %32 : vector<10x16x8xf32> to vector<10x16x8xbf16>
    "tpu.trace_start"() <{level = 10 : i32, message = "bij,bjc->bic"}> : () -> ()
    %cst_14 = arith.constant dense<0.000000e+00> : vector<10x16x8xf32>
    %34 = tpu.matmul %10, %33, %cst_14 {dimension_numbers = #tpu.dot_dimension_numbers<[2], [1], [1], [2], [0, 0, 0, 1, 1, 2], [0], [0]>} : vector<10x16x16xbf16>, vector<10x16x8xbf16>, vector<10x16x8xf32> -> vector<10x16x8xf32>
    "tpu.trace_stop"() : () -> ()
    %35 = vector.broadcast %17 : vector<10x16x1xf32> to vector<10x16x8xf32>
    %36 = arith.mulf %35, %34 : vector<10x16x8xf32>
    %37 = tpu.concatenate %24, %30, %36 in 2 : vector<10x16x8xf32>, vector<10x16x8xf32>, vector<10x16x8xf32> -> vector<10x16x24xf32>
    %38 = arith.truncf %37 : vector<10x16x24xf32> to vector<10x16x24xbf16>
    %39 = arith.truncf %2 : vector<10x16x8xf32> to vector<10x16x8xbf16>
    "tpu.trace_start"() <{level = 10 : i32, message = "bnc,bnd->bcd"}> : () -> ()
    %cst_15 = arith.constant dense<0.000000e+00> : vector<10x8x24xf32>
    %40 = tpu.matmul %39, %38, %cst_15 {dimension_numbers = #tpu.dot_dimension_numbers<[1], [1], [2], [2], [0, 0, 0, 2, 1, 2], [0], [0]>} : vector<10x16x8xbf16>, vector<10x16x24xbf16>, vector<10x8x24xf32> -> vector<10x8x24xf32>
    "tpu.trace_stop"() : () -> ()
    %cst_16 = arith.constant dense<0.000000e+00> : vector<10x8xf32>
    %41 = vector.multi_reduction <add>, %2, %cst_16 [1] : vector<10x16x8xf32> to vector<10x8xf32>
    %42 = vector.shape_cast %41 : vector<10x8xf32> to vector<10x8x1xf32>
    %43 = tpu.concatenate %40, %42 in 2 : vector<10x8x24xf32>, vector<10x8x1xf32> -> vector<10x8x25xf32>
    %44 = vector.shape_cast %43 : vector<10x8x25xf32> to vector<2x5x8x25xf32>
    %45 = vector.extract_strided_slice %44 {offsets = [0, 0, 0, 0], sizes = [2, 1, 8, 25], strides = [1, 1, 1, 1]} : vector<2x5x8x25xf32> to vector<2x1x8x25xf32>
    %46 = vector.shape_cast %45 : vector<2x1x8x25xf32> to vector<2x8x25xf32>
    %47 = vector.extract_strided_slice %44 {offsets = [0, 1, 0, 0], sizes = [2, 1, 8, 25], strides = [1, 1, 1, 1]} : vector<2x5x8x25xf32> to vector<2x1x8x25xf32>
    %48 = vector.shape_cast %47 : vector<2x1x8x25xf32> to vector<2x8x25xf32>
    %49 = vector.extract_strided_slice %44 {offsets = [0, 2, 0, 0], sizes = [2, 1, 8, 25], strides = [1, 1, 1, 1]} : vector<2x5x8x25xf32> to vector<2x1x8x25xf32>
    %50 = vector.shape_cast %49 : vector<2x1x8x25xf32> to vector<2x8x25xf32>
    %51 = vector.extract_strided_slice %44 {offsets = [0, 3, 0, 0], sizes = [2, 1, 8, 25], strides = [1, 1, 1, 1]} : vector<2x5x8x25xf32> to vector<2x1x8x25xf32>
    %52 = vector.shape_cast %51 : vector<2x1x8x25xf32> to vector<2x8x25xf32>
    %53 = vector.extract_strided_slice %44 {offsets = [0, 4, 0, 0], sizes = [2, 1, 8, 25], strides = [1, 1, 1, 1]} : vector<2x5x8x25xf32> to vector<2x1x8x25xf32>
    %54 = vector.shape_cast %53 : vector<2x1x8x25xf32> to vector<2x8x25xf32>
    %cst_17 = arith.constant 0.000000e+00 : f32
    %55 = vector.broadcast %cst_17 : f32 to vector<2x8x3xf32>
    %56 = tpu.concatenate %46, %48, %50, %52, %54, %55 in 2 : vector<2x8x25xf32>, vector<2x8x25xf32>, vector<2x8x25xf32>, vector<2x8x25xf32>, vector<2x8x25xf32>, vector<2x8x3xf32> -> vector<2x8x128xf32>
    %c0_18 = arith.constant 0 : index
    %c0_19 = arith.constant 0 : index
    %c0_20 = arith.constant 0 : index
    %57 = vector.load %arg3[%c0_18, %c0_19, %c0_20] : memref<2x8x128xf32, #tpu.memory_space<vmem>>, vector<2x8x128xf32>
    tpu.vector_store %arg3[%c0_18, %c0_19, %c0_20], %56 {strides = array<i32>} : memref<2x8x128xf32, #tpu.memory_space<vmem>>, vector<2x8x128xf32>,
    return
  }
  func.func @transform_0(%arg0: i32) -> (i32, i32, i32) {
    %c0_i32 = arith.constant 0 : i32
    %c0_i32_0 = arith.constant 0 : i32
    %c0_i32_1 = arith.constant 0 : i32
    return %arg0, %c0_i32, %c0_i32_0 : i32, i32, i32
  }
  func.func @transform_1(%arg0: i32) -> (i32, i32, i32) {
    %c0_i32 = arith.constant 0 : i32
    %c0_i32_0 = arith.constant 0 : i32
    %c0_i32_1 = arith.constant 0 : i32
    return %arg0, %c0_i32, %c0_i32_0 : i32, i32, i32
  }
  func.func @transform_2(%arg0: i32) -> (i32, i32, i32) {
    %c0_i32 = arith.constant 0 : i32
    %c0_i32_0 = arith.constant 0 : i32
    %c0_i32_1 = arith.constant 0 : i32
    return %arg0, %c0_i32, %c0_i32_0 : i32, i32, i32
  }
}

</mosaic_0001>

<llo_original>
// kernel: tpu_custom_call.1
$region0: #{tpu_custom_call.1}
  #allocation0 [shape = 'u32[]', space=smem, size = 0x4, offset = 0x4, fixed_abs, tag = 'smem constant byte address 0x4 - core index']
  #allocation1 [shape = 'u32[144,128]{1,0:T(1,128)}', space=vmem, size = 0x12000, scoped, tag = 'internal scratch']
  %s0 = inlined_call_operand.vmem [shape: bf16[20,16,16], index: 0, kind: input, shape index: {}]
  %s1 = inlined_call_operand.vmem [shape: f32[20,16,8], index: 1, kind: input, shape index: {}]
  %s2 = inlined_call_operand.hbm [shape: f32[4,8,128], index: 2, kind: output, shape index: {}]
  %s3 = sld [smem:[#allocation0]]
  $region41: #{tpu_custom_call.1} parent=0
    _
  %s5 = ssub.s32 1, %s3
  %s6 = scalar_select 0, %s5, %s3
  $region1: #{tpu_custom_call.1} parent=0
    #allocation2 [shape = 'u8[16384]{0}', space=vmem, size = 0x4000, scoped, tag = 'output window, operand 0']
    #allocation3 [shape = 's32[2]{0}', space=sflag, size = 0x8, scoped, tag = 'scoped memory for tpu_custom_call.1']
    %7 = vsyncpa [#allocation3], 0
    %s8 = scalar_lea.sflag [#allocation3], 1
    %9 = vsyncpa %s8, 0
    loop: start=0, step=1, limit=4
    $region2: #{tpu_custom_call.1} parent=1 // loop_pre_header
      _
    $region3: #{tpu_custom_call.1} parent=1 // loop_header
      %s11 = sphi 0, %s15
      %p12 = scmp.ge.s32.totalorder %s11, 4
      %s21 = sphi 0, %s23
      %s24 = sphi 0, %s21
      %s25 = sphi 0, %s24
      %s41 = sphi 0, %s25
      %s47 = sphi 0, %s49
      %s50 = sphi 0, %s47
      %s51 = sphi 0, %s50
      %s67 = sphi 0, %s51
      %s73 = sphi 0, %s75
      %s76 = sphi 0, %s73
      %s77 = sphi 0, %s76
      %s93 = sphi 0, %s77
    $region4: #{tpu_custom_call.1} parent=1 // loop_header_branch
      %14 = sbr.rel (%p12) target = $region8
    $region5: #{tpu_custom_call.1} parent=1 // loop_body
      %s16 = ssub.s32 %s11, 1
      %s17 = ssub.s32 %s11, 2
      %s18 = sadd.s32 %s11, 1
      %s19 = ssub.s32 %s11, %s18
      %p20 = scmp.eq.s32.totalorder %s19, 0
      %s22 = sadd.s32 %s21, 1
      %s23 = scalar_select %p20, %s21, %s22
      %p26 = pneg %p20
      %p27 = scmp.eq.s32.totalorder %s11, 1
      %p28 = por %p26, %p27
      %p29 = scmp.ne.s32.totalorder %s21, %s24
      %p30 = scmp.eq.s32.totalorder %s11, 0
      %p31 = por %p29, %p30
      %p32 = scmp.ne.s32.totalorder %s21, %s24
      %p33 = scmp.eq.s32.totalorder %s16, 1
      %p34 = por %p32, %p33
      %p35 = scmp.ne.s32.totalorder %s24, %s25
      %p36 = scmp.eq.s32.totalorder %s16, 0
      %p37 = por %p35, %p36
      %p38 = scmp.ne.s32.totalorder %s24, %s25
      %p39 = scmp.eq.s32.totalorder %s17, 1
      %p40 = por %p38, %p39
      %p42 = scmp.ne.s32.totalorder %s25, %s41
      %p43 = scmp.eq.s32.totalorder %s17, 0
      %p44 = por %p42, %p43
      %s45 = ssub.s32 %s11, %s18
      %p46 = scmp.eq.s32.totalorder %s45, 0
      %s48 = sadd.s32 %s47, 1
      %s49 = scalar_select %p46, %s47, %s48
      %p52 = pneg %p46
      %p53 = scmp.eq.s32.totalorder %s11, 1
      %p54 = por %p52, %p53
      %p55 = scmp.ne.s32.totalorder %s47, %s50
      %p56 = scmp.eq.s32.totalorder %s11, 0
      %p57 = por %p55, %p56
      %p58 = scmp.ne.s32.totalorder %s47, %s50
      %p59 = scmp.eq.s32.totalorder %s16, 1
      %p60 = por %p58, %p59
      %p61 = scmp.ne.s32.totalorder %s50, %s51
      %p62 = scmp.eq.s32.totalorder %s16, 0
      %p63 = por %p61, %p62
      %p64 = scmp.ne.s32.totalorder %s50, %s51
      %p65 = scmp.eq.s32.totalorder %s17, 1
      %p66 = por %p64, %p65
      %p68 = scmp.ne.s32.totalorder %s51, %s67
      %p69 = scmp.eq.s32.totalorder %s17, 0
      %p70 = por %p68, %p69
      %s71 = ssub.s32 %s11, %s18
      %p72 = scmp.eq.s32.totalorder %s71, 0
      %s74 = sadd.s32 %s73, 1
      %s75 = scalar_select %p72, %s73, %s74
      %p78 = pneg %p72
      %p79 = scmp.eq.s32.totalorder %s11, 1
      %p80 = por %p78, %p79
      %p81 = scmp.ne.s32.totalorder %s73, %s76
      %p82 = scmp.eq.s32.totalorder %s11, 0
      %p83 = por %p81, %p82
      %p84 = scmp.ne.s32.totalorder %s73, %s76
      %p85 = scmp.eq.s32.totalorder %s16, 1
      %p86 = por %p84, %p85
      %p87 = scmp.ne.s32.totalorder %s76, %s77
      %p88 = scmp.eq.s32.totalorder %s16, 0
      %p89 = por %p87, %p88
      %p90 = scmp.ne.s32.totalorder %s76, %s77
      %p91 = scmp.eq.s32.totalorder %s17, 1
      %p92 = por %p90, %p91
      %p94 = scmp.ne.s32.totalorder %s77, %s93
      %p95 = scmp.eq.s32.totalorder %s17, 0
      %p96 = por %p94, %p95
      %p97 = scmp.le.s32.totalorder 1, %s11
      %p98 = scmp.lt.s32.totalorder %s11, 3
      %p99 = pnand %p97, %p98
      %p100 = pneg %p99
      // Predicated region
      $region9: #{tpu_custom_call.1} parent=5 // pred_check
        _
      $region10: #{tpu_custom_call.1} parent=5 // pred_check_branch
        %102 = sbr.rel (%p99) target = $region12
      $region11: #{tpu_custom_call.1} parent=5 // pred_region
        %s103 = ssub.s32 %s11, 1
      $region12: #{tpu_custom_call.1} parent=5 // pred_fallthru
        _
      %p104 = scmp.lt.s32.totalorder %s11, 2
      // Predicated region
      $region13: #{tpu_custom_call.1} parent=5 // pred_check
        %p105 = pneg %p104
      $region14: #{tpu_custom_call.1} parent=5 // pred_check_branch
        %107 = sbr.rel (%p105) target = $region16
      $region15: #{tpu_custom_call.1} parent=5 // pred_region
        // Predicated region
        $region17: #{tpu_custom_call.1} parent=15 // pred_check
          %p108 = pneg %p31
        $region18: #{tpu_custom_call.1} parent=15 // pred_check_branch
          %110 = sbr.rel (%p108) target = $region20
        $region19: #{tpu_custom_call.1} parent=15 // pred_region
          %s111 = smul.u32 10, %s11
          %p112 = scmp.lt.s32.totalorder %s111, 19
          %s113 = scalar_select %p112, %s111, 19
          %s114 = smul.addr %s113, 2
          %s115 = smul.addr %s114, 4
          %s116 = scalar_lea.vmem %s0, %s115
          %s117 = smul.u32 10, %s11
        $region20: #{tpu_custom_call.1} parent=15 // pred_fallthru
          _
        // Predicated region
        $region21: #{tpu_custom_call.1} parent=15 // pred_check
          %p118 = pneg %p57
        $region22: #{tpu_custom_call.1} parent=15 // pred_check_branch
          %120 = sbr.rel (%p118) target = $region24
        $region23: #{tpu_custom_call.1} parent=15 // pred_region
          %s121 = smul.u32 10, %s11
          %p122 = scmp.lt.s32.totalorder %s121, 19
          %s123 = scalar_select %p122, %s121, 19
          %s124 = smul.addr %s123, 2
          %s125 = smul.addr %s124, 8
          %s126 = scalar_lea.vmem %s1, %s125
          %s127 = smul.u32 10, %s11
        $region24: #{tpu_custom_call.1} parent=15 // pred_fallthru
          _
      $region16: #{tpu_custom_call.1} parent=5 // pred_fallthru
        _
      %p128 = scmp.le.s32.totalorder 1, %s11
      %p129 = scmp.lt.s32.totalorder %s11, 3
      %p130 = pnand %p128, %p129
      %p131 = pneg %p130
      // Predicated region
      $region25: #{tpu_custom_call.1} parent=5 // pred_check
        _
      $region26: #{tpu_custom_call.1} parent=5 // pred_check_branch
        %133 = sbr.rel (%p130) target = $region28
      $region27: #{tpu_custom_call.1} parent=5 // pred_region
        %s134 = ssub.s32 %s11, 1
        %s135 = smul.u32 10, %s16
        %p136 = scmp.lt.s32.totalorder %s135, 19
        %s137 = scalar_select %p136, %s135, 19
        %s138 = smul.addr %s137, 2
        %s139 = smul.addr %s138, 4
        %s140 = scalar_lea.vmem %s0, %s139
        %p141 = pneg %p37
        %p142 = pneg %p34
        %s143 = smul.u32 10, %s16
        %p144 = scmp.lt.s32.totalorder %s143, 19
        %s145 = scalar_select %p144, %s143, 19
        %s146 = smul.addr %s145, 2
        %s147 = smul.addr %s146, 8
        %s148 = scalar_lea.vmem %s1, %s147
        %p149 = pneg %p63
        %p150 = pneg %p60
        %p151 = pneg %p89
        %p152 = pneg %p86
        %s153 = sand.u32 %s76, 1
        %s154 = scalar_lea.sflag [#allocation3], %s153
        %s155 = sand.u32 %s76, 1
        %s156 = smul.addr %s155, 16
        %s157 = scalar_lea.vmem [#allocation2], %s156
        %s158 = smul.u32 10, %s16
        %p159 = scmp.lt.s32.totalorder %s158, 19
        %s160 = scalar_select %p159, %s158, 19
        %s161 = smul.addr %s160, 2
        %s162 = smul.addr %s161, 4
        %s163 = scalar_lea.vmem %s0, %s162
        %s164 = smul.u32 10, %s16
        %s165 = smul.u32 10, %s16
        %p166 = scmp.lt.s32.totalorder %s165, 19
        %s167 = scalar_select %p166, %s165, 19
        %s168 = smul.addr %s167, 2
        %s169 = smul.addr %s168, 8
        %s170 = scalar_lea.vmem %s1, %s169
        %s171 = smul.u32 10, %s16
        %s172 = smul.u32 2, %s16
        %v174 = vld [vmem:[%s163] sm:$0xf]
        %v175 = vld [vmem:[%s163 + $0x4] sm:$0xf]
        %v176 = vld [vmem:[%s163 + $0x8] sm:$0xf]
        %v177 = vld [vmem:[%s163 + $0xc] sm:$0xf]
        %v178 = vld [vmem:[%s163 + $0x10] sm:$0xf]
        %v179 = vld [vmem:[%s163 + $0x14] sm:$0xf]
        %v180 = vld [vmem:[%s163 + $0x18] sm:$0xf]
        %v181 = vld [vmem:[%s163 + $0x1c] sm:$0xf]
        %v182 = vld [vmem:[%s163 + $0x20] sm:$0xf]
        %v183 = vld [vmem:[%s163 + $0x24] sm:$0xf]
        %v184 = vld [vmem:[%s163 + $0x28] sm:$0xf]
        %v185 = vld [vmem:[%s163 + $0x2c] sm:$0xf]
        %v186 = vld [vmem:[%s163 + $0x30] sm:$0xf]
        %v187 = vld [vmem:[%s163 + $0x34] sm:$0xf]
        %v188 = vld [vmem:[%s163 + $0x38] sm:$0xf]
        %v189 = vld [vmem:[%s163 + $0x3c] sm:$0xf]
        %v190 = vld [vmem:[%s163 + $0x40] sm:$0xf]
        %v191 = vld [vmem:[%s163 + $0x44] sm:$0xf]
        %v192 = vld [vmem:[%s163 + $0x48] sm:$0xf]
        %v193 = vld [vmem:[%s163 + $0x4c] sm:$0xf]
        %v194 = vunpack.c.l.bf16 %v174
        %v195 = vunpack.c.l.bf16 %v175
        %v196 = vunpack.c.l.bf16 %v176
        %v197 = vunpack.c.l.bf16 %v177
        %v198 = vunpack.c.l.bf16 %v178
        %v199 = vunpack.c.l.bf16 %v179
        %v200 = vunpack.c.l.bf16 %v180
        %v201 = vunpack.c.l.bf16 %v181
        %v202 = vunpack.c.l.bf16 %v182
        %v203 = vunpack.c.l.bf16 %v183
        %v204 = vunpack.c.l.bf16 %v184
        %v205 = vunpack.c.l.bf16 %v185
        %v206 = vunpack.c.l.bf16 %v186
        %v207 = vunpack.c.l.bf16 %v187
        %v208 = vunpack.c.l.bf16 %v188
        %v209 = vunpack.c.l.bf16 %v189
        %v210 = vunpack.c.l.bf16 %v190
        %v211 = vunpack.c.l.bf16 %v191
        %v212 = vunpack.c.l.bf16 %v192
        %v213 = vunpack.c.l.bf16 %v193
        %v214 = vld [vmem:[%s170] sm:$0xff]
        %v215 = vld [vmem:[%s170 + $0x8] sm:$0xff]
        %v216 = vld [vmem:[%s170 + $0x10] sm:$0xff]
        %v217 = vld [vmem:[%s170 + $0x18] sm:$0xff]
        %v218 = vld [vmem:[%s170 + $0x20] sm:$0xff]
        %v219 = vld [vmem:[%s170 + $0x28] sm:$0xff]
        %v220 = vld [vmem:[%s170 + $0x30] sm:$0xff]
        %v221 = vld [vmem:[%s170 + $0x38] sm:$0xff]
        %v222 = vld [vmem:[%s170 + $0x40] sm:$0xff]
        %v223 = vld [vmem:[%s170 + $0x48] sm:$0xff]
        %v224 = vld [vmem:[%s170 + $0x50] sm:$0xff]
        %v225 = vld [vmem:[%s170 + $0x58] sm:$0xff]
        %v226 = vld [vmem:[%s170 + $0x60] sm:$0xff]
        %v227 = vld [vmem:[%s170 + $0x68] sm:$0xff]
        %v228 = vld [vmem:[%s170 + $0x70] sm:$0xff]
        %v229 = vld [vmem:[%s170 + $0x78] sm:$0xff]
        %v230 = vld [vmem:[%s170 + $0x80] sm:$0xff]
        %v231 = vld [vmem:[%s170 + $0x88] sm:$0xff]
        %v232 = vld [vmem:[%s170 + $0x90] sm:$0xff]
        %v233 = vld [vmem:[%s170 + $0x98] sm:$0xff]
        %v234 = vmul.f32 %v194, %v194
        %v235 = vmul.f32 %v195, %v195
        %v236 = vmul.f32 %v196, %v196
        %v237 = vmul.f32 %v197, %v197
        %v238 = vmul.f32 %v198, %v198
        %v239 = vmul.f32 %v199, %v199
        %v240 = vmul.f32 %v200, %v200
        %v241 = vmul.f32 %v201, %v201
        %v242 = vmul.f32 %v202, %v202
        %v243 = vmul.f32 %v203, %v203
        %v244 = vmul.f32 %v204, %v204
        %v245 = vmul.f32 %v205, %v205
        %v246 = vmul.f32 %v206, %v206
        %v247 = vmul.f32 %v207, %v207
        %v248 = vmul.f32 %v208, %v208
        %v249 = vmul.f32 %v209, %v209
        %v250 = vmul.f32 %v210, %v210
        %v251 = vmul.f32 %v211, %v211
        %v252 = vmul.f32 %v212, %v212
        %v253 = vmul.f32 %v213, %v213
        %vm254 = vcmask 130048
        %v255 = vsel %vm254, %v234, 0.0
        %256 = vadd.xlane.f32.xlu0 %v255
        %v257 = vpop.xlane.xlu0 %256
        %v258 = vsel %vm254, %v235, 0.0
        %259 = vadd.xlane.f32.xlu0 %v258
        %v260 = vpop.xlane.xlu0 %259
        %v261 = vsel %vm254, %v236, 0.0
        %262 = vadd.xlane.f32.xlu0 %v261
        %v263 = vpop.xlane.xlu0 %262
        %v264 = vsel %vm254, %v237, 0.0
        %265 = vadd.xlane.f32.xlu0 %v264
        %v266 = vpop.xlane.xlu0 %265
        %v267 = vsel %vm254, %v238, 0.0
        %268 = vadd.xlane.f32.xlu0 %v267
        %v269 = vpop.xlane.xlu0 %268
        %v270 = vsel %vm254, %v239, 0.0
        %271 = vadd.xlane.f32.xlu0 %v270
        %v272 = vpop.xlane.xlu0 %271
        %v273 = vsel %vm254, %v240, 0.0
        %274 = vadd.xlane.f32.xlu0 %v273
        %v275 = vpop.xlane.xlu0 %274
        %v276 = vsel %vm254, %v241, 0.0
        %277 = vadd.xlane.f32.xlu0 %v276
        %v278 = vpop.xlane.xlu0 %277
        %v279 = vsel %vm254, %v242, 0.0
        %280 = vadd.xlane.f32.xlu0 %v279
        %v281 = vpop.xlane.xlu0 %280
        %v282 = vsel %vm254, %v243, 0.0
        %283 = vadd.xlane.f32.xlu0 %v282
        %v284 = vpop.xlane.xlu0 %283
        %v285 = vsel %vm254, %v244, 0.0
        %286 = vadd.xlane.f32.xlu0 %v285
        %v287 = vpop.xlane.xlu0 %286
        %v288 = vsel %vm254, %v245, 0.0
        %289 = vadd.xlane.f32.xlu0 %v288
        %v290 = vpop.xlane.xlu0 %289
        %v291 = vsel %vm254, %v246, 0.0
        %292 = vadd.xlane.f32.xlu0 %v291
        %v293 = vpop.xlane.xlu0 %292
        %v294 = vsel %vm254, %v247, 0.0
        %295 = vadd.xlane.f32.xlu0 %v294
        %v296 = vpop.xlane.xlu0 %295
        %v297 = vsel %vm254, %v248, 0.0
        %298 = vadd.xlane.f32.xlu0 %v297
        %v299 = vpop.xlane.xlu0 %298
        %v300 = vsel %vm254, %v249, 0.0
        %301 = vadd.xlane.f32.xlu0 %v300
        %v302 = vpop.xlane.xlu0 %301
        %v303 = vsel %vm254, %v250, 0.0
        %304 = vadd.xlane.f32.xlu0 %v303
        %v305 = vpop.xlane.xlu0 %304
        %v306 = vsel %vm254, %v251, 0.0
        %307 = vadd.xlane.f32.xlu0 %v306
        %v308 = vpop.xlane.xlu0 %307
        %v309 = vsel %vm254, %v252, 0.0
        %310 = vadd.xlane.f32.xlu0 %v309
        %v311 = vpop.xlane.xlu0 %310
        %v312 = vsel %vm254, %v253, 0.0
        %313 = vadd.xlane.f32.xlu0 %v312
        %v314 = vpop.xlane.xlu0 %313
        %v315 = vrsqrt.pop %v257
        %v316 = vmul.f32 %v257, %v315
        %vm317 = vcmp.eq.f32.partialorder %v257, inf
        %v318 = vsel %vm317, %v257, %v316
        %vm319 = vcmp.eq.f32.partialorder %v257, 0.0
        %v320 = vand.u32 %v257, 2147483648
        %v321 = vsel %vm319, %v320, %v318
        %v322 = vrsqrt.pop %v260
        %v323 = vmul.f32 %v260, %v322
        %vm324 = vcmp.eq.f32.partialorder %v260, inf
        %v325 = vsel %vm324, %v260, %v323
        %vm326 = vcmp.eq.f32.partialorder %v260, 0.0
        %v327 = vand.u32 %v260, 2147483648
        %v328 = vsel %vm326, %v327, %v325
        %v329 = vrsqrt.pop %v263
        %v330 = vmul.f32 %v263, %v329
        %vm331 = vcmp.eq.f32.partialorder %v263, inf
        %v332 = vsel %vm331, %v263, %v330
        %vm333 = vcmp.eq.f32.partialorder %v263, 0.0
        %v334 = vand.u32 %v263, 2147483648
        %v335 = vsel %vm333, %v334, %v332
        %v336 = vrsqrt.pop %v266
        %v337 = vmul.f32 %v266, %v336
        %vm338 = vcmp.eq.f32.partialorder %v266, inf
        %v339 = vsel %vm338, %v266, %v337
        %vm340 = vcmp.eq.f32.partialorder %v266, 0.0
        %v341 = vand.u32 %v266, 2147483648
        %v342 = vsel %vm340, %v341, %v339
        %v343 = vrsqrt.pop %v269
        %v344 = vmul.f32 %v269, %v343
        %vm345 = vcmp.eq.f32.partialorder %v269, inf
        %v346 = vsel %vm345, %v269, %v344
        %vm347 = vcmp.eq.f32.partialorder %v269, 0.0
        %v348 = vand.u32 %v269, 2147483648
        %v349 = vsel %vm347, %v348, %v346
        %v350 = vrsqrt.pop %v272
        %v351 = vmul.f32 %v272, %v350
        %vm352 = vcmp.eq.f32.partialorder %v272, inf
        %v353 = vsel %vm352, %v272, %v351
        %vm354 = vcmp.eq.f32.partialorder %v272, 0.0
        %v355 = vand.u32 %v272, 2147483648
        %v356 = vsel %vm354, %v355, %v353
        %v357 = vrsqrt.pop %v275
        %v358 = vmul.f32 %v275, %v357
        %vm359 = vcmp.eq.f32.partialorder %v275, inf
        %v360 = vsel %vm359, %v275, %v358
        %vm361 = vcmp.eq.f32.partialorder %v275, 0.0
        %v362 = vand.u32 %v275, 2147483648
        %v363 = vsel %vm361, %v362, %v360
        %v364 = vrsqrt.pop %v278
        %v365 = vmul.f32 %v278, %v364
        %vm366 = vcmp.eq.f32.partialorder %v278, inf
        %v367 = vsel %vm366, %v278, %v365
        %vm368 = vcmp.eq.f32.partialorder %v278, 0.0
        %v369 = vand.u32 %v278, 2147483648
        %v370 = vsel %vm368, %v369, %v367
        %v371 = vrsqrt.pop %v281
        %v372 = vmul.f32 %v281, %v371
        %vm373 = vcmp.eq.f32.partialorder %v281, inf
        %v374 = vsel %vm373, %v281, %v372
        %vm375 = vcmp.eq.f32.partialorder %v281, 0.0
        %v376 = vand.u32 %v281, 2147483648
        %v377 = vsel %vm375, %v376, %v374
        %v378 = vrsqrt.pop %v284
        %v379 = vmul.f32 %v284, %v378
        %vm380 = vcmp.eq.f32.partialorder %v284, inf
        %v381 = vsel %vm380, %v284, %v379
        %vm382 = vcmp.eq.f32.partialorder %v284, 0.0
        %v383 = vand.u32 %v284, 2147483648
        %v384 = vsel %vm382, %v383, %v381
        %v385 = vrsqrt.pop %v287
        %v386 = vmul.f32 %v287, %v385
        %vm387 = vcmp.eq.f32.partialorder %v287, inf
        %v388 = vsel %vm387, %v287, %v386
        %vm389 = vcmp.eq.f32.partialorder %v287, 0.0
        %v390 = vand.u32 %v287, 2147483648
        %v391 = vsel %vm389, %v390, %v388
        %v392 = vrsqrt.pop %v290
        %v393 = vmul.f32 %v290, %v392
        %vm394 = vcmp.eq.f32.partialorder %v290, inf
        %v395 = vsel %vm394, %v290, %v393
        %vm396 = vcmp.eq.f32.partialorder %v290, 0.0
        %v397 = vand.u32 %v290, 2147483648
        %v398 = vsel %vm396, %v397, %v395
        %v399 = vrsqrt.pop %v293
        %v400 = vmul.f32 %v293, %v399
        %vm401 = vcmp.eq.f32.partialorder %v293, inf
        %v402 = vsel %vm401, %v293, %v400
        %vm403 = vcmp.eq.f32.partialorder %v293, 0.0
        %v404 = vand.u32 %v293, 2147483648
        %v405 = vsel %vm403, %v404, %v402
        %v406 = vrsqrt.pop %v296
        %v407 = vmul.f32 %v296, %v406
        %vm408 = vcmp.eq.f32.partialorder %v296, inf
        %v409 = vsel %vm408, %v296, %v407
        %vm410 = vcmp.eq.f32.partialorder %v296, 0.0
        %v411 = vand.u32 %v296, 2147483648
        %v412 = vsel %vm410, %v411, %v409
        %v413 = vrsqrt.pop %v299
        %v414 = vmul.f32 %v299, %v413
        %vm415 = vcmp.eq.f32.partialorder %v299, inf
        %v416 = vsel %vm415, %v299, %v414
        %vm417 = vcmp.eq.f32.partialorder %v299, 0.0
        %v418 = vand.u32 %v299, 2147483648
        %v419 = vsel %vm417, %v418, %v416
        %v420 = vrsqrt.pop %v302
        %v421 = vmul.f32 %v302, %v420
        %vm422 = vcmp.eq.f32.partialorder %v302, inf
        %v423 = vsel %vm422, %v302, %v421
        %vm424 = vcmp.eq.f32.partialorder %v302, 0.0
        %v425 = vand.u32 %v302, 2147483648
        %v426 = vsel %vm424, %v425, %v423
        %v427 = vrsqrt.pop %v305
        %v428 = vmul.f32 %v305, %v427
        %vm429 = vcmp.eq.f32.partialorder %v305, inf
        %v430 = vsel %vm429, %v305, %v428
        %vm431 = vcmp.eq.f32.partialorder %v305, 0.0
        %v432 = vand.u32 %v305, 2147483648
        %v433 = vsel %vm431, %v432, %v430
        %v434 = vrsqrt.pop %v308
        %v435 = vmul.f32 %v308, %v434
        %vm436 = vcmp.eq.f32.partialorder %v308, inf
        %v437 = vsel %vm436, %v308, %v435
        %vm438 = vcmp.eq.f32.partialorder %v308, 0.0
        %v439 = vand.u32 %v308, 2147483648
        %v440 = vsel %vm438, %v439, %v437
        %v441 = vrsqrt.pop %v311
        %v442 = vmul.f32 %v311, %v441
        %vm443 = vcmp.eq.f32.partialorder %v311, inf
        %v444 = vsel %vm443, %v311, %v442
        %vm445 = vcmp.eq.f32.partialorder %v311, 0.0
        %v446 = vand.u32 %v311, 2147483648
        %v447 = vsel %vm445, %v446, %v444
        %v448 = vrsqrt.pop %v314
        %v449 = vmul.f32 %v314, %v448
        %vm450 = vcmp.eq.f32.partialorder %v314, inf
        %v451 = vsel %vm450, %v314, %v449
        %vm452 = vcmp.eq.f32.partialorder %v314, 0.0
        %v453 = vand.u32 %v314, 2147483648
        %v454 = vsel %vm452, %v453, %v451
        %v455 = vadd.f32 %v321, 0.001
        %v456 = vadd.f32 %v328, 0.001
        %v457 = vadd.f32 %v335, 0.001
        %v458 = vadd.f32 %v342, 0.001
        %v459 = vadd.f32 %v349, 0.001
        %v460 = vadd.f32 %v356, 0.001
        %v461 = vadd.f32 %v363, 0.001
        %v462 = vadd.f32 %v370, 0.001
        %v463 = vadd.f32 %v377, 0.001
        %v464 = vadd.f32 %v384, 0.001
        %v465 = vadd.f32 %v391, 0.001
        %v466 = vadd.f32 %v398, 0.001
        %v467 = vadd.f32 %v405, 0.001
        %v468 = vadd.f32 %v412, 0.001
        %v469 = vadd.f32 %v419, 0.001
        %v470 = vadd.f32 %v426, 0.001
        %v471 = vadd.f32 %v433, 0.001
        %v472 = vadd.f32 %v440, 0.001
        %v473 = vadd.f32 %v447, 0.001
        %v474 = vadd.f32 %v454, 0.001
        %v475 = vrsqrt.pop %v455
        %v476 = vrsqrt.pop %v456
        %v477 = vrsqrt.pop %v457
        %v478 = vrsqrt.pop %v458
        %v479 = vrsqrt.pop %v459
        %v480 = vrsqrt.pop %v460
        %v481 = vrsqrt.pop %v461
        %v482 = vrsqrt.pop %v462
        %v483 = vrsqrt.pop %v463
        %v484 = vrsqrt.pop %v464
        %v485 = vrsqrt.pop %v465
        %v486 = vrsqrt.pop %v466
        %v487 = vrsqrt.pop %v467
        %v488 = vrsqrt.pop %v468
        %v489 = vrsqrt.pop %v469
        %v490 = vrsqrt.pop %v470
        %v491 = vrsqrt.pop %v471
        %v492 = vrsqrt.pop %v472
        %v493 = vrsqrt.pop %v473
        %v494 = vrsqrt.pop %v474
        %v495 = vpack.c.bf16 %v476, %v475
        %v496 = vpack.c.bf16 %v478, %v477
        %v497 = vpack.c.bf16 %v480, %v479
        %v498 = vpack.c.bf16 %v482, %v481
        %v499 = vpack.c.bf16 %v484, %v483
        %v500 = vpack.c.bf16 %v486, %v485
        %v501 = vpack.c.bf16 %v488, %v487
        %v502 = vpack.c.bf16 %v490, %v489
        %v503 = vpack.c.bf16 %v492, %v491
        %v504 = vpack.c.bf16 %v494, %v493
        %v507 = vunpack.c.l.b16 %v174
        %v508 = vunpack.c.l.b16 %v175
        %v509 = vpack.c.b16 %v508, %v507
        %v511 = vsel %vm254, %v509, 0
        %513 = vmatprep.subr.bf16.mxu0 0
        %514 = vmatpush1.bf16.msra.mxu0 %v495
        %515 = vmatprep.subr.bf16.mxu0 0
        %516 = vmatpush1.bf16.msra.mxu0 0
        %517 = vmatprep.subr.bf16.mxu0 0
        %518 = vmatpush1.bf16.msra.mxu0 0
        %519 = vmatprep.subr.bf16.mxu0 0
        %520 = vmatpush1.bf16.msra.mxu0 0
        %521 = vmatprep.subr.bf16.mxu0 0
        %522 = vmatpush1.bf16.msra.mxu0 0
        %523 = vmatprep.subr.bf16.mxu0 0
        %524 = vmatpush1.bf16.msra.mxu0 0
        %525 = vmatprep.subr.bf16.mxu0 0
        %526 = vmatpush1.bf16.msra.mxu0 0
        %527 = vmatprep.subr.bf16.mxu0 0
        %528 = vmatpush1.bf16.msra.mxu0 0
        %529 = vmatprep.subr.bf16.mxu0 0
        %530 = vmatpush1.bf16.msra.mxu0 0
        %531 = vmatprep.subr.bf16.mxu0 0
        %532 = vmatpush1.bf16.msra.mxu0 0
        %533 = vmatprep.subr.bf16.mxu0 0
        %534 = vmatpush1.bf16.msra.mxu0 0
        %535 = vmatprep.subr.bf16.mxu0 0
        %536 = vmatpush1.bf16.msra.mxu0 0
        %537 = vmatprep.subr.bf16.mxu0 0
        %538 = vmatpush1.bf16.msra.mxu0 0
        %539 = vmatprep.subr.bf16.mxu0 0
        %540 = vmatpush1.bf16.msra.mxu0 0
        %541 = vmatprep.subr.bf16.mxu0 0
        %542 = vmatpush1.bf16.msra.mxu0 0
        %543 = vmatprep.subr.bf16.mxu0 0
        %544 = vmatpush1.bf16.msra.mxu0 0
        %545 = vmatprep.mubr.bf16.mxu0 0
        %546 = vmatmul.mubr.bf16.gmra.mrb[0].mxu0 %v511
        %v547 = vpop.f32.mrb[0].mxu0
        %v548 = vadd.f32 0.0, %v547
        %v549 = vpop.f32.mrb[0].mxu0
        %v550 = vpop.f32.mrb[0].mxu0
        %v551 = vadd.f32 0.0, %v550
        %v552 = vpop.f32.mrb[0].mxu0
        %553 = vdwg.mxu0
        %v556 = vunpack.c.l.b16 %v176
        %v557 = vunpack.c.l.b16 %v177
        %v558 = vpack.c.b16 %v557, %v556
        %v560 = vsel %vm254, %v558, 0
        %562 = vmatprep.subr.bf16.mxu0 0
        %563 = vmatpush1.bf16.msra.mxu0 %v496
        %564 = vmatprep.subr.bf16.mxu0 0
        %565 = vmatpush1.bf16.msra.mxu0 0
        %566 = vmatprep.subr.bf16.mxu0 0
        %567 = vmatpush1.bf16.msra.mxu0 0
        %568 = vmatprep.subr.bf16.mxu0 0
        %569 = vmatpush1.bf16.msra.mxu0 0
        %570 = vmatprep.subr.bf16.mxu0 0
        %571 = vmatpush1.bf16.msra.mxu0 0
        %572 = vmatprep.subr.bf16.mxu0 0
        %573 = vmatpush1.bf16.msra.mxu0 0
        %574 = vmatprep.subr.bf16.mxu0 0
        %575 = vmatpush1.bf16.msra.mxu0 0
        %576 = vmatprep.subr.bf16.mxu0 0
        %577 = vmatpush1.bf16.msra.mxu0 0
        %578 = vmatprep.subr.bf16.mxu0 0
        %579 = vmatpush1.bf16.msra.mxu0 0
        %580 = vmatprep.subr.bf16.mxu0 0
        %581 = vmatpush1.bf16.msra.mxu0 0
        %582 = vmatprep.subr.bf16.mxu0 0
        %583 = vmatpush1.bf16.msra.mxu0 0
        %584 = vmatprep.subr.bf16.mxu0 0
        %585 = vmatpush1.bf16.msra.mxu0 0
        %586 = vmatprep.subr.bf16.mxu0 0
        %587 = vmatpush1.bf16.msra.mxu0 0
        %588 = vmatprep.subr.bf16.mxu0 0
        %589 = vmatpush1.bf16.msra.mxu0 0
        %590 = vmatprep.subr.bf16.mxu0 0
        %591 = vmatpush1.bf16.msra.mxu0 0
        %592 = vmatprep.subr.bf16.mxu0 0
        %593 = vmatpush1.bf16.msra.mxu0 0
        %594 = vmatprep.mubr.bf16.mxu0 0
        %595 = vmatmul.mubr.bf16.gmra.mrb[0].mxu0 %v560
        %v596 = vpop.f32.mrb[0].mxu0
        %v597 = vadd.f32 0.0, %v596
        %v598 = vpop.f32.mrb[0].mxu0
        %v599 = vpop.f32.mrb[0].mxu0
        %v600 = vadd.f32 0.0, %v599
        %v601 = vpop.f32.mrb[0].mxu0
        %602 = vdwg.mxu0
        %v605 = vunpack.c.l.b16 %v178
        %v606 = vunpack.c.l.b16 %v179
        %v607 = vpack.c.b16 %v606, %v605
        %v609 = vsel %vm254, %v607, 0
        %611 = vmatprep.subr.bf16.mxu0 0
        %612 = vmatpush1.bf16.msra.mxu0 %v497
        %613 = vmatprep.subr.bf16.mxu0 0
        %614 = vmatpush1.bf16.msra.mxu0 0
        %615 = vmatprep.subr.bf16.mxu0 0
        %616 = vmatpush1.bf16.msra.mxu0 0
        %617 = vmatprep.subr.bf16.mxu0 0
        %618 = vmatpush1.bf16.msra.mxu0 0
        %619 = vmatprep.subr.bf16.mxu0 0
        %620 = vmatpush1.bf16.msra.mxu0 0
        %621 = vmatprep.subr.bf16.mxu0 0
        %622 = vmatpush1.bf16.msra.mxu0 0
        %623 = vmatprep.subr.bf16.mxu0 0
        %624 = vmatpush1.bf16.msra.mxu0 0
        %625 = vmatprep.subr.bf16.mxu0 0
        %626 = vmatpush1.bf16.msra.mxu0 0
        %627 = vmatprep.subr.bf16.mxu0 0
        %628 = vmatpush1.bf16.msra.mxu0 0
        %629 = vmatprep.subr.bf16.mxu0 0
        %630 = vmatpush1.bf16.msra.mxu0 0
        %631 = vmatprep.subr.bf16.mxu0 0
        %632 = vmatpush1.bf16.msra.mxu0 0
        %633 = vmatprep.subr.bf16.mxu0 0
        %634 = vmatpush1.bf16.msra.mxu0 0
        %635 = vmatprep.subr.bf16.mxu0 0
        %636 = vmatpush1.bf16.msra.mxu0 0
        %637 = vmatprep.subr.bf16.mxu0 0
        %638 = vmatpush1.bf16.msra.mxu0 0
        %639 = vmatprep.subr.bf16.mxu0 0
        %640 = vmatpush1.bf16.msra.mxu0 0
        %641 = vmatprep.subr.bf16.mxu0 0
        %642 = vmatpush1.bf16.msra.mxu0 0
        %643 = vmatprep.mubr.bf16.mxu0 0
        %644 = vmatmul.mubr.bf16.gmra.mrb[0].mxu0 %v609
        %v645 = vpop.f32.mrb[0].mxu0
        %v646 = vadd.f32 0.0, %v645
        %v647 = vpop.f32.mrb[0].mxu0
        %v648 = vpop.f32.mrb[0].mxu0
        %v649 = vadd.f32 0.0, %v648
        %v650 = vpop.f32.mrb[0].mxu0
        %651 = vdwg.mxu0
        %v654 = vunpack.c.l.b16 %v180
        %v655 = vunpack.c.l.b16 %v181
        %v656 = vpack.c.b16 %v655, %v654
        %v658 = vsel %vm254, %v656, 0
        %660 = vmatprep.subr.bf16.mxu0 0
        %661 = vmatpush1.bf16.msra.mxu0 %v498
        %662 = vmatprep.subr.bf16.mxu0 0
        %663 = vmatpush1.bf16.msra.mxu0 0
        %664 = vmatprep.subr.bf16.mxu0 0
        %665 = vmatpush1.bf16.msra.mxu0 0
        %666 = vmatprep.subr.bf16.mxu0 0
        %667 = vmatpush1.bf16.msra.mxu0 0
        %668 = vmatprep.subr.bf16.mxu0 0
        %669 = vmatpush1.bf16.msra.mxu0 0
        %670 = vmatprep.subr.bf16.mxu0 0
        %671 = vmatpush1.bf16.msra.mxu0 0
        %672 = vmatprep.subr.bf16.mxu0 0
        %673 = vmatpush1.bf16.msra.mxu0 0
        %674 = vmatprep.subr.bf16.mxu0 0
        %675 = vmatpush1.bf16.msra.mxu0 0
        %676 = vmatprep.subr.bf16.mxu0 0
        %677 = vmatpush1.bf16.msra.mxu0 0
        %678 = vmatprep.subr.bf16.mxu0 0
        %679 = vmatpush1.bf16.msra.mxu0 0
        %680 = vmatprep.subr.bf16.mxu0 0
        %681 = vmatpush1.bf16.msra.mxu0 0
        %682 = vmatprep.subr.bf16.mxu0 0
        %683 = vmatpush1.bf16.msra.mxu0 0
        %684 = vmatprep.subr.bf16.mxu0 0
        %685 = vmatpush1.bf16.msra.mxu0 0
        %686 = vmatprep.subr.bf16.mxu0 0
        %687 = vmatpush1.bf16.msra.mxu0 0
        %688 = vmatprep.subr.bf16.mxu0 0
        %689 = vmatpush1.bf16.msra.mxu0 0
        %690 = vmatprep.subr.bf16.mxu0 0
        %691 = vmatpush1.bf16.msra.mxu0 0
        %692 = vmatprep.mubr.bf16.mxu0 0
        %693 = vmatmul.mubr.bf16.gmra.mrb[0].mxu0 %v658
        %v694 = vpop.f32.mrb[0].mxu0
        %v695 = vadd.f32 0.0, %v694
        %v696 = vpop.f32.mrb[0].mxu0
        %v697 = vpop.f32.mrb[0].mxu0
        %v698 = vadd.f32 0.0, %v697
        %v699 = vpop.f32.mrb[0].mxu0
        %700 = vdwg.mxu0
        %v703 = vunpack.c.l.b16 %v182
        %v704 = vunpack.c.l.b16 %v183
        %v705 = vpack.c.b16 %v704, %v703
        %v707 = vsel %vm254, %v705, 0
        %709 = vmatprep.subr.bf16.mxu0 0
        %710 = vmatpush1.bf16.msra.mxu0 %v499
        %711 = vmatprep.subr.bf16.mxu0 0
        %712 = vmatpush1.bf16.msra.mxu0 0
        %713 = vmatprep.subr.bf16.mxu0 0
        %714 = vmatpush1.bf16.msra.mxu0 0
        %715 = vmatprep.subr.bf16.mxu0 0
        %716 = vmatpush1.bf16.msra.mxu0 0
        %717 = vmatprep.subr.bf16.mxu0 0
        %718 = vmatpush1.bf16.msra.mxu0 0
        %719 = vmatprep.subr.bf16.mxu0 0
        %720 = vmatpush1.bf16.msra.mxu0 0
        %721 = vmatprep.subr.bf16.mxu0 0
        %722 = vmatpush1.bf16.msra.mxu0 0
        %723 = vmatprep.subr.bf16.mxu0 0
        %724 = vmatpush1.bf16.msra.mxu0 0
        %725 = vmatprep.subr.bf16.mxu0 0
        %726 = vmatpush1.bf16.msra.mxu0 0
        %727 = vmatprep.subr.bf16.mxu0 0
        %728 = vmatpush1.bf16.msra.mxu0 0
        %729 = vmatprep.subr.bf16.mxu0 0
        %730 = vmatpush1.bf16.msra.mxu0 0
        %731 = vmatprep.subr.bf16.mxu0 0
        %732 = vmatpush1.bf16.msra.mxu0 0
        %733 = vmatprep.subr.bf16.mxu0 0
        %734 = vmatpush1.bf16.msra.mxu0 0
        %735 = vmatprep.subr.bf16.mxu0 0
        %736 = vmatpush1.bf16.msra.mxu0 0
        %737 = vmatprep.subr.bf16.mxu0 0
        %738 = vmatpush1.bf16.msra.mxu0 0
        %739 = vmatprep.subr.bf16.mxu0 0
        %740 = vmatpush1.bf16.msra.mxu0 0
        %741 = vmatprep.mubr.bf16.mxu0 0
        %742 = vmatmul.mubr.bf16.gmra.mrb[0].mxu0 %v707
        %v743 = vpop.f32.mrb[0].mxu0
        %v744 = vadd.f32 0.0, %v743
        %v745 = vpop.f32.mrb[0].mxu0
        %v746 = vpop.f32.mrb[0].mxu0
        %v747 = vadd.f32 0.0, %v746
        %v748 = vpop.f32.mrb[0].mxu0
        %749 = vdwg.mxu0
        %v752 = vunpack.c.l.b16 %v184
        %v753 = vunpack.c.l.b16 %v185
        %v754 = vpack.c.b16 %v753, %v752
        %v756 = vsel %vm254, %v754, 0
        %758 = vmatprep.subr.bf16.mxu0 0
        %759 = vmatpush1.bf16.msra.mxu0 %v500
        %760 = vmatprep.subr.bf16.mxu0 0
        %761 = vmatpush1.bf16.msra.mxu0 0
        %762 = vmatprep.subr.bf16.mxu0 0
        %763 = vmatpush1.bf16.msra.mxu0 0
        %764 = vmatprep.subr.bf16.mxu0 0
        %765 = vmatpush1.bf16.msra.mxu0 0
        %766 = vmatprep.subr.bf16.mxu0 0
        %767 = vmatpush1.bf16.msra.mxu0 0
        %768 = vmatprep.subr.bf16.mxu0 0
        %769 = vmatpush1.bf16.msra.mxu0 0
        %770 = vmatprep.subr.bf16.mxu0 0
        %771 = vmatpush1.bf16.msra.mxu0 0
        %772 = vmatprep.subr.bf16.mxu0 0
        %773 = vmatpush1.bf16.msra.mxu0 0
        %774 = vmatprep.subr.bf16.mxu0 0
        %775 = vmatpush1.bf16.msra.mxu0 0
        %776 = vmatprep.subr.bf16.mxu0 0
        %777 = vmatpush1.bf16.msra.mxu0 0
        %778 = vmatprep.subr.bf16.mxu0 0
        %779 = vmatpush1.bf16.msra.mxu0 0
        %780 = vmatprep.subr.bf16.mxu0 0
        %781 = vmatpush1.bf16.msra.mxu0 0
        %782 = vmatprep.subr.bf16.mxu0 0
        %783 = vmatpush1.bf16.msra.mxu0 0
        %784 = vmatprep.subr.bf16.mxu0 0
        %785 = vmatpush1.bf16.msra.mxu0 0
        %786 = vmatprep.subr.bf16.mxu0 0
        %787 = vmatpush1.bf16.msra.mxu0 0
        %788 = vmatprep.subr.bf16.mxu0 0
        %789 = vmatpush1.bf16.msra.mxu0 0
        %790 = vmatprep.mubr.bf16.mxu0 0
        %791 = vmatmul.mubr.bf16.gmra.mrb[0].mxu0 %v756
        %v792 = vpop.f32.mrb[0].mxu0
        %v793 = vadd.f32 0.0, %v792
        %v794 = vpop.f32.mrb[0].mxu0
        %v795 = vpop.f32.mrb[0].mxu0
        %v796 = vadd.f32 0.0, %v795
        %v797 = vpop.f32.mrb[0].mxu0
        %798 = vdwg.mxu0
        %v801 = vunpack.c.l.b16 %v186
        %v802 = vunpack.c.l.b16 %v187
        %v803 = vpack.c.b16 %v802, %v801
        %v805 = vsel %vm254, %v803, 0
        %807 = vmatprep.subr.bf16.mxu0 0
        %808 = vmatpush1.bf16.msra.mxu0 %v501
        %809 = vmatprep.subr.bf16.mxu0 0
        %810 = vmatpush1.bf16.msra.mxu0 0
        %811 = vmatprep.subr.bf16.mxu0 0
        %812 = vmatpush1.bf16.msra.mxu0 0
        %813 = vmatprep.subr.bf16.mxu0 0
        %814 = vmatpush1.bf16.msra.mxu0 0
        %815 = vmatprep.subr.bf16.mxu0 0
        %816 = vmatpush1.bf16.msra.mxu0 0
        %817 = vmatprep.subr.bf16.mxu0 0
        %818 = vmatpush1.bf16.msra.mxu0 0
        %819 = vmatprep.subr.bf16.mxu0 0
        %820 = vmatpush1.bf16.msra.mxu0 0
        %821 = vmatprep.subr.bf16.mxu0 0
        %822 = vmatpush1.bf16.msra.mxu0 0
        %823 = vmatprep.subr.bf16.mxu0 0
        %824 = vmatpush1.bf16.msra.mxu0 0
        %825 = vmatprep.subr.bf16.mxu0 0
        %826 = vmatpush1.bf16.msra.mxu0 0
        %827 = vmatprep.subr.bf16.mxu0 0
        %828 = vmatpush1.bf16.msra.mxu0 0
        %829 = vmatprep.subr.bf16.mxu0 0
        %830 = vmatpush1.bf16.msra.mxu0 0
        %831 = vmatprep.subr.bf16.mxu0 0
        %832 = vmatpush1.bf16.msra.mxu0 0
        %833 = vmatprep.subr.bf16.mxu0 0
        %834 = vmatpush1.bf16.msra.mxu0 0
        %835 = vmatprep.subr.bf16.mxu0 0
        %836 = vmatpush1.bf16.msra.mxu0 0
        %837 = vmatprep.subr.bf16.mxu0 0
        %838 = vmatpush1.bf16.msra.mxu0 0
        %839 = vmatprep.mubr.bf16.mxu0 0
        %840 = vmatmul.mubr.bf16.gmra.mrb[0].mxu0 %v805
        %v841 = vpop.f32.mrb[0].mxu0
        %v842 = vadd.f32 0.0, %v841
        %v843 = vpop.f32.mrb[0].mxu0
        %v844 = vpop.f32.mrb[0].mxu0
        %v845 = vadd.f32 0.0, %v844
        %v846 = vpop.f32.mrb[0].mxu0
        %847 = vdwg.mxu0
        %v850 = vunpack.c.l.b16 %v188
        %v851 = vunpack.c.l.b16 %v189
        %v852 = vpack.c.b16 %v851, %v850
        %v854 = vsel %vm254, %v852, 0
        %856 = vmatprep.subr.bf16.mxu0 0
        %857 = vmatpush1.bf16.msra.mxu0 %v502
        %858 = vmatprep.subr.bf16.mxu0 0
        %859 = vmatpush1.bf16.msra.mxu0 0
        %860 = vmatprep.subr.bf16.mxu0 0
        %861 = vmatpush1.bf16.msra.mxu0 0
        %862 = vmatprep.subr.bf16.mxu0 0
        %863 = vmatpush1.bf16.msra.mxu0 0
        %864 = vmatprep.subr.bf16.mxu0 0
        %865 = vmatpush1.bf16.msra.mxu0 0
        %866 = vmatprep.subr.bf16.mxu0 0
        %867 = vmatpush1.bf16.msra.mxu0 0
        %868 = vmatprep.subr.bf16.mxu0 0
        %869 = vmatpush1.bf16.msra.mxu0 0
        %870 = vmatprep.subr.bf16.mxu0 0
        %871 = vmatpush1.bf16.msra.mxu0 0
        %872 = vmatprep.subr.bf16.mxu0 0
        %873 = vmatpush1.bf16.msra.mxu0 0
        %874 = vmatprep.subr.bf16.mxu0 0
        %875 = vmatpush1.bf16.msra.mxu0 0
        %876 = vmatprep.subr.bf16.mxu0 0
        %877 = vmatpush1.bf16.msra.mxu0 0
        %878 = vmatprep.subr.bf16.mxu0 0
        %879 = vmatpush1.bf16.msra.mxu0 0
        %880 = vmatprep.subr.bf16.mxu0 0
        %881 = vmatpush1.bf16.msra.mxu0 0
        %882 = vmatprep.subr.bf16.mxu0 0
        %883 = vmatpush1.bf16.msra.mxu0 0
        %884 = vmatprep.subr.bf16.mxu0 0
        %885 = vmatpush1.bf16.msra.mxu0 0
        %886 = vmatprep.subr.bf16.mxu0 0
        %887 = vmatpush1.bf16.msra.mxu0 0
        %888 = vmatprep.mubr.bf16.mxu0 0
        %889 = vmatmul.mubr.bf16.gmra.mrb[0].mxu0 %v854
        %v890 = vpop.f32.mrb[0].mxu0
        %v891 = vadd.f32 0.0, %v890
        %v892 = vpop.f32.mrb[0].mxu0
        %v893 = vpop.f32.mrb[0].mxu0
        %v894 = vadd.f32 0.0, %v893
        %v895 = vpop.f32.mrb[0].mxu0
        %896 = vdwg.mxu0
        %v899 = vunpack.c.l.b16 %v190
        %v900 = vunpack.c.l.b16 %v191
        %v901 = vpack.c.b16 %v900, %v899
        %v903 = vsel %vm254, %v901, 0
        %905 = vmatprep.subr.bf16.mxu0 0
        %906 = vmatpush1.bf16.msra.mxu0 %v503
        %907 = vmatprep.subr.bf16.mxu0 0
        %908 = vmatpush1.bf16.msra.mxu0 0
        %909 = vmatprep.subr.bf16.mxu0 0
        %910 = vmatpush1.bf16.msra.mxu0 0
        %911 = vmatprep.subr.bf16.mxu0 0
        %912 = vmatpush1.bf16.msra.mxu0 0
        %913 = vmatprep.subr.bf16.mxu0 0
        %914 = vmatpush1.bf16.msra.mxu0 0
        %915 = vmatprep.subr.bf16.mxu0 0
        %916 = vmatpush1.bf16.msra.mxu0 0
        %917 = vmatprep.subr.bf16.mxu0 0
        %918 = vmatpush1.bf16.msra.mxu0 0
        %919 = vmatprep.subr.bf16.mxu0 0
        %920 = vmatpush1.bf16.msra.mxu0 0
        %921 = vmatprep.subr.bf16.mxu0 0
        %922 = vmatpush1.bf16.msra.mxu0 0
        %923 = vmatprep.subr.bf16.mxu0 0
        %924 = vmatpush1.bf16.msra.mxu0 0
        %925 = vmatprep.subr.bf16.mxu0 0
        %926 = vmatpush1.bf16.msra.mxu0 0
        %927 = vmatprep.subr.bf16.mxu0 0
        %928 = vmatpush1.bf16.msra.mxu0 0
        %929 = vmatprep.subr.bf16.mxu0 0
        %930 = vmatpush1.bf16.msra.mxu0 0
        %931 = vmatprep.subr.bf16.mxu0 0
        %932 = vmatpush1.bf16.msra.mxu0 0
        %933 = vmatprep.subr.bf16.mxu0 0
        %934 = vmatpush1.bf16.msra.mxu0 0
        %935 = vmatprep.subr.bf16.mxu0 0
        %936 = vmatpush1.bf16.msra.mxu0 0
        %937 = vmatprep.mubr.bf16.mxu0 0
        %938 = vmatmul.mubr.bf16.gmra.mrb[0].mxu0 %v903
        %v939 = vpop.f32.mrb[0].mxu0
        %v940 = vadd.f32 0.0, %v939
        %v941 = vpop.f32.mrb[0].mxu0
        %v942 = vpop.f32.mrb[0].mxu0
        %v943 = vadd.f32 0.0, %v942
        %v944 = vpop.f32.mrb[0].mxu0
        %945 = vdwg.mxu0
        %v948 = vunpack.c.l.b16 %v192
        %v949 = vunpack.c.l.b16 %v193
        %v950 = vpack.c.b16 %v949, %v948
        %v952 = vsel %vm254, %v950, 0
        %954 = vmatprep.subr.bf16.mxu0 0
        %955 = vmatpush1.bf16.msra.mxu0 %v504
        %956 = vmatprep.subr.bf16.mxu0 0
        %957 = vmatpush1.bf16.msra.mxu0 0
        %958 = vmatprep.subr.bf16.mxu0 0
        %959 = vmatpush1.bf16.msra.mxu0 0
        %960 = vmatprep.subr.bf16.mxu0 0
        %961 = vmatpush1.bf16.msra.mxu0 0
        %962 = vmatprep.subr.bf16.mxu0 0
        %963 = vmatpush1.bf16.msra.mxu0 0
        %964 = vmatprep.subr.bf16.mxu0 0
        %965 = vmatpush1.bf16.msra.mxu0 0
        %966 = vmatprep.subr.bf16.mxu0 0
        %967 = vmatpush1.bf16.msra.mxu0 0
        %968 = vmatprep.subr.bf16.mxu0 0
        %969 = vmatpush1.bf16.msra.mxu0 0
        %970 = vmatprep.subr.bf16.mxu0 0
        %971 = vmatpush1.bf16.msra.mxu0 0
        %972 = vmatprep.subr.bf16.mxu0 0
        %973 = vmatpush1.bf16.msra.mxu0 0
        %974 = vmatprep.subr.bf16.mxu0 0
        %975 = vmatpush1.bf16.msra.mxu0 0
        %976 = vmatprep.subr.bf16.mxu0 0
        %977 = vmatpush1.bf16.msra.mxu0 0
        %978 = vmatprep.subr.bf16.mxu0 0
        %979 = vmatpush1.bf16.msra.mxu0 0
        %980 = vmatprep.subr.bf16.mxu0 0
        %981 = vmatpush1.bf16.msra.mxu0 0
        %982 = vmatprep.subr.bf16.mxu0 0
        %983 = vmatpush1.bf16.msra.mxu0 0
        %984 = vmatprep.subr.bf16.mxu0 0
        %985 = vmatpush1.bf16.msra.mxu0 0
        %986 = vmatprep.mubr.bf16.mxu0 0
        %987 = vmatmul.mubr.bf16.gmra.mrb[0].mxu0 %v952
        %v988 = vpop.f32.mrb[0].mxu0
        %v989 = vadd.f32 0.0, %v988
        %v990 = vpop.f32.mrb[0].mxu0
        %v991 = vpop.f32.mrb[0].mxu0
        %v992 = vadd.f32 0.0, %v991
        %v993 = vpop.f32.mrb[0].mxu0
        %994 = vdwg.mxu0
        %vm995 = vcmp.gt.f32.partialorder %v548, 0.0
        %vm996 = vcmp.gt.f32.partialorder %v551, 0.0
        %vm997 = vcmp.gt.f32.partialorder %v597, 0.0
        %vm998 = vcmp.gt.f32.partialorder %v600, 0.0
        %vm999 = vcmp.gt.f32.partialorder %v646, 0.0
        %vm1000 = vcmp.gt.f32.partialorder %v649, 0.0
        %vm1001 = vcmp.gt.f32.partialorder %v695, 0.0
        %vm1002 = vcmp.gt.f32.partialorder %v698, 0.0
        %vm1003 = vcmp.gt.f32.partialorder %v744, 0.0
        %vm1004 = vcmp.gt.f32.partialorder %v747, 0.0
        %vm1005 = vcmp.gt.f32.partialorder %v793, 0.0
        %vm1006 = vcmp.gt.f32.partialorder %v796, 0.0
        %vm1007 = vcmp.gt.f32.partialorder %v842, 0.0
        %vm1008 = vcmp.gt.f32.partialorder %v845, 0.0
        %vm1009 = vcmp.gt.f32.partialorder %v891, 0.0
        %vm1010 = vcmp.gt.f32.partialorder %v894, 0.0
        %vm1011 = vcmp.gt.f32.partialorder %v940, 0.0
        %vm1012 = vcmp.gt.f32.partialorder %v943, 0.0
        %vm1013 = vcmp.gt.f32.partialorder %v989, 0.0
        %vm1014 = vcmp.gt.f32.partialorder %v992, 0.0
        %v1015 = vrsqrt.pop %v548
        %v1016 = vrsqrt.pop %v551
        %v1017 = vrsqrt.pop %v597
        %v1018 = vrsqrt.pop %v600
        %v1019 = vrsqrt.pop %v646
        %v1020 = vrsqrt.pop %v649
        %v1021 = vrsqrt.pop %v695
        %v1022 = vrsqrt.pop %v698
        %v1023 = vrsqrt.pop %v744
        %v1024 = vrsqrt.pop %v747
        %v1025 = vrsqrt.pop %v793
        %v1026 = vrsqrt.pop %v796
        %v1027 = vrsqrt.pop %v842
        %v1028 = vrsqrt.pop %v845
        %v1029 = vrsqrt.pop %v891
        %v1030 = vrsqrt.pop %v894
        %v1031 = vrsqrt.pop %v940
        %v1032 = vrsqrt.pop %v943
        %v1033 = vrsqrt.pop %v989
        %v1034 = vrsqrt.pop %v992
        %v1035 = vsel %vm995, %v1015, 0.0
        %v1036 = vsel %vm996, %v1016, 0.0
        %v1037 = vsel %vm997, %v1017, 0.0
        %v1038 = vsel %vm998, %v1018, 0.0
        %v1039 = vsel %vm999, %v1019, 0.0
        %v1040 = vsel %vm1000, %v1020, 0.0
        %v1041 = vsel %vm1001, %v1021, 0.0
        %v1042 = vsel %vm1002, %v1022, 0.0
        %v1043 = vsel %vm1003, %v1023, 0.0
        %v1044 = vsel %vm1004, %v1024, 0.0
        %v1045 = vsel %vm1005, %v1025, 0.0
        %v1046 = vsel %vm1006, %v1026, 0.0
        %v1047 = vsel %vm1007, %v1027, 0.0
        %v1048 = vsel %vm1008, %v1028, 0.0
        %v1049 = vsel %vm1009, %v1029, 0.0
        %v1050 = vsel %vm1010, %v1030, 0.0
        %v1051 = vsel %vm1011, %v1031, 0.0
        %v1052 = vsel %vm1012, %v1032, 0.0
        %v1053 = vsel %vm1013, %v1033, 0.0
        %v1054 = vsel %vm1014, %v1034, 0.0
        %v1055 = vmul.f32 %v475, %v1035
        %v1056 = vmul.f32 %v476, %v1036
        %v1057 = vmul.f32 %v477, %v1037
        %v1058 = vmul.f32 %v478, %v1038
        %v1059 = vmul.f32 %v479, %v1039
        %v1060 = vmul.f32 %v480, %v1040
        %v1061 = vmul.f32 %v481, %v1041
        %v1062 = vmul.f32 %v482, %v1042
        %v1063 = vmul.f32 %v483, %v1043
        %v1064 = vmul.f32 %v484, %v1044
        %v1065 = vmul.f32 %v485, %v1045
        %v1066 = vmul.f32 %v486, %v1046
        %v1067 = vmul.f32 %v487, %v1047
        %v1068 = vmul.f32 %v488, %v1048
        %v1069 = vmul.f32 %v489, %v1049
        %v1070 = vmul.f32 %v490, %v1050
        %v1071 = vmul.f32 %v491, %v1051
        %v1072 = vmul.f32 %v492, %v1052
        %v1073 = vmul.f32 %v493, %v1053
        %v1074 = vmul.f32 %v494, %v1054
        %1076 = vset.pattern.permute.xlu0 0
        %1077 = vperm.xlu0 %1076, %v1055
        %v1078 = vpop.permute.xlu0 %1077
        %1081 = vset.pattern.permute.xlu0 0
        %1082 = vperm.xlu0 %1081, %v1056
        %v1083 = vpop.permute.xlu0 %1082
        %1086 = vset.pattern.permute.xlu0 0
        %1087 = vperm.xlu0 %1086, %v1057
        %v1088 = vpop.permute.xlu0 %1087
        %1091 = vset.pattern.permute.xlu0 0
        %1092 = vperm.xlu0 %1091, %v1058
        %v1093 = vpop.permute.xlu0 %1092
        %1096 = vset.pattern.permute.xlu0 0
        %1097 = vperm.xlu0 %1096, %v1059
        %v1098 = vpop.permute.xlu0 %1097
        %1101 = vset.pattern.permute.xlu0 0
        %1102 = vperm.xlu0 %1101, %v1060
        %v1103 = vpop.permute.xlu0 %1102
        %1106 = vset.pattern.permute.xlu0 0
        %1107 = vperm.xlu0 %1106, %v1061
        %v1108 = vpop.permute.xlu0 %1107
        %1111 = vset.pattern.permute.xlu0 0
        %1112 = vperm.xlu0 %1111, %v1062
        %v1113 = vpop.permute.xlu0 %1112
        %1116 = vset.pattern.permute.xlu0 0
        %1117 = vperm.xlu0 %1116, %v1063
        %v1118 = vpop.permute.xlu0 %1117
        %1121 = vset.pattern.permute.xlu0 0
        %1122 = vperm.xlu0 %1121, %v1064
        %v1123 = vpop.permute.xlu0 %1122
        %1126 = vset.pattern.permute.xlu0 0
        %1127 = vperm.xlu0 %1126, %v1065
        %v1128 = vpop.permute.xlu0 %1127
        %1131 = vset.pattern.permute.xlu0 0
        %1132 = vperm.xlu0 %1131, %v1066
        %v1133 = vpop.permute.xlu0 %1132
        %1136 = vset.pattern.permute.xlu0 0
        %1137 = vperm.xlu0 %1136, %v1067
        %v1138 = vpop.permute.xlu0 %1137
        %1141 = vset.pattern.permute.xlu0 0
        %1142 = vperm.xlu0 %1141, %v1068
        %v1143 = vpop.permute.xlu0 %1142
        %1146 = vset.pattern.permute.xlu0 0
        %1147 = vperm.xlu0 %1146, %v1069
        %v1148 = vpop.permute.xlu0 %1147
        %1151 = vset.pattern.permute.xlu0 0
        %1152 = vperm.xlu0 %1151, %v1070
        %v1153 = vpop.permute.xlu0 %1152
        %1156 = vset.pattern.permute.xlu0 0
        %1157 = vperm.xlu0 %1156, %v1071
        %v1158 = vpop.permute.xlu0 %1157
        %1161 = vset.pattern.permute.xlu0 0
        %1162 = vperm.xlu0 %1161, %v1072
        %v1163 = vpop.permute.xlu0 %1162
        %1166 = vset.pattern.permute.xlu0 0
        %1167 = vperm.xlu0 %1166, %v1073
        %v1168 = vpop.permute.xlu0 %1167
        %1171 = vset.pattern.permute.xlu0 0
        %1172 = vperm.xlu0 %1171, %v1074
        %v1173 = vpop.permute.xlu0 %1172
        %v1175 = vmul.f32 %v1078, %v214
        %v1176 = vmul.f32 %v1083, %v215
        %v1177 = vmul.f32 %v1088, %v216
        %v1178 = vmul.f32 %v1093, %v217
        %v1179 = vmul.f32 %v1098, %v218
        %v1180 = vmul.f32 %v1103, %v219
        %v1181 = vmul.f32 %v1108, %v220
        %v1182 = vmul.f32 %v1113, %v221
        %v1183 = vmul.f32 %v1118, %v222
        %v1184 = vmul.f32 %v1123, %v223
        %v1185 = vmul.f32 %v1128, %v224
        %v1186 = vmul.f32 %v1133, %v225
        %v1187 = vmul.f32 %v1138, %v226
        %v1188 = vmul.f32 %v1143, %v227
        %v1189 = vmul.f32 %v1148, %v228
        %v1190 = vmul.f32 %v1153, %v229
        %v1191 = vmul.f32 %v1158, %v230
        %v1192 = vmul.f32 %v1163, %v231
        %v1193 = vmul.f32 %v1168, %v232
        %v1194 = vmul.f32 %v1173, %v233
        %v1195 = vpack.c.bf16 %v1176, %v1175
        %v1196 = vpack.c.bf16 %v1178, %v1177
        %v1197 = vpack.c.bf16 %v1180, %v1179
        %v1198 = vpack.c.bf16 %v1182, %v1181
        %v1199 = vpack.c.bf16 %v1184, %v1183
        %v1200 = vpack.c.bf16 %v1186, %v1185
        %v1201 = vpack.c.bf16 %v1188, %v1187
        %v1202 = vpack.c.bf16 %v1190, %v1189
        %v1203 = vpack.c.bf16 %v1192, %v1191
        %v1204 = vpack.c.bf16 %v1194, %v1193
        %1205 = vmatprep.subr.bf16.mxu0 0
        %1206 = vmatpush1.bf16.msra.mxu0 %v1195
        %1207 = vmatprep.subr.bf16.mxu0 0
        %1208 = vmatpush1.bf16.msra.mxu0 0
        %1209 = vmatprep.subr.bf16.mxu0 0
        %1210 = vmatpush1.bf16.msra.mxu0 0
        %1211 = vmatprep.subr.bf16.mxu0 0
        %1212 = vmatpush1.bf16.msra.mxu0 0
        %1213 = vmatprep.subr.bf16.mxu0 0
        %1214 = vmatpush1.bf16.msra.mxu0 0
        %1215 = vmatprep.subr.bf16.mxu0 0
        %1216 = vmatpush1.bf16.msra.mxu0 0
        %1217 = vmatprep.subr.bf16.mxu0 0
        %1218 = vmatpush1.bf16.msra.mxu0 0
        %1219 = vmatprep.subr.bf16.mxu0 0
        %1220 = vmatpush1.bf16.msra.mxu0 0
        %1221 = vmatprep.subr.bf16.mxu0 0
        %1222 = vmatpush1.bf16.msra.mxu0 0
        %1223 = vmatprep.subr.bf16.mxu0 0
        %1224 = vmatpush1.bf16.msra.mxu0 0
        %1225 = vmatprep.subr.bf16.mxu0 0
        %1226 = vmatpush1.bf16.msra.mxu0 0
        %1227 = vmatprep.subr.bf16.mxu0 0
        %1228 = vmatpush1.bf16.msra.mxu0 0
        %1229 = vmatprep.subr.bf16.mxu0 0
        %1230 = vmatpush1.bf16.msra.mxu0 0
        %1231 = vmatprep.subr.bf16.mxu0 0
        %1232 = vmatpush1.bf16.msra.mxu0 0
        %1233 = vmatprep.subr.bf16.mxu0 0
        %1234 = vmatpush1.bf16.msra.mxu0 0
        %1235 = vmatprep.subr.bf16.mxu0 0
        %1236 = vmatpush1.bf16.msra.mxu0 0
        %1237 = vmatprep.mubr.bf16.mxu0 0
        %1238 = vmatmul.mubr.bf16.gmra.mrb[0].mxu0 %v511
        %v1239 = vpop.f32.mrb[0].mxu0
        %v1240 = vadd.f32 0.0, %v1239
        %v1241 = vpop.f32.mrb[0].mxu0
        %v1242 = vpop.f32.mrb[0].mxu0
        %v1243 = vadd.f32 0.0, %v1242
        %v1244 = vpop.f32.mrb[0].mxu0
        %1245 = vdwg.mxu0
        %1246 = vmatprep.subr.bf16.mxu0 0
        %1247 = vmatpush1.bf16.msra.mxu0 %v1196
        %1248 = vmatprep.subr.bf16.mxu0 0
        %1249 = vmatpush1.bf16.msra.mxu0 0
        %1250 = vmatprep.subr.bf16.mxu0 0
        %1251 = vmatpush1.bf16.msra.mxu0 0
        %1252 = vmatprep.subr.bf16.mxu0 0
        %1253 = vmatpush1.bf16.msra.mxu0 0
        %1254 = vmatprep.subr.bf16.mxu0 0
        %1255 = vmatpush1.bf16.msra.mxu0 0
        %1256 = vmatprep.subr.bf16.mxu0 0
        %1257 = vmatpush1.bf16.msra.mxu0 0
        %1258 = vmatprep.subr.bf16.mxu0 0
        %1259 = vmatpush1.bf16.msra.mxu0 0
        %1260 = vmatprep.subr.bf16.mxu0 0
        %1261 = vmatpush1.bf16.msra.mxu0 0
        %1262 = vmatprep.subr.bf16.mxu0 0
        %1263 = vmatpush1.bf16.msra.mxu0 0
        %1264 = vmatprep.subr.bf16.mxu0 0
        %1265 = vmatpush1.bf16.msra.mxu0 0
        %1266 = vmatprep.subr.bf16.mxu0 0
        %1267 = vmatpush1.bf16.msra.mxu0 0
        %1268 = vmatprep.subr.bf16.mxu0 0
        %1269 = vmatpush1.bf16.msra.mxu0 0
        %1270 = vmatprep.subr.bf16.mxu0 0
        %1271 = vmatpush1.bf16.msra.mxu0 0
        %1272 = vmatprep.subr.bf16.mxu0 0
        %1273 = vmatpush1.bf16.msra.mxu0 0
        %1274 = vmatprep.subr.bf16.mxu0 0
        %1275 = vmatpush1.bf16.msra.mxu0 0
        %1276 = vmatprep.subr.bf16.mxu0 0
        %1277 = vmatpush1.bf16.msra.mxu0 0
        %1278 = vmatprep.mubr.bf16.mxu0 0
        %1279 = vmatmul.mubr.bf16.gmra.mrb[0].mxu0 %v560
        %v1280 = vpop.f32.mrb[0].mxu0
        %v1281 = vadd.f32 0.0, %v1280
        %v1282 = vpop.f32.mrb[0].mxu0
        %v1283 = vpop.f32.mrb[0].mxu0
        %v1284 = vadd.f32 0.0, %v1283
        %v1285 = vpop.f32.mrb[0].mxu0
        %1286 = vdwg.mxu0
        %1287 = vmatprep.subr.bf16.mxu0 0
        %1288 = vmatpush1.bf16.msra.mxu0 %v1197
        %1289 = vmatprep.subr.bf16.mxu0 0
        %1290 = vmatpush1.bf16.msra.mxu0 0
        %1291 = vmatprep.subr.bf16.mxu0 0
        %1292 = vmatpush1.bf16.msra.mxu0 0
        %1293 = vmatprep.subr.bf16.mxu0 0
        %1294 = vmatpush1.bf16.msra.mxu0 0
        %1295 = vmatprep.subr.bf16.mxu0 0
        %1296 = vmatpush1.bf16.msra.mxu0 0
        %1297 = vmatprep.subr.bf16.mxu0 0
        %1298 = vmatpush1.bf16.msra.mxu0 0
        %1299 = vmatprep.subr.bf16.mxu0 0
        %1300 = vmatpush1.bf16.msra.mxu0 0
        %1301 = vmatprep.subr.bf16.mxu0 0
        %1302 = vmatpush1.bf16.msra.mxu0 0
        %1303 = vmatprep.subr.bf16.mxu0 0
        %1304 = vmatpush1.bf16.msra.mxu0 0
        %1305 = vmatprep.subr.bf16.mxu0 0
        %1306 = vmatpush1.bf16.msra.mxu0 0
        %1307 = vmatprep.subr.bf16.mxu0 0
        %1308 = vmatpush1.bf16.msra.mxu0 0
        %1309 = vmatprep.subr.bf16.mxu0 0
        %1310 = vmatpush1.bf16.msra.mxu0 0
        %1311 = vmatprep.subr.bf16.mxu0 0
        %1312 = vmatpush1.bf16.msra.mxu0 0
        %1313 = vmatprep.subr.bf16.mxu0 0
        %1314 = vmatpush1.bf16.msra.mxu0 0
        %1315 = vmatprep.subr.bf16.mxu0 0
        %1316 = vmatpush1.bf16.msra.mxu0 0
        %1317 = vmatprep.subr.bf16.mxu0 0
        %1318 = vmatpush1.bf16.msra.mxu0 0
        %1319 = vmatprep.mubr.bf16.mxu0 0
        %1320 = vmatmul.mubr.bf16.gmra.mrb[0].mxu0 %v609
        %v1321 = vpop.f32.mrb[0].mxu0
        %v1322 = vadd.f32 0.0, %v1321
        %v1323 = vpop.f32.mrb[0].mxu0
        %v1324 = vpop.f32.mrb[0].mxu0
        %v1325 = vadd.f32 0.0, %v1324
        %v1326 = vpop.f32.mrb[0].mxu0
        %1327 = vdwg.mxu0
        %1328 = vmatprep.subr.bf16.mxu0 0
        %1329 = vmatpush1.bf16.msra.mxu0 %v1198
        %1330 = vmatprep.subr.bf16.mxu0 0
        %1331 = vmatpush1.bf16.msra.mxu0 0
        %1332 = vmatprep.subr.bf16.mxu0 0
        %1333 = vmatpush1.bf16.msra.mxu0 0
        %1334 = vmatprep.subr.bf16.mxu0 0
        %1335 = vmatpush1.bf16.msra.mxu0 0
        %1336 = vmatprep.subr.bf16.mxu0 0
        %1337 = vmatpush1.bf16.msra.mxu0 0
        %1338 = vmatprep.subr.bf16.mxu0 0
        %1339 = vmatpush1.bf16.msra.mxu0 0
        %1340 = vmatprep.subr.bf16.mxu0 0
        %1341 = vmatpush1.bf16.msra.mxu0 0
        %1342 = vmatprep.subr.bf16.mxu0 0
        %1343 = vmatpush1.bf16.msra.mxu0 0
        %1344 = vmatprep.subr.bf16.mxu0 0
        %1345 = vmatpush1.bf16.msra.mxu0 0
        %1346 = vmatprep.subr.bf16.mxu0 0
        %1347 = vmatpush1.bf16.msra.mxu0 0
        %1348 = vmatprep.subr.bf16.mxu0 0
        %1349 = vmatpush1.bf16.msra.mxu0 0
        %1350 = vmatprep.subr.bf16.mxu0 0
        %1351 = vmatpush1.bf16.msra.mxu0 0
        %1352 = vmatprep.subr.bf16.mxu0 0
        %1353 = vmatpush1.bf16.msra.mxu0 0
        %1354 = vmatprep.subr.bf16.mxu0 0
        %1355 = vmatpush1.bf16.msra.mxu0 0
        %1356 = vmatprep.subr.bf16.mxu0 0
        %1357 = vmatpush1.bf16.msra.mxu0 0
        %1358 = vmatprep.subr.bf16.mxu0 0
        %1359 = vmatpush1.bf16.msra.mxu0 0
        %1360 = vmatprep.mubr.bf16.mxu0 0
        %1361 = vmatmul.mubr.bf16.gmra.mrb[0].mxu0 %v658
        %v1362 = vpop.f32.mrb[0].mxu0
        %v1363 = vadd.f32 0.0, %v1362
        %v1364 = vpop.f32.mrb[0].mxu0
        %v1365 = vpop.f32.mrb[0].mxu0
        %v1366 = vadd.f32 0.0, %v1365
        %v1367 = vpop.f32.mrb[0].mxu0
        %1368 = vdwg.mxu0
        %1369 = vmatprep.subr.bf16.mxu0 0
        %1370 = vmatpush1.bf16.msra.mxu0 %v1199
        %1371 = vmatprep.subr.bf16.mxu0 0
        %1372 = vmatpush1.bf16.msra.mxu0 0
        %1373 = vmatprep.subr.bf16.mxu0 0
        %1374 = vmatpush1.bf16.msra.mxu0 0
        %1375 = vmatprep.subr.bf16.mxu0 0
        %1376 = vmatpush1.bf16.msra.mxu0 0
        %1377 = vmatprep.subr.bf16.mxu0 0
        %1378 = vmatpush1.bf16.msra.mxu0 0
        %1379 = vmatprep.subr.bf16.mxu0 0
        %1380 = vmatpush1.bf16.msra.mxu0 0
        %1381 = vmatprep.subr.bf16.mxu0 0
        %1382 = vmatpush1.bf16.msra.mxu0 0
        %1383 = vmatprep.subr.bf16.mxu0 0
        %1384 = vmatpush1.bf16.msra.mxu0 0
        %1385 = vmatprep.subr.bf16.mxu0 0
        %1386 = vmatpush1.bf16.msra.mxu0 0
        %1387 = vmatprep.subr.bf16.mxu0 0
        %1388 = vmatpush1.bf16.msra.mxu0 0
        %1389 = vmatprep.subr.bf16.mxu0 0
        %1390 = vmatpush1.bf16.msra.mxu0 0
        %1391 = vmatprep.subr.bf16.mxu0 0
        %1392 = vmatpush1.bf16.msra.mxu0 0
        %1393 = vmatprep.subr.bf16.mxu0 0
        %1394 = vmatpush1.bf16.msra.mxu0 0
        %1395 = vmatprep.subr.bf16.mxu0 0
        %1396 = vmatpush1.bf16.msra.mxu0 0
        %1397 = vmatprep.subr.bf16.mxu0 0
        %1398 = vmatpush1.bf16.msra.mxu0 0
        %1399 = vmatprep.subr.bf16.mxu0 0
        %1400 = vmatpush1.bf16.msra.mxu0 0
        %1401 = vmatprep.mubr.bf16.mxu0 0
        %1402 = vmatmul.mubr.bf16.gmra.mrb[0].mxu0 %v707
        %v1403 = vpop.f32.mrb[0].mxu0
        %v1404 = vadd.f32 0.0, %v1403
        %v1405 = vpop.f32.mrb[0].mxu0
        %v1406 = vpop.f32.mrb[0].mxu0
        %v1407 = vadd.f32 0.0, %v1406
        %v1408 = vpop.f32.mrb[0].mxu0
        %1409 = vdwg.mxu0
        %1410 = vmatprep.subr.bf16.mxu0 0
        %1411 = vmatpush1.bf16.msra.mxu0 %v1200
        %1412 = vmatprep.subr.bf16.mxu0 0
        %1413 = vmatpush1.bf16.msra.mxu0 0
        %1414 = vmatprep.subr.bf16.mxu0 0
        %1415 = vmatpush1.bf16.msra.mxu0 0
        %1416 = vmatprep.subr.bf16.mxu0 0
        %1417 = vmatpush1.bf16.msra.mxu0 0
        %1418 = vmatprep.subr.bf16.mxu0 0
        %1419 = vmatpush1.bf16.msra.mxu0 0
        %1420 = vmatprep.subr.bf16.mxu0 0
        %1421 = vmatpush1.bf16.msra.mxu0 0
        %1422 = vmatprep.subr.bf16.mxu0 0
        %1423 = vmatpush1.bf16.msra.mxu0 0
        %1424 = vmatprep.subr.bf16.mxu0 0
        %1425 = vmatpush1.bf16.msra.mxu0 0
        %1426 = vmatprep.subr.bf16.mxu0 0
        %1427 = vmatpush1.bf16.msra.mxu0 0
        %1428 = vmatprep.subr.bf16.mxu0 0
        %1429 = vmatpush1.bf16.msra.mxu0 0
        %1430 = vmatprep.subr.bf16.mxu0 0
        %1431 = vmatpush1.bf16.msra.mxu0 0
        %1432 = vmatprep.subr.bf16.mxu0 0
        %1433 = vmatpush1.bf16.msra.mxu0 0
        %1434 = vmatprep.subr.bf16.mxu0 0
        %1435 = vmatpush1.bf16.msra.mxu0 0
        %1436 = vmatprep.subr.bf16.mxu0 0
        %1437 = vmatpush1.bf16.msra.mxu0 0
        %1438 = vmatprep.subr.bf16.mxu0 0
        %1439 = vmatpush1.bf16.msra.mxu0 0
        %1440 = vmatprep.subr.bf16.mxu0 0
        %1441 = vmatpush1.bf16.msra.mxu0 0
        %1442 = vmatprep.mubr.bf16.mxu0 0
        %1443 = vmatmul.mubr.bf16.gmra.mrb[0].mxu0 %v756
        %v1444 = vpop.f32.mrb[0].mxu0
        %v1445 = vadd.f32 0.0, %v1444
        %v1446 = vpop.f32.mrb[0].mxu0
        %v1447 = vpop.f32.mrb[0].mxu0
        %v1448 = vadd.f32 0.0, %v1447
        %v1449 = vpop.f32.mrb[0].mxu0
        %1450 = vdwg.mxu0
        %1451 = vmatprep.subr.bf16.mxu0 0
        %1452 = vmatpush1.bf16.msra.mxu0 %v1201
        %1453 = vmatprep.subr.bf16.mxu0 0
        %1454 = vmatpush1.bf16.msra.mxu0 0
        %1455 = vmatprep.subr.bf16.mxu0 0
        %1456 = vmatpush1.bf16.msra.mxu0 0
        %1457 = vmatprep.subr.bf16.mxu0 0
        %1458 = vmatpush1.bf16.msra.mxu0 0
        %1459 = vmatprep.subr.bf16.mxu0 0
        %1460 = vmatpush1.bf16.msra.mxu0 0
        %1461 = vmatprep.subr.bf16.mxu0 0
        %1462 = vmatpush1.bf16.msra.mxu0 0
        %1463 = vmatprep.subr.bf16.mxu0 0
        %1464 = vmatpush1.bf16.msra.mxu0 0
        %1465 = vmatprep.subr.bf16.mxu0 0
        %1466 = vmatpush1.bf16.msra.mxu0 0
        %1467 = vmatprep.subr.bf16.mxu0 0
        %1468 = vmatpush1.bf16.msra.mxu0 0
        %1469 = vmatprep.subr.bf16.mxu0 0
        %1470 = vmatpush1.bf16.msra.mxu0 0
        %1471 = vmatprep.subr.bf16.mxu0 0
        %1472 = vmatpush1.bf16.msra.mxu0 0
        %1473 = vmatprep.subr.bf16.mxu0 0
        %1474 = vmatpush1.bf16.msra.mxu0 0
        %1475 = vmatprep.subr.bf16.mxu0 0
        %1476 = vmatpush1.bf16.msra.mxu0 0
        %1477 = vmatprep.subr.bf16.mxu0 0
        %1478 = vmatpush1.bf16.msra.mxu0 0
        %1479 = vmatprep.subr.bf16.mxu0 0
        %1480 = vmatpush1.bf16.msra.mxu0 0
        %1481 = vmatprep.subr.bf16.mxu0 0
        %1482 = vmatpush1.bf16.msra.mxu0 0
        %1483 = vmatprep.mubr.bf16.mxu0 0
        %1484 = vmatmul.mubr.bf16.gmra.mrb[0].mxu0 %v805
        %v1485 = vpop.f32.mrb[0].mxu0
        %v1486 = vadd.f32 0.0, %v1485
        %v1487 = vpop.f32.mrb[0].mxu0
        %v1488 = vpop.f32.mrb[0].mxu0
        %v1489 = vadd.f32 0.0, %v1488
        %v1490 = vpop.f32.mrb[0].mxu0
        %1491 = vdwg.mxu0
        %1492 = vmatprep.subr.bf16.mxu0 0
        %1493 = vmatpush1.bf16.msra.mxu0 %v1202
        %1494 = vmatprep.subr.bf16.mxu0 0
        %1495 = vmatpush1.bf16.msra.mxu0 0
        %1496 = vmatprep.subr.bf16.mxu0 0
        %1497 = vmatpush1.bf16.msra.mxu0 0
        %1498 = vmatprep.subr.bf16.mxu0 0
        %1499 = vmatpush1.bf16.msra.mxu0 0
        %1500 = vmatprep.subr.bf16.mxu0 0
        %1501 = vmatpush1.bf16.msra.mxu0 0
        %1502 = vmatprep.subr.bf16.mxu0 0
        %1503 = vmatpush1.bf16.msra.mxu0 0
        %1504 = vmatprep.subr.bf16.mxu0 0
        %1505 = vmatpush1.bf16.msra.mxu0 0
        %1506 = vmatprep.subr.bf16.mxu0 0
        %1507 = vmatpush1.bf16.msra.mxu0 0
        %1508 = vmatprep.subr.bf16.mxu0 0
        %1509 = vmatpush1.bf16.msra.mxu0 0
        %1510 = vmatprep.subr.bf16.mxu0 0
        %1511 = vmatpush1.bf16.msra.mxu0 0
        %1512 = vmatprep.subr.bf16.mxu0 0
        %1513 = vmatpush1.bf16.msra.mxu0 0
        %1514 = vmatprep.subr.bf16.mxu0 0
        %1515 = vmatpush1.bf16.msra.mxu0 0
        %1516 = vmatprep.subr.bf16.mxu0 0
        %1517 = vmatpush1.bf16.msra.mxu0 0
        %1518 = vmatprep.subr.bf16.mxu0 0
        %1519 = vmatpush1.bf16.msra.mxu0 0
        %1520 = vmatprep.subr.bf16.mxu0 0
        %1521 = vmatpush1.bf16.msra.mxu0 0
        %1522 = vmatprep.subr.bf16.mxu0 0
        %1523 = vmatpush1.bf16.msra.mxu0 0
        %1524 = vmatprep.mubr.bf16.mxu0 0
        %1525 = vmatmul.mubr.bf16.gmra.mrb[0].mxu0 %v854
        %v1526 = vpop.f32.mrb[0].mxu0
        %v1527 = vadd.f32 0.0, %v1526
        %v1528 = vpop.f32.mrb[0].mxu0
        %v1529 = vpop.f32.mrb[0].mxu0
        %v1530 = vadd.f32 0.0, %v1529
        %v1531 = vpop.f32.mrb[0].mxu0
        %1532 = vdwg.mxu0
        %1533 = vmatprep.subr.bf16.mxu0 0
        %1534 = vmatpush1.bf16.msra.mxu0 %v1203
        %1535 = vmatprep.subr.bf16.mxu0 0
        %1536 = vmatpush1.bf16.msra.mxu0 0
        %1537 = vmatprep.subr.bf16.mxu0 0
        %1538 = vmatpush1.bf16.msra.mxu0 0
        %1539 = vmatprep.subr.bf16.mxu0 0
        %1540 = vmatpush1.bf16.msra.mxu0 0
        %1541 = vmatprep.subr.bf16.mxu0 0
        %1542 = vmatpush1.bf16.msra.mxu0 0
        %1543 = vmatprep.subr.bf16.mxu0 0
        %1544 = vmatpush1.bf16.msra.mxu0 0
        %1545 = vmatprep.subr.bf16.mxu0 0
        %1546 = vmatpush1.bf16.msra.mxu0 0
        %1547 = vmatprep.subr.bf16.mxu0 0
        %1548 = vmatpush1.bf16.msra.mxu0 0
        %1549 = vmatprep.subr.bf16.mxu0 0
        %1550 = vmatpush1.bf16.msra.mxu0 0
        %1551 = vmatprep.subr.bf16.mxu0 0
        %1552 = vmatpush1.bf16.msra.mxu0 0
        %1553 = vmatprep.subr.bf16.mxu0 0
        %1554 = vmatpush1.bf16.msra.mxu0 0
        %1555 = vmatprep.subr.bf16.mxu0 0
        %1556 = vmatpush1.bf16.msra.mxu0 0
        %1557 = vmatprep.subr.bf16.mxu0 0
        %1558 = vmatpush1.bf16.msra.mxu0 0
        %1559 = vmatprep.subr.bf16.mxu0 0
        %1560 = vmatpush1.bf16.msra.mxu0 0
        %1561 = vmatprep.subr.bf16.mxu0 0
        %1562 = vmatpush1.bf16.msra.mxu0 0
        %1563 = vmatprep.subr.bf16.mxu0 0
        %1564 = vmatpush1.bf16.msra.mxu0 0
        %1565 = vmatprep.mubr.bf16.mxu0 0
        %1566 = vmatmul.mubr.bf16.gmra.mrb[0].mxu0 %v903
        %v1567 = vpop.f32.mrb[0].mxu0
        %v1568 = vadd.f32 0.0, %v1567
        %v1569 = vpop.f32.mrb[0].mxu0
        %v1570 = vpop.f32.mrb[0].mxu0
        %v1571 = vadd.f32 0.0, %v1570
        %v1572 = vpop.f32.mrb[0].mxu0
        %1573 = vdwg.mxu0
        %1574 = vmatprep.subr.bf16.mxu0 0
        %1575 = vmatpush1.bf16.msra.mxu0 %v1204
        %1576 = vmatprep.subr.bf16.mxu0 0
        %1577 = vmatpush1.bf16.msra.mxu0 0
        %1578 = vmatprep.subr.bf16.mxu0 0
        %1579 = vmatpush1.bf16.msra.mxu0 0
        %1580 = vmatprep.subr.bf16.mxu0 0
        %1581 = vmatpush1.bf16.msra.mxu0 0
        %1582 = vmatprep.subr.bf16.mxu0 0
        %1583 = vmatpush1.bf16.msra.mxu0 0
        %1584 = vmatprep.subr.bf16.mxu0 0
        %1585 = vmatpush1.bf16.msra.mxu0 0
        %1586 = vmatprep.subr.bf16.mxu0 0
        %1587 = vmatpush1.bf16.msra.mxu0 0
        %1588 = vmatprep.subr.bf16.mxu0 0
        %1589 = vmatpush1.bf16.msra.mxu0 0
        %1590 = vmatprep.subr.bf16.mxu0 0
        %1591 = vmatpush1.bf16.msra.mxu0 0
        %1592 = vmatprep.subr.bf16.mxu0 0
        %1593 = vmatpush1.bf16.msra.mxu0 0
        %1594 = vmatprep.subr.bf16.mxu0 0
        %1595 = vmatpush1.bf16.msra.mxu0 0
        %1596 = vmatprep.subr.bf16.mxu0 0
        %1597 = vmatpush1.bf16.msra.mxu0 0
        %1598 = vmatprep.subr.bf16.mxu0 0
        %1599 = vmatpush1.bf16.msra.mxu0 0
        %1600 = vmatprep.subr.bf16.mxu0 0
        %1601 = vmatpush1.bf16.msra.mxu0 0
        %1602 = vmatprep.subr.bf16.mxu0 0
        %1603 = vmatpush1.bf16.msra.mxu0 0
        %1604 = vmatprep.subr.bf16.mxu0 0
        %1605 = vmatpush1.bf16.msra.mxu0 0
        %1606 = vmatprep.mubr.bf16.mxu0 0
        %1607 = vmatmul.mubr.bf16.gmra.mrb[0].mxu0 %v952
        %v1608 = vpop.f32.mrb[0].mxu0
        %v1609 = vadd.f32 0.0, %v1608
        %v1610 = vpop.f32.mrb[0].mxu0
        %v1611 = vpop.f32.mrb[0].mxu0
        %v1612 = vadd.f32 0.0, %v1611
        %v1613 = vpop.f32.mrb[0].mxu0
        %1614 = vdwg.mxu0
        %1616 = vset.pattern.permute.xlu0 0
        %1617 = vperm.xlu0 %1616, %v1035
        %v1618 = vpop.permute.xlu0 %1617
        %1621 = vset.pattern.permute.xlu0 0
        %1622 = vperm.xlu0 %1621, %v1036
        %v1623 = vpop.permute.xlu0 %1622
        %1626 = vset.pattern.permute.xlu0 0
        %1627 = vperm.xlu0 %1626, %v1037
        %v1628 = vpop.permute.xlu0 %1627
        %1631 = vset.pattern.permute.xlu0 0
        %1632 = vperm.xlu0 %1631, %v1038
        %v1633 = vpop.permute.xlu0 %1632
        %1636 = vset.pattern.permute.xlu0 0
        %1637 = vperm.xlu0 %1636, %v1039
        %v1638 = vpop.permute.xlu0 %1637
        %1641 = vset.pattern.permute.xlu0 0
        %1642 = vperm.xlu0 %1641, %v1040
        %v1643 = vpop.permute.xlu0 %1642
        %1646 = vset.pattern.permute.xlu0 0
        %1647 = vperm.xlu0 %1646, %v1041
        %v1648 = vpop.permute.xlu0 %1647
        %1651 = vset.pattern.permute.xlu0 0
        %1652 = vperm.xlu0 %1651, %v1042
        %v1653 = vpop.permute.xlu0 %1652
        %1656 = vset.pattern.permute.xlu0 0
        %1657 = vperm.xlu0 %1656, %v1043
        %v1658 = vpop.permute.xlu0 %1657
        %1661 = vset.pattern.permute.xlu0 0
        %1662 = vperm.xlu0 %1661, %v1044
        %v1663 = vpop.permute.xlu0 %1662
        %1666 = vset.pattern.permute.xlu0 0
        %1667 = vperm.xlu0 %1666, %v1045
        %v1668 = vpop.permute.xlu0 %1667
        %1671 = vset.pattern.permute.xlu0 0
        %1672 = vperm.xlu0 %1671, %v1046
        %v1673 = vpop.permute.xlu0 %1672
        %1676 = vset.pattern.permute.xlu0 0
        %1677 = vperm.xlu0 %1676, %v1047
        %v1678 = vpop.permute.xlu0 %1677
        %1681 = vset.pattern.permute.xlu0 0
        %1682 = vperm.xlu0 %1681, %v1048
        %v1683 = vpop.permute.xlu0 %1682
        %1686 = vset.pattern.permute.xlu0 0
        %1687 = vperm.xlu0 %1686, %v1049
        %v1688 = vpop.permute.xlu0 %1687
        %1691 = vset.pattern.permute.xlu0 0
        %1692 = vperm.xlu0 %1691, %v1050
        %v1693 = vpop.permute.xlu0 %1692
        %1696 = vset.pattern.permute.xlu0 0
        %1697 = vperm.xlu0 %1696, %v1051
        %v1698 = vpop.permute.xlu0 %1697
        %1701 = vset.pattern.permute.xlu0 0
        %1702 = vperm.xlu0 %1701, %v1052
        %v1703 = vpop.permute.xlu0 %1702
        %1706 = vset.pattern.permute.xlu0 0
        %1707 = vperm.xlu0 %1706, %v1053
        %v1708 = vpop.permute.xlu0 %1707
        %1711 = vset.pattern.permute.xlu0 0
        %1712 = vperm.xlu0 %1711, %v1054
        %v1713 = vpop.permute.xlu0 %1712
        %v1715 = vmul.f32 %v1618, %v1240
        %v1716 = vmul.f32 %v1623, %v1243
        %v1717 = vmul.f32 %v1628, %v1281
        %v1718 = vmul.f32 %v1633, %v1284
        %v1719 = vmul.f32 %v1638, %v1322
        %v1720 = vmul.f32 %v1643, %v1325
        %v1721 = vmul.f32 %v1648, %v1363
        %v1722 = vmul.f32 %v1653, %v1366
        %v1723 = vmul.f32 %v1658, %v1404
        %v1724 = vmul.f32 %v1663, %v1407
        %v1725 = vmul.f32 %v1668, %v1445
        %v1726 = vmul.f32 %v1673, %v1448
        %v1727 = vmul.f32 %v1678, %v1486
        %v1728 = vmul.f32 %v1683, %v1489
        %v1729 = vmul.f32 %v1688, %v1527
        %v1730 = vmul.f32 %v1693, %v1530
        %v1731 = vmul.f32 %v1698, %v1568
        %v1732 = vmul.f32 %v1703, %v1571
        %v1733 = vmul.f32 %v1708, %v1609
        %v1734 = vmul.f32 %v1713, %v1612
        %v1735 = vmul.f32 %v1078, %v1715
        %v1736 = vmul.f32 %v1083, %v1716
        %v1737 = vmul.f32 %v1088, %v1717
        %v1738 = vmul.f32 %v1093, %v1718
        %v1739 = vmul.f32 %v1098, %v1719
        %v1740 = vmul.f32 %v1103, %v1720
        %v1741 = vmul.f32 %v1108, %v1721
        %v1742 = vmul.f32 %v1113, %v1722
        %v1743 = vmul.f32 %v1118, %v1723
        %v1744 = vmul.f32 %v1123, %v1724
        %v1745 = vmul.f32 %v1128, %v1725
        %v1746 = vmul.f32 %v1133, %v1726
        %v1747 = vmul.f32 %v1138, %v1727
        %v1748 = vmul.f32 %v1143, %v1728
        %v1749 = vmul.f32 %v1148, %v1729
        %v1750 = vmul.f32 %v1153, %v1730
        %v1751 = vmul.f32 %v1158, %v1731
        %v1752 = vmul.f32 %v1163, %v1732
        %v1753 = vmul.f32 %v1168, %v1733
        %v1754 = vmul.f32 %v1173, %v1734
        %v1755 = vpack.c.bf16 %v1736, %v1735
        %v1756 = vpack.c.bf16 %v1738, %v1737
        %v1757 = vpack.c.bf16 %v1740, %v1739
        %v1758 = vpack.c.bf16 %v1742, %v1741
        %v1759 = vpack.c.bf16 %v1744, %v1743
        %v1760 = vpack.c.bf16 %v1746, %v1745
        %v1761 = vpack.c.bf16 %v1748, %v1747
        %v1762 = vpack.c.bf16 %v1750, %v1749
        %v1763 = vpack.c.bf16 %v1752, %v1751
        %v1764 = vpack.c.bf16 %v1754, %v1753
        %1765 = vmatprep.subr.bf16.mxu0 0
        %1766 = vmatpush1.bf16.msra.mxu0 %v1755
        %1767 = vmatprep.subr.bf16.mxu0 0
        %1768 = vmatpush1.bf16.msra.mxu0 0
        %1769 = vmatprep.subr.bf16.mxu0 0
        %1770 = vmatpush1.bf16.msra.mxu0 0
        %1771 = vmatprep.subr.bf16.mxu0 0
        %1772 = vmatpush1.bf16.msra.mxu0 0
        %1773 = vmatprep.subr.bf16.mxu0 0
        %1774 = vmatpush1.bf16.msra.mxu0 0
        %1775 = vmatprep.subr.bf16.mxu0 0
        %1776 = vmatpush1.bf16.msra.mxu0 0
        %1777 = vmatprep.subr.bf16.mxu0 0
        %1778 = vmatpush1.bf16.msra.mxu0 0
        %1779 = vmatprep.subr.bf16.mxu0 0
        %1780 = vmatpush1.bf16.msra.mxu0 0
        %1781 = vmatprep.subr.bf16.mxu0 0
        %1782 = vmatpush1.bf16.msra.mxu0 0
        %1783 = vmatprep.subr.bf16.mxu0 0
        %1784 = vmatpush1.bf16.msra.mxu0 0
        %1785 = vmatprep.subr.bf16.mxu0 0
        %1786 = vmatpush1.bf16.msra.mxu0 0
        %1787 = vmatprep.subr.bf16.mxu0 0
        %1788 = vmatpush1.bf16.msra.mxu0 0
        %1789 = vmatprep.subr.bf16.mxu0 0
        %1790 = vmatpush1.bf16.msra.mxu0 0
        %1791 = vmatprep.subr.bf16.mxu0 0
        %1792 = vmatpush1.bf16.msra.mxu0 0
        %1793 = vmatprep.subr.bf16.mxu0 0
        %1794 = vmatpush1.bf16.msra.mxu0 0
        %1795 = vmatprep.subr.bf16.mxu0 0
        %1796 = vmatpush1.bf16.msra.mxu0 0
        %1797 = vmatprep.mubr.bf16.mxu0 0
        %1798 = vmatmul.mubr.bf16.gmra.mrb[0].mxu0 %v511
        %v1799 = vpop.f32.mrb[0].mxu0
        %v1800 = vadd.f32 0.0, %v1799
        %v1801 = vpop.f32.mrb[0].mxu0
        %v1802 = vpop.f32.mrb[0].mxu0
        %v1803 = vadd.f32 0.0, %v1802
        %v1804 = vpop.f32.mrb[0].mxu0
        %1805 = vdwg.mxu0
        %1806 = vmatprep.subr.bf16.mxu0 0
        %1807 = vmatpush1.bf16.msra.mxu0 %v1756
        %1808 = vmatprep.subr.bf16.mxu0 0
        %1809 = vmatpush1.bf16.msra.mxu0 0
        %1810 = vmatprep.subr.bf16.mxu0 0
        %1811 = vmatpush1.bf16.msra.mxu0 0
        %1812 = vmatprep.subr.bf16.mxu0 0
        %1813 = vmatpush1.bf16.msra.mxu0 0
        %1814 = vmatprep.subr.bf16.mxu0 0
        %1815 = vmatpush1.bf16.msra.mxu0 0
        %1816 = vmatprep.subr.bf16.mxu0 0
        %1817 = vmatpush1.bf16.msra.mxu0 0
        %1818 = vmatprep.subr.bf16.mxu0 0
        %1819 = vmatpush1.bf16.msra.mxu0 0
        %1820 = vmatprep.subr.bf16.mxu0 0
        %1821 = vmatpush1.bf16.msra.mxu0 0
        %1822 = vmatprep.subr.bf16.mxu0 0
        %1823 = vmatpush1.bf16.msra.mxu0 0
        %1824 = vmatprep.subr.bf16.mxu0 0
        %1825 = vmatpush1.bf16.msra.mxu0 0
        %1826 = vmatprep.subr.bf16.mxu0 0
        %1827 = vmatpush1.bf16.msra.mxu0 0
        %1828 = vmatprep.subr.bf16.mxu0 0
        %1829 = vmatpush1.bf16.msra.mxu0 0
        %1830 = vmatprep.subr.bf16.mxu0 0
        %1831 = vmatpush1.bf16.msra.mxu0 0
        %1832 = vmatprep.subr.bf16.mxu0 0
        %1833 = vmatpush1.bf16.msra.mxu0 0
        %1834 = vmatprep.subr.bf16.mxu0 0
        %1835 = vmatpush1.bf16.msra.mxu0 0
        %1836 = vmatprep.subr.bf16.mxu0 0
        %1837 = vmatpush1.bf16.msra.mxu0 0
        %1838 = vmatprep.mubr.bf16.mxu0 0
        %1839 = vmatmul.mubr.bf16.gmra.mrb[0].mxu0 %v560
        %v1840 = vpop.f32.mrb[0].mxu0
        %v1841 = vadd.f32 0.0, %v1840
        %v1842 = vpop.f32.mrb[0].mxu0
        %v1843 = vpop.f32.mrb[0].mxu0
        %v1844 = vadd.f32 0.0, %v1843
        %v1845 = vpop.f32.mrb[0].mxu0
        %1846 = vdwg.mxu0
        %1847 = vmatprep.subr.bf16.mxu0 0
        %1848 = vmatpush1.bf16.msra.mxu0 %v1757
        %1849 = vmatprep.subr.bf16.mxu0 0
        %1850 = vmatpush1.bf16.msra.mxu0 0
        %1851 = vmatprep.subr.bf16.mxu0 0
        %1852 = vmatpush1.bf16.msra.mxu0 0
        %1853 = vmatprep.subr.bf16.mxu0 0
        %1854 = vmatpush1.bf16.msra.mxu0 0
        %1855 = vmatprep.subr.bf16.mxu0 0
        %1856 = vmatpush1.bf16.msra.mxu0 0
        %1857 = vmatprep.subr.bf16.mxu0 0
        %1858 = vmatpush1.bf16.msra.mxu0 0
        %1859 = vmatprep.subr.bf16.mxu0 0
        %1860 = vmatpush1.bf16.msra.mxu0 0
        %1861 = vmatprep.subr.bf16.mxu0 0
        %1862 = vmatpush1.bf16.msra.mxu0 0
        %1863 = vmatprep.subr.bf16.mxu0 0
        %1864 = vmatpush1.bf16.msra.mxu0 0
        %1865 = vmatprep.subr.bf16.mxu0 0
        %1866 = vmatpush1.bf16.msra.mxu0 0
        %1867 = vmatprep.subr.bf16.mxu0 0
        %1868 = vmatpush1.bf16.msra.mxu0 0
        %1869 = vmatprep.subr.bf16.mxu0 0
        %1870 = vmatpush1.bf16.msra.mxu0 0
        %1871 = vmatprep.subr.bf16.mxu0 0
        %1872 = vmatpush1.bf16.msra.mxu0 0
        %1873 = vmatprep.subr.bf16.mxu0 0
        %1874 = vmatpush1.bf16.msra.mxu0 0
        %1875 = vmatprep.subr.bf16.mxu0 0
        %1876 = vmatpush1.bf16.msra.mxu0 0
        %1877 = vmatprep.subr.bf16.mxu0 0
        %1878 = vmatpush1.bf16.msra.mxu0 0
        %1879 = vmatprep.mubr.bf16.mxu0 0
        %1880 = vmatmul.mubr.bf16.gmra.mrb[0].mxu0 %v609
        %v1881 = vpop.f32.mrb[0].mxu0
        %v1882 = vadd.f32 0.0, %v1881
        %v1883 = vpop.f32.mrb[0].mxu0
        %v1884 = vpop.f32.mrb[0].mxu0
        %v1885 = vadd.f32 0.0, %v1884
        %v1886 = vpop.f32.mrb[0].mxu0
        %1887 = vdwg.mxu0
        %1888 = vmatprep.subr.bf16.mxu0 0
        %1889 = vmatpush1.bf16.msra.mxu0 %v1758
        %1890 = vmatprep.subr.bf16.mxu0 0
        %1891 = vmatpush1.bf16.msra.mxu0 0
        %1892 = vmatprep.subr.bf16.mxu0 0
        %1893 = vmatpush1.bf16.msra.mxu0 0
        %1894 = vmatprep.subr.bf16.mxu0 0
        %1895 = vmatpush1.bf16.msra.mxu0 0
        %1896 = vmatprep.subr.bf16.mxu0 0
        %1897 = vmatpush1.bf16.msra.mxu0 0
        %1898 = vmatprep.subr.bf16.mxu0 0
        %1899 = vmatpush1.bf16.msra.mxu0 0
        %1900 = vmatprep.subr.bf16.mxu0 0
        %1901 = vmatpush1.bf16.msra.mxu0 0
        %1902 = vmatprep.subr.bf16.mxu0 0
        %1903 = vmatpush1.bf16.msra.mxu0 0
        %1904 = vmatprep.subr.bf16.mxu0 0
        %1905 = vmatpush1.bf16.msra.mxu0 0
        %1906 = vmatprep.subr.bf16.mxu0 0
        %1907 = vmatpush1.bf16.msra.mxu0 0
        %1908 = vmatprep.subr.bf16.mxu0 0
        %1909 = vmatpush1.bf16.msra.mxu0 0
        %1910 = vmatprep.subr.bf16.mxu0 0
        %1911 = vmatpush1.bf16.msra.mxu0 0
        %1912 = vmatprep.subr.bf16.mxu0 0
        %1913 = vmatpush1.bf16.msra.mxu0 0
        %1914 = vmatprep.subr.bf16.mxu0 0
        %1915 = vmatpush1.bf16.msra.mxu0 0
        %1916 = vmatprep.subr.bf16.mxu0 0
        %1917 = vmatpush1.bf16.msra.mxu0 0
        %1918 = vmatprep.subr.bf16.mxu0 0
        %1919 = vmatpush1.bf16.msra.mxu0 0
        %1920 = vmatprep.mubr.bf16.mxu0 0
        %1921 = vmatmul.mubr.bf16.gmra.mrb[0].mxu0 %v658
        %v1922 = vpop.f32.mrb[0].mxu0
        %v1923 = vadd.f32 0.0, %v1922
        %v1924 = vpop.f32.mrb[0].mxu0
        %v1925 = vpop.f32.mrb[0].mxu0
        %v1926 = vadd.f32 0.0, %v1925
        %v1927 = vpop.f32.mrb[0].mxu0
        %1928 = vdwg.mxu0
        %1929 = vmatprep.subr.bf16.mxu0 0
        %1930 = vmatpush1.bf16.msra.mxu0 %v1759
        %1931 = vmatprep.subr.bf16.mxu0 0
        %1932 = vmatpush1.bf16.msra.mxu0 0
        %1933 = vmatprep.subr.bf16.mxu0 0
        %1934 = vmatpush1.bf16.msra.mxu0 0
        %1935 = vmatprep.subr.bf16.mxu0 0
        %1936 = vmatpush1.bf16.msra.mxu0 0
        %1937 = vmatprep.subr.bf16.mxu0 0
        %1938 = vmatpush1.bf16.msra.mxu0 0
        %1939 = vmatprep.subr.bf16.mxu0 0
        %1940 = vmatpush1.bf16.msra.mxu0 0
        %1941 = vmatprep.subr.bf16.mxu0 0
        %1942 = vmatpush1.bf16.msra.mxu0 0
        %1943 = vmatprep.subr.bf16.mxu0 0
        %1944 = vmatpush1.bf16.msra.mxu0 0
        %1945 = vmatprep.subr.bf16.mxu0 0
        %1946 = vmatpush1.bf16.msra.mxu0 0
        %1947 = vmatprep.subr.bf16.mxu0 0
        %1948 = vmatpush1.bf16.msra.mxu0 0
        %1949 = vmatprep.subr.bf16.mxu0 0
        %1950 = vmatpush1.bf16.msra.mxu0 0
        %1951 = vmatprep.subr.bf16.mxu0 0
        %1952 = vmatpush1.bf16.msra.mxu0 0
        %1953 = vmatprep.subr.bf16.mxu0 0
        %1954 = vmatpush1.bf16.msra.mxu0 0
        %1955 = vmatprep.subr.bf16.mxu0 0
        %1956 = vmatpush1.bf16.msra.mxu0 0
        %1957 = vmatprep.subr.bf16.mxu0 0
        %1958 = vmatpush1.bf16.msra.mxu0 0
        %1959 = vmatprep.subr.bf16.mxu0 0
        %1960 = vmatpush1.bf16.msra.mxu0 0
        %1961 = vmatprep.mubr.bf16.mxu0 0
        %1962 = vmatmul.mubr.bf16.gmra.mrb[0].mxu0 %v707
        %v1963 = vpop.f32.mrb[0].mxu0
        %v1964 = vadd.f32 0.0, %v1963
        %v1965 = vpop.f32.mrb[0].mxu0
        %v1966 = vpop.f32.mrb[0].mxu0
        %v1967 = vadd.f32 0.0, %v1966
        %v1968 = vpop.f32.mrb[0].mxu0
        %1969 = vdwg.mxu0
        %1970 = vmatprep.subr.bf16.mxu0 0
        %1971 = vmatpush1.bf16.msra.mxu0 %v1760
        %1972 = vmatprep.subr.bf16.mxu0 0
        %1973 = vmatpush1.bf16.msra.mxu0 0
        %1974 = vmatprep.subr.bf16.mxu0 0
        %1975 = vmatpush1.bf16.msra.mxu0 0
        %1976 = vmatprep.subr.bf16.mxu0 0
        %1977 = vmatpush1.bf16.msra.mxu0 0
        %1978 = vmatprep.subr.bf16.mxu0 0
        %1979 = vmatpush1.bf16.msra.mxu0 0
        %1980 = vmatprep.subr.bf16.mxu0 0
        %1981 = vmatpush1.bf16.msra.mxu0 0
        %1982 = vmatprep.subr.bf16.mxu0 0
        %1983 = vmatpush1.bf16.msra.mxu0 0
        %1984 = vmatprep.subr.bf16.mxu0 0
        %1985 = vmatpush1.bf16.msra.mxu0 0
        %1986 = vmatprep.subr.bf16.mxu0 0
        %1987 = vmatpush1.bf16.msra.mxu0 0
        %1988 = vmatprep.subr.bf16.mxu0 0
        %1989 = vmatpush1.bf16.msra.mxu0 0
        %1990 = vmatprep.subr.bf16.mxu0 0
        %1991 = vmatpush1.bf16.msra.mxu0 0
        %1992 = vmatprep.subr.bf16.mxu0 0
        %1993 = vmatpush1.bf16.msra.mxu0 0
        %1994 = vmatprep.subr.bf16.mxu0 0
        %1995 = vmatpush1.bf16.msra.mxu0 0
        %1996 = vmatprep.subr.bf16.mxu0 0
        %1997 = vmatpush1.bf16.msra.mxu0 0
        %1998 = vmatprep.subr.bf16.mxu0 0
        %1999 = vmatpush1.bf16.msra.mxu0 0
        %2000 = vmatprep.subr.bf16.mxu0 0
        %2001 = vmatpush1.bf16.msra.mxu0 0
        %2002 = vmatprep.mubr.bf16.mxu0 0
        %2003 = vmatmul.mubr.bf16.gmra.mrb[0].mxu0 %v756
        %v2004 = vpop.f32.mrb[0].mxu0
        %v2005 = vadd.f32 0.0, %v2004
        %v2006 = vpop.f32.mrb[0].mxu0
        %v2007 = vpop.f32.mrb[0].mxu0
        %v2008 = vadd.f32 0.0, %v2007
        %v2009 = vpop.f32.mrb[0].mxu0
        %2010 = vdwg.mxu0
        %2011 = vmatprep.subr.bf16.mxu0 0
        %2012 = vmatpush1.bf16.msra.mxu0 %v1761
        %2013 = vmatprep.subr.bf16.mxu0 0
        %2014 = vmatpush1.bf16.msra.mxu0 0
        %2015 = vmatprep.subr.bf16.mxu0 0
        %2016 = vmatpush1.bf16.msra.mxu0 0
        %2017 = vmatprep.subr.bf16.mxu0 0
        %2018 = vmatpush1.bf16.msra.mxu0 0
        %2019 = vmatprep.subr.bf16.mxu0 0
        %2020 = vmatpush1.bf16.msra.mxu0 0
        %2021 = vmatprep.subr.bf16.mxu0 0
        %2022 = vmatpush1.bf16.msra.mxu0 0
        %2023 = vmatprep.subr.bf16.mxu0 0
        %2024 = vmatpush1.bf16.msra.mxu0 0
        %2025 = vmatprep.subr.bf16.mxu0 0
        %2026 = vmatpush1.bf16.msra.mxu0 0
        %2027 = vmatprep.subr.bf16.mxu0 0
        %2028 = vmatpush1.bf16.msra.mxu0 0
        %2029 = vmatprep.subr.bf16.mxu0 0
        %2030 = vmatpush1.bf16.msra.mxu0 0
        %2031 = vmatprep.subr.bf16.mxu0 0
        %2032 = vmatpush1.bf16.msra.mxu0 0
        %2033 = vmatprep.subr.bf16.mxu0 0
        %2034 = vmatpush1.bf16.msra.mxu0 0
        %2035 = vmatprep.subr.bf16.mxu0 0
        %2036 = vmatpush1.bf16.msra.mxu0 0
        %2037 = vmatprep.subr.bf16.mxu0 0
        %2038 = vmatpush1.bf16.msra.mxu0 0
        %2039 = vmatprep.subr.bf16.mxu0 0
        %2040 = vmatpush1.bf16.msra.mxu0 0
        %2041 = vmatprep.subr.bf16.mxu0 0
        %2042 = vmatpush1.bf16.msra.mxu0 0
        %2043 = vmatprep.mubr.bf16.mxu0 0
        %2044 = vmatmul.mubr.bf16.gmra.mrb[0].mxu0 %v805
        %v2045 = vpop.f32.mrb[0].mxu0
        %v2046 = vadd.f32 0.0, %v2045
        %v2047 = vpop.f32.mrb[0].mxu0
        %v2048 = vpop.f32.mrb[0].mxu0
        %v2049 = vadd.f32 0.0, %v2048
        %v2050 = vpop.f32.mrb[0].mxu0
        %2051 = vdwg.mxu0
        %2052 = vmatprep.subr.bf16.mxu0 0
        %2053 = vmatpush1.bf16.msra.mxu0 %v1762
        %2054 = vmatprep.subr.bf16.mxu0 0
        %2055 = vmatpush1.bf16.msra.mxu0 0
        %2056 = vmatprep.subr.bf16.mxu0 0
        %2057 = vmatpush1.bf16.msra.mxu0 0
        %2058 = vmatprep.subr.bf16.mxu0 0
        %2059 = vmatpush1.bf16.msra.mxu0 0
        %2060 = vmatprep.subr.bf16.mxu0 0
        %2061 = vmatpush1.bf16.msra.mxu0 0
        %2062 = vmatprep.subr.bf16.mxu0 0
        %2063 = vmatpush1.bf16.msra.mxu0 0
        %2064 = vmatprep.subr.bf16.mxu0 0
        %2065 = vmatpush1.bf16.msra.mxu0 0
        %2066 = vmatprep.subr.bf16.mxu0 0
        %2067 = vmatpush1.bf16.msra.mxu0 0
        %2068 = vmatprep.subr.bf16.mxu0 0
        %2069 = vmatpush1.bf16.msra.mxu0 0
        %2070 = vmatprep.subr.bf16.mxu0 0
        %2071 = vmatpush1.bf16.msra.mxu0 0
        %2072 = vmatprep.subr.bf16.mxu0 0
        %2073 = vmatpush1.bf16.msra.mxu0 0
        %2074 = vmatprep.subr.bf16.mxu0 0
        %2075 = vmatpush1.bf16.msra.mxu0 0
        %2076 = vmatprep.subr.bf16.mxu0 0
        %2077 = vmatpush1.bf16.msra.mxu0 0
        %2078 = vmatprep.subr.bf16.mxu0 0
        %2079 = vmatpush1.bf16.msra.mxu0 0
        %2080 = vmatprep.subr.bf16.mxu0 0
        %2081 = vmatpush1.bf16.msra.mxu0 0
        %2082 = vmatprep.subr.bf16.mxu0 0
        %2083 = vmatpush1.bf16.msra.mxu0 0
        %2084 = vmatprep.mubr.bf16.mxu0 0
        %2085 = vmatmul.mubr.bf16.gmra.mrb[0].mxu0 %v854
        %v2086 = vpop.f32.mrb[0].mxu0
        %v2087 = vadd.f32 0.0, %v2086
        %v2088 = vpop.f32.mrb[0].mxu0
        %v2089 = vpop.f32.mrb[0].mxu0
        %v2090 = vadd.f32 0.0, %v2089
        %v2091 = vpop.f32.mrb[0].mxu0
        %2092 = vdwg.mxu0
        %2093 = vmatprep.subr.bf16.mxu0 0
        %2094 = vmatpush1.bf16.msra.mxu0 %v1763
        %2095 = vmatprep.subr.bf16.mxu0 0
        %2096 = vmatpush1.bf16.msra.mxu0 0
        %2097 = vmatprep.subr.bf16.mxu0 0
        %2098 = vmatpush1.bf16.msra.mxu0 0
        %2099 = vmatprep.subr.bf16.mxu0 0
        %2100 = vmatpush1.bf16.msra.mxu0 0
        %2101 = vmatprep.subr.bf16.mxu0 0
        %2102 = vmatpush1.bf16.msra.mxu0 0
        %2103 = vmatprep.subr.bf16.mxu0 0
        %2104 = vmatpush1.bf16.msra.mxu0 0
        %2105 = vmatprep.subr.bf16.mxu0 0
        %2106 = vmatpush1.bf16.msra.mxu0 0
        %2107 = vmatprep.subr.bf16.mxu0 0
        %2108 = vmatpush1.bf16.msra.mxu0 0
        %2109 = vmatprep.subr.bf16.mxu0 0
        %2110 = vmatpush1.bf16.msra.mxu0 0
        %2111 = vmatprep.subr.bf16.mxu0 0
        %2112 = vmatpush1.bf16.msra.mxu0 0
        %2113 = vmatprep.subr.bf16.mxu0 0
        %2114 = vmatpush1.bf16.msra.mxu0 0
        %2115 = vmatprep.subr.bf16.mxu0 0
        %2116 = vmatpush1.bf16.msra.mxu0 0
        %2117 = vmatprep.subr.bf16.mxu0 0
        %2118 = vmatpush1.bf16.msra.mxu0 0
        %2119 = vmatprep.subr.bf16.mxu0 0
        %2120 = vmatpush1.bf16.msra.mxu0 0
        %2121 = vmatprep.subr.bf16.mxu0 0
        %2122 = vmatpush1.bf16.msra.mxu0 0
        %2123 = vmatprep.subr.bf16.mxu0 0
        %2124 = vmatpush1.bf16.msra.mxu0 0
        %2125 = vmatprep.mubr.bf16.mxu0 0
        %2126 = vmatmul.mubr.bf16.gmra.mrb[0].mxu0 %v903
        %v2127 = vpop.f32.mrb[0].mxu0
        %v2128 = vadd.f32 0.0, %v2127
        %v2129 = vpop.f32.mrb[0].mxu0
        %v2130 = vpop.f32.mrb[0].mxu0
        %v2131 = vadd.f32 0.0, %v2130
        %v2132 = vpop.f32.mrb[0].mxu0
        %2133 = vdwg.mxu0
        %2134 = vmatprep.subr.bf16.mxu0 0
        %2135 = vmatpush1.bf16.msra.mxu0 %v1764
        %2136 = vmatprep.subr.bf16.mxu0 0
        %2137 = vmatpush1.bf16.msra.mxu0 0
        %2138 = vmatprep.subr.bf16.mxu0 0
        %2139 = vmatpush1.bf16.msra.mxu0 0
        %2140 = vmatprep.subr.bf16.mxu0 0
        %2141 = vmatpush1.bf16.msra.mxu0 0
        %2142 = vmatprep.subr.bf16.mxu0 0
        %2143 = vmatpush1.bf16.msra.mxu0 0
        %2144 = vmatprep.subr.bf16.mxu0 0
        %2145 = vmatpush1.bf16.msra.mxu0 0
        %2146 = vmatprep.subr.bf16.mxu0 0
        %2147 = vmatpush1.bf16.msra.mxu0 0
        %2148 = vmatprep.subr.bf16.mxu0 0
        %2149 = vmatpush1.bf16.msra.mxu0 0
        %2150 = vmatprep.subr.bf16.mxu0 0
        %2151 = vmatpush1.bf16.msra.mxu0 0
        %2152 = vmatprep.subr.bf16.mxu0 0
        %2153 = vmatpush1.bf16.msra.mxu0 0
        %2154 = vmatprep.subr.bf16.mxu0 0
        %2155 = vmatpush1.bf16.msra.mxu0 0
        %2156 = vmatprep.subr.bf16.mxu0 0
        %2157 = vmatpush1.bf16.msra.mxu0 0
        %2158 = vmatprep.subr.bf16.mxu0 0
        %2159 = vmatpush1.bf16.msra.mxu0 0
        %2160 = vmatprep.subr.bf16.mxu0 0
        %2161 = vmatpush1.bf16.msra.mxu0 0
        %2162 = vmatprep.subr.bf16.mxu0 0
        %2163 = vmatpush1.bf16.msra.mxu0 0
        %2164 = vmatprep.subr.bf16.mxu0 0
        %2165 = vmatpush1.bf16.msra.mxu0 0
        %2166 = vmatprep.mubr.bf16.mxu0 0
        %2167 = vmatmul.mubr.bf16.gmra.mrb[0].mxu0 %v952
        %v2168 = vpop.f32.mrb[0].mxu0
        %v2169 = vadd.f32 0.0, %v2168
        %v2170 = vpop.f32.mrb[0].mxu0
        %v2171 = vpop.f32.mrb[0].mxu0
        %v2172 = vadd.f32 0.0, %v2171
        %v2173 = vpop.f32.mrb[0].mxu0
        %2174 = vdwg.mxu0
        %v2175 = vmul.f32 %v1618, %v1800
        %v2176 = vmul.f32 %v1623, %v1803
        %v2177 = vmul.f32 %v1628, %v1841
        %v2178 = vmul.f32 %v1633, %v1844
        %v2179 = vmul.f32 %v1638, %v1882
        %v2180 = vmul.f32 %v1643, %v1885
        %v2181 = vmul.f32 %v1648, %v1923
        %v2182 = vmul.f32 %v1653, %v1926
        %v2183 = vmul.f32 %v1658, %v1964
        %v2184 = vmul.f32 %v1663, %v1967
        %v2185 = vmul.f32 %v1668, %v2005
        %v2186 = vmul.f32 %v1673, %v2008
        %v2187 = vmul.f32 %v1678, %v2046
        %v2188 = vmul.f32 %v1683, %v2049
        %v2189 = vmul.f32 %v1688, %v2087
        %v2190 = vmul.f32 %v1693, %v2090
        %v2191 = vmul.f32 %v1698, %v2128
        %v2192 = vmul.f32 %v1703, %v2131
        %v2193 = vmul.f32 %v1708, %v2169
        %v2194 = vmul.f32 %v1713, %v2172
        %v2195 = vmul.f32 %v1078, %v2175
        %v2196 = vmul.f32 %v1083, %v2176
        %v2197 = vmul.f32 %v1088, %v2177
        %v2198 = vmul.f32 %v1093, %v2178
        %v2199 = vmul.f32 %v1098, %v2179
        %v2200 = vmul.f32 %v1103, %v2180
        %v2201 = vmul.f32 %v1108, %v2181
        %v2202 = vmul.f32 %v1113, %v2182
        %v2203 = vmul.f32 %v1118, %v2183
        %v2204 = vmul.f32 %v1123, %v2184
        %v2205 = vmul.f32 %v1128, %v2185
        %v2206 = vmul.f32 %v1133, %v2186
        %v2207 = vmul.f32 %v1138, %v2187
        %v2208 = vmul.f32 %v1143, %v2188
        %v2209 = vmul.f32 %v1148, %v2189
        %v2210 = vmul.f32 %v1153, %v2190
        %v2211 = vmul.f32 %v1158, %v2191
        %v2212 = vmul.f32 %v1163, %v2192
        %v2213 = vmul.f32 %v1168, %v2193
        %v2214 = vmul.f32 %v1173, %v2194
        %v2215 = vpack.c.bf16 %v2196, %v2195
        %v2216 = vpack.c.bf16 %v2198, %v2197
        %v2217 = vpack.c.bf16 %v2200, %v2199
        %v2218 = vpack.c.bf16 %v2202, %v2201
        %v2219 = vpack.c.bf16 %v2204, %v2203
        %v2220 = vpack.c.bf16 %v2206, %v2205
        %v2221 = vpack.c.bf16 %v2208, %v2207
        %v2222 = vpack.c.bf16 %v2210, %v2209
        %v2223 = vpack.c.bf16 %v2212, %v2211
        %v2224 = vpack.c.bf16 %v2214, %v2213
        %2225 = vmatprep.subr.bf16.mxu0 0
        %2226 = vmatpush1.bf16.msra.mxu0 %v2215
        %2227 = vmatprep.subr.bf16.mxu0 0
        %2228 = vmatpush1.bf16.msra.mxu0 0
        %2229 = vmatprep.subr.bf16.mxu0 0
        %2230 = vmatpush1.bf16.msra.mxu0 0
        %2231 = vmatprep.subr.bf16.mxu0 0
        %2232 = vmatpush1.bf16.msra.mxu0 0
        %2233 = vmatprep.subr.bf16.mxu0 0
        %2234 = vmatpush1.bf16.msra.mxu0 0
        %2235 = vmatprep.subr.bf16.mxu0 0
        %2236 = vmatpush1.bf16.msra.mxu0 0
        %2237 = vmatprep.subr.bf16.mxu0 0
        %2238 = vmatpush1.bf16.msra.mxu0 0
        %2239 = vmatprep.subr.bf16.mxu0 0
        %2240 = vmatpush1.bf16.msra.mxu0 0
        %2241 = vmatprep.subr.bf16.mxu0 0
        %2242 = vmatpush1.bf16.msra.mxu0 0
        %2243 = vmatprep.subr.bf16.mxu0 0
        %2244 = vmatpush1.bf16.msra.mxu0 0
        %2245 = vmatprep.subr.bf16.mxu0 0
        %2246 = vmatpush1.bf16.msra.mxu0 0
        %2247 = vmatprep.subr.bf16.mxu0 0
        %2248 = vmatpush1.bf16.msra.mxu0 0
        %2249 = vmatprep.subr.bf16.mxu0 0
        %2250 = vmatpush1.bf16.msra.mxu0 0
        %2251 = vmatprep.subr.bf16.mxu0 0
        %2252 = vmatpush1.bf16.msra.mxu0 0
        %2253 = vmatprep.subr.bf16.mxu0 0
        %2254 = vmatpush1.bf16.msra.mxu0 0
        %2255 = vmatprep.subr.bf16.mxu0 0
        %2256 = vmatpush1.bf16.msra.mxu0 0
        %2257 = vmatprep.mubr.bf16.mxu0 0
        %2258 = vmatmul.mubr.bf16.gmra.mrb[0].mxu0 %v511
        %v2259 = vpop.f32.mrb[0].mxu0
        %v2260 = vadd.f32 0.0, %v2259
        %v2261 = vpop.f32.mrb[0].mxu0
        %v2262 = vpop.f32.mrb[0].mxu0
        %v2263 = vadd.f32 0.0, %v2262
        %v2264 = vpop.f32.mrb[0].mxu0
        %2265 = vdwg.mxu0
        %2266 = vmatprep.subr.bf16.mxu0 0
        %2267 = vmatpush1.bf16.msra.mxu0 %v2216
        %2268 = vmatprep.subr.bf16.mxu0 0
        %2269 = vmatpush1.bf16.msra.mxu0 0
        %2270 = vmatprep.subr.bf16.mxu0 0
        %2271 = vmatpush1.bf16.msra.mxu0 0
        %2272 = vmatprep.subr.bf16.mxu0 0
        %2273 = vmatpush1.bf16.msra.mxu0 0
        %2274 = vmatprep.subr.bf16.mxu0 0
        %2275 = vmatpush1.bf16.msra.mxu0 0
        %2276 = vmatprep.subr.bf16.mxu0 0
        %2277 = vmatpush1.bf16.msra.mxu0 0
        %2278 = vmatprep.subr.bf16.mxu0 0
        %2279 = vmatpush1.bf16.msra.mxu0 0
        %2280 = vmatprep.subr.bf16.mxu0 0
        %2281 = vmatpush1.bf16.msra.mxu0 0
        %2282 = vmatprep.subr.bf16.mxu0 0
        %2283 = vmatpush1.bf16.msra.mxu0 0
        %2284 = vmatprep.subr.bf16.mxu0 0
        %2285 = vmatpush1.bf16.msra.mxu0 0
        %2286 = vmatprep.subr.bf16.mxu0 0
        %2287 = vmatpush1.bf16.msra.mxu0 0
        %2288 = vmatprep.subr.bf16.mxu0 0
        %2289 = vmatpush1.bf16.msra.mxu0 0
        %2290 = vmatprep.subr.bf16.mxu0 0
        %2291 = vmatpush1.bf16.msra.mxu0 0
        %2292 = vmatprep.subr.bf16.mxu0 0
        %2293 = vmatpush1.bf16.msra.mxu0 0
        %2294 = vmatprep.subr.bf16.mxu0 0
        %2295 = vmatpush1.bf16.msra.mxu0 0
        %2296 = vmatprep.subr.bf16.mxu0 0
        %2297 = vmatpush1.bf16.msra.mxu0 0
        %2298 = vmatprep.mubr.bf16.mxu0 0
        %2299 = vmatmul.mubr.bf16.gmra.mrb[0].mxu0 %v560
        %v2300 = vpop.f32.mrb[0].mxu0
        %v2301 = vadd.f32 0.0, %v2300
        %v2302 = vpop.f32.mrb[0].mxu0
        %v2303 = vpop.f32.mrb[0].mxu0
        %v2304 = vadd.f32 0.0, %v2303
        %v2305 = vpop.f32.mrb[0].mxu0
        %2306 = vdwg.mxu0
        %2307 = vmatprep.subr.bf16.mxu0 0
        %2308 = vmatpush1.bf16.msra.mxu0 %v2217
        %2309 = vmatprep.subr.bf16.mxu0 0
        %2310 = vmatpush1.bf16.msra.mxu0 0
        %2311 = vmatprep.subr.bf16.mxu0 0
        %2312 = vmatpush1.bf16.msra.mxu0 0
        %2313 = vmatprep.subr.bf16.mxu0 0
        %2314 = vmatpush1.bf16.msra.mxu0 0
        %2315 = vmatprep.subr.bf16.mxu0 0
        %2316 = vmatpush1.bf16.msra.mxu0 0
        %2317 = vmatprep.subr.bf16.mxu0 0
        %2318 = vmatpush1.bf16.msra.mxu0 0
        %2319 = vmatprep.subr.bf16.mxu0 0
        %2320 = vmatpush1.bf16.msra.mxu0 0
        %2321 = vmatprep.subr.bf16.mxu0 0
        %2322 = vmatpush1.bf16.msra.mxu0 0
        %2323 = vmatprep.subr.bf16.mxu0 0
        %2324 = vmatpush1.bf16.msra.mxu0 0
        %2325 = vmatprep.subr.bf16.mxu0 0
        %2326 = vmatpush1.bf16.msra.mxu0 0
        %2327 = vmatprep.subr.bf16.mxu0 0
        %2328 = vmatpush1.bf16.msra.mxu0 0
        %2329 = vmatprep.subr.bf16.mxu0 0
        %2330 = vmatpush1.bf16.msra.mxu0 0
        %2331 = vmatprep.subr.bf16.mxu0 0
        %2332 = vmatpush1.bf16.msra.mxu0 0
        %2333 = vmatprep.subr.bf16.mxu0 0
        %2334 = vmatpush1.bf16.msra.mxu0 0
        %2335 = vmatprep.subr.bf16.mxu0 0
        %2336 = vmatpush1.bf16.msra.mxu0 0
        %2337 = vmatprep.subr.bf16.mxu0 0
        %2338 = vmatpush1.bf16.msra.mxu0 0
        %2339 = vmatprep.mubr.bf16.mxu0 0
        %2340 = vmatmul.mubr.bf16.gmra.mrb[0].mxu0 %v609
        %v2341 = vpop.f32.mrb[0].mxu0
        %v2342 = vadd.f32 0.0, %v2341
        %v2343 = vpop.f32.mrb[0].mxu0
        %v2344 = vpop.f32.mrb[0].mxu0
        %v2345 = vadd.f32 0.0, %v2344
        %v2346 = vpop.f32.mrb[0].mxu0
        %2347 = vdwg.mxu0
        %2348 = vmatprep.subr.bf16.mxu0 0
        %2349 = vmatpush1.bf16.msra.mxu0 %v2218
        %2350 = vmatprep.subr.bf16.mxu0 0
        %2351 = vmatpush1.bf16.msra.mxu0 0
        %2352 = vmatprep.subr.bf16.mxu0 0
        %2353 = vmatpush1.bf16.msra.mxu0 0
        %2354 = vmatprep.subr.bf16.mxu0 0
        %2355 = vmatpush1.bf16.msra.mxu0 0
        %2356 = vmatprep.subr.bf16.mxu0 0
        %2357 = vmatpush1.bf16.msra.mxu0 0
        %2358 = vmatprep.subr.bf16.mxu0 0
        %2359 = vmatpush1.bf16.msra.mxu0 0
        %2360 = vmatprep.subr.bf16.mxu0 0
        %2361 = vmatpush1.bf16.msra.mxu0 0
        %2362 = vmatprep.subr.bf16.mxu0 0
        %2363 = vmatpush1.bf16.msra.mxu0 0
        %2364 = vmatprep.subr.bf16.mxu0 0
        %2365 = vmatpush1.bf16.msra.mxu0 0
        %2366 = vmatprep.subr.bf16.mxu0 0
        %2367 = vmatpush1.bf16.msra.mxu0 0
        %2368 = vmatprep.subr.bf16.mxu0 0
        %2369 = vmatpush1.bf16.msra.mxu0 0
        %2370 = vmatprep.subr.bf16.mxu0 0
        %2371 = vmatpush1.bf16.msra.mxu0 0
        %2372 = vmatprep.subr.bf16.mxu0 0
        %2373 = vmatpush1.bf16.msra.mxu0 0
        %2374 = vmatprep.subr.bf16.mxu0 0
        %2375 = vmatpush1.bf16.msra.mxu0 0
        %2376 = vmatprep.subr.bf16.mxu0 0
        %2377 = vmatpush1.bf16.msra.mxu0 0
        %2378 = vmatprep.subr.bf16.mxu0 0
        %2379 = vmatpush1.bf16.msra.mxu0 0
        %2380 = vmatprep.mubr.bf16.mxu0 0
        %2381 = vmatmul.mubr.bf16.gmra.mrb[0].mxu0 %v658
        %v2382 = vpop.f32.mrb[0].mxu0
        %v2383 = vadd.f32 0.0, %v2382
        %v2384 = vpop.f32.mrb[0].mxu0
        %v2385 = vpop.f32.mrb[0].mxu0
        %v2386 = vadd.f32 0.0, %v2385
        %v2387 = vpop.f32.mrb[0].mxu0
        %2388 = vdwg.mxu0
        %2389 = vmatprep.subr.bf16.mxu0 0
        %2390 = vmatpush1.bf16.msra.mxu0 %v2219
        %2391 = vmatprep.subr.bf16.mxu0 0
        %2392 = vmatpush1.bf16.msra.mxu0 0
        %2393 = vmatprep.subr.bf16.mxu0 0
        %2394 = vmatpush1.bf16.msra.mxu0 0
        %2395 = vmatprep.subr.bf16.mxu0 0
        %2396 = vmatpush1.bf16.msra.mxu0 0
        %2397 = vmatprep.subr.bf16.mxu0 0
        %2398 = vmatpush1.bf16.msra.mxu0 0
        %2399 = vmatprep.subr.bf16.mxu0 0
        %2400 = vmatpush1.bf16.msra.mxu0 0
        %2401 = vmatprep.subr.bf16.mxu0 0
        %2402 = vmatpush1.bf16.msra.mxu0 0
        %2403 = vmatprep.subr.bf16.mxu0 0
        %2404 = vmatpush1.bf16.msra.mxu0 0
        %2405 = vmatprep.subr.bf16.mxu0 0
        %2406 = vmatpush1.bf16.msra.mxu0 0
        %2407 = vmatprep.subr.bf16.mxu0 0
        %2408 = vmatpush1.bf16.msra.mxu0 0
        %2409 = vmatprep.subr.bf16.mxu0 0
        %2410 = vmatpush1.bf16.msra.mxu0 0
        %2411 = vmatprep.subr.bf16.mxu0 0
        %2412 = vmatpush1.bf16.msra.mxu0 0
        %2413 = vmatprep.subr.bf16.mxu0 0
        %2414 = vmatpush1.bf16.msra.mxu0 0
        %2415 = vmatprep.subr.bf16.mxu0 0
        %2416 = vmatpush1.bf16.msra.mxu0 0
        %2417 = vmatprep.subr.bf16.mxu0 0
        %2418 = vmatpush1.bf16.msra.mxu0 0
        %2419 = vmatprep.subr.bf16.mxu0 0
        %2420 = vmatpush1.bf16.msra.mxu0 0
        %2421 = vmatprep.mubr.bf16.mxu0 0
        %2422 = vmatmul.mubr.bf16.gmra.mrb[0].mxu0 %v707
        %v2423 = vpop.f32.mrb[0].mxu0
        %v2424 = vadd.f32 0.0, %v2423
        %v2425 = vpop.f32.mrb[0].mxu0
        %v2426 = vpop.f32.mrb[0].mxu0
        %v2427 = vadd.f32 0.0, %v2426
        %v2428 = vpop.f32.mrb[0].mxu0
        %2429 = vdwg.mxu0
        %2430 = vmatprep.subr.bf16.mxu0 0
        %2431 = vmatpush1.bf16.msra.mxu0 %v2220
        %2432 = vmatprep.subr.bf16.mxu0 0
        %2433 = vmatpush1.bf16.msra.mxu0 0
        %2434 = vmatprep.subr.bf16.mxu0 0
        %2435 = vmatpush1.bf16.msra.mxu0 0
        %2436 = vmatprep.subr.bf16.mxu0 0
        %2437 = vmatpush1.bf16.msra.mxu0 0
        %2438 = vmatprep.subr.bf16.mxu0 0
        %2439 = vmatpush1.bf16.msra.mxu0 0
        %2440 = vmatprep.subr.bf16.mxu0 0
        %2441 = vmatpush1.bf16.msra.mxu0 0
        %2442 = vmatprep.subr.bf16.mxu0 0
        %2443 = vmatpush1.bf16.msra.mxu0 0
        %2444 = vmatprep.subr.bf16.mxu0 0
        %2445 = vmatpush1.bf16.msra.mxu0 0
        %2446 = vmatprep.subr.bf16.mxu0 0
        %2447 = vmatpush1.bf16.msra.mxu0 0
        %2448 = vmatprep.subr.bf16.mxu0 0
        %2449 = vmatpush1.bf16.msra.mxu0 0
        %2450 = vmatprep.subr.bf16.mxu0 0
        %2451 = vmatpush1.bf16.msra.mxu0 0
        %2452 = vmatprep.subr.bf16.mxu0 0
        %2453 = vmatpush1.bf16.msra.mxu0 0
        %2454 = vmatprep.subr.bf16.mxu0 0
        %2455 = vmatpush1.bf16.msra.mxu0 0
        %2456 = vmatprep.subr.bf16.mxu0 0
        %2457 = vmatpush1.bf16.msra.mxu0 0
        %2458 = vmatprep.subr.bf16.mxu0 0
        %2459 = vmatpush1.bf16.msra.mxu0 0
        %2460 = vmatprep.subr.bf16.mxu0 0
        %2461 = vmatpush1.bf16.msra.mxu0 0
        %2462 = vmatprep.mubr.bf16.mxu0 0
        %2463 = vmatmul.mubr.bf16.gmra.mrb[0].mxu0 %v756
        %v2464 = vpop.f32.mrb[0].mxu0
        %v2465 = vadd.f32 0.0, %v2464
        %v2466 = vpop.f32.mrb[0].mxu0
        %v2467 = vpop.f32.mrb[0].mxu0
        %v2468 = vadd.f32 0.0, %v2467
        %v2469 = vpop.f32.mrb[0].mxu0
        %2470 = vdwg.mxu0
        %2471 = vmatprep.subr.bf16.mxu0 0
        %2472 = vmatpush1.bf16.msra.mxu0 %v2221
        %2473 = vmatprep.subr.bf16.mxu0 0
        %2474 = vmatpush1.bf16.msra.mxu0 0
        %2475 = vmatprep.subr.bf16.mxu0 0
        %2476 = vmatpush1.bf16.msra.mxu0 0
        %2477 = vmatprep.subr.bf16.mxu0 0
        %2478 = vmatpush1.bf16.msra.mxu0 0
        %2479 = vmatprep.subr.bf16.mxu0 0
        %2480 = vmatpush1.bf16.msra.mxu0 0
        %2481 = vmatprep.subr.bf16.mxu0 0
        %2482 = vmatpush1.bf16.msra.mxu0 0
        %2483 = vmatprep.subr.bf16.mxu0 0
        %2484 = vmatpush1.bf16.msra.mxu0 0
        %2485 = vmatprep.subr.bf16.mxu0 0
        %2486 = vmatpush1.bf16.msra.mxu0 0
        %2487 = vmatprep.subr.bf16.mxu0 0
        %2488 = vmatpush1.bf16.msra.mxu0 0
        %2489 = vmatprep.subr.bf16.mxu0 0
        %2490 = vmatpush1.bf16.msra.mxu0 0
        %2491 = vmatprep.subr.bf16.mxu0 0
        %2492 = vmatpush1.bf16.msra.mxu0 0
        %2493 = vmatprep.subr.bf16.mxu0 0
        %2494 = vmatpush1.bf16.msra.mxu0 0
        %2495 = vmatprep.subr.bf16.mxu0 0
        %2496 = vmatpush1.bf16.msra.mxu0 0
        %2497 = vmatprep.subr.bf16.mxu0 0
        %2498 = vmatpush1.bf16.msra.mxu0 0
        %2499 = vmatprep.subr.bf16.mxu0 0
        %2500 = vmatpush1.bf16.msra.mxu0 0
        %2501 = vmatprep.subr.bf16.mxu0 0
        %2502 = vmatpush1.bf16.msra.mxu0 0
        %2503 = vmatprep.mubr.bf16.mxu0 0
        %2504 = vmatmul.mubr.bf16.gmra.mrb[0].mxu0 %v805
        %v2505 = vpop.f32.mrb[0].mxu0
        %v2506 = vadd.f32 0.0, %v2505
        %v2507 = vpop.f32.mrb[0].mxu0
        %v2508 = vpop.f32.mrb[0].mxu0
        %v2509 = vadd.f32 0.0, %v2508
        %v2510 = vpop.f32.mrb[0].mxu0
        %2511 = vdwg.mxu0
        %2512 = vmatprep.subr.bf16.mxu0 0
        %2513 = vmatpush1.bf16.msra.mxu0 %v2222
        %2514 = vmatprep.subr.bf16.mxu0 0
        %2515 = vmatpush1.bf16.msra.mxu0 0
        %2516 = vmatprep.subr.bf16.mxu0 0
        %2517 = vmatpush1.bf16.msra.mxu0 0
        %2518 = vmatprep.subr.bf16.mxu0 0
        %2519 = vmatpush1.bf16.msra.mxu0 0
        %2520 = vmatprep.subr.bf16.mxu0 0
        %2521 = vmatpush1.bf16.msra.mxu0 0
        %2522 = vmatprep.subr.bf16.mxu0 0
        %2523 = vmatpush1.bf16.msra.mxu0 0
        %2524 = vmatprep.subr.bf16.mxu0 0
        %2525 = vmatpush1.bf16.msra.mxu0 0
        %2526 = vmatprep.subr.bf16.mxu0 0
        %2527 = vmatpush1.bf16.msra.mxu0 0
        %2528 = vmatprep.subr.bf16.mxu0 0
        %2529 = vmatpush1.bf16.msra.mxu0 0
        %2530 = vmatprep.subr.bf16.mxu0 0
        %2531 = vmatpush1.bf16.msra.mxu0 0
        %2532 = vmatprep.subr.bf16.mxu0 0
        %2533 = vmatpush1.bf16.msra.mxu0 0
        %2534 = vmatprep.subr.bf16.mxu0 0
        %2535 = vmatpush1.bf16.msra.mxu0 0
        %2536 = vmatprep.subr.bf16.mxu0 0
        %2537 = vmatpush1.bf16.msra.mxu0 0
        %2538 = vmatprep.subr.bf16.mxu0 0
        %2539 = vmatpush1.bf16.msra.mxu0 0
        %2540 = vmatprep.subr.bf16.mxu0 0
        %2541 = vmatpush1.bf16.msra.mxu0 0
        %2542 = vmatprep.subr.bf16.mxu0 0
        %2543 = vmatpush1.bf16.msra.mxu0 0
        %2544 = vmatprep.mubr.bf16.mxu0 0
        %2545 = vmatmul.mubr.bf16.gmra.mrb[0].mxu0 %v854
        %v2546 = vpop.f32.mrb[0].mxu0
        %v2547 = vadd.f32 0.0, %v2546
        %v2548 = vpop.f32.mrb[0].mxu0
        %v2549 = vpop.f32.mrb[0].mxu0
        %v2550 = vadd.f32 0.0, %v2549
        %v2551 = vpop.f32.mrb[0].mxu0
        %2552 = vdwg.mxu0
        %2553 = vmatprep.subr.bf16.mxu0 0
        %2554 = vmatpush1.bf16.msra.mxu0 %v2223
        %2555 = vmatprep.subr.bf16.mxu0 0
        %2556 = vmatpush1.bf16.msra.mxu0 0
        %2557 = vmatprep.subr.bf16.mxu0 0
        %2558 = vmatpush1.bf16.msra.mxu0 0
        %2559 = vmatprep.subr.bf16.mxu0 0
        %2560 = vmatpush1.bf16.msra.mxu0 0
        %2561 = vmatprep.subr.bf16.mxu0 0
        %2562 = vmatpush1.bf16.msra.mxu0 0
        %2563 = vmatprep.subr.bf16.mxu0 0
        %2564 = vmatpush1.bf16.msra.mxu0 0
        %2565 = vmatprep.subr.bf16.mxu0 0
        %2566 = vmatpush1.bf16.msra.mxu0 0
        %2567 = vmatprep.subr.bf16.mxu0 0
        %2568 = vmatpush1.bf16.msra.mxu0 0
        %2569 = vmatprep.subr.bf16.mxu0 0
        %2570 = vmatpush1.bf16.msra.mxu0 0
        %2571 = vmatprep.subr.bf16.mxu0 0
        %2572 = vmatpush1.bf16.msra.mxu0 0
        %2573 = vmatprep.subr.bf16.mxu0 0
        %2574 = vmatpush1.bf16.msra.mxu0 0
        %2575 = vmatprep.subr.bf16.mxu0 0
        %2576 = vmatpush1.bf16.msra.mxu0 0
        %2577 = vmatprep.subr.bf16.mxu0 0
        %2578 = vmatpush1.bf16.msra.mxu0 0
        %2579 = vmatprep.subr.bf16.mxu0 0
        %2580 = vmatpush1.bf16.msra.mxu0 0
        %2581 = vmatprep.subr.bf16.mxu0 0
        %2582 = vmatpush1.bf16.msra.mxu0 0
        %2583 = vmatprep.subr.bf16.mxu0 0
        %2584 = vmatpush1.bf16.msra.mxu0 0
        %2585 = vmatprep.mubr.bf16.mxu0 0
        %2586 = vmatmul.mubr.bf16.gmra.mrb[0].mxu0 %v903
        %v2587 = vpop.f32.mrb[0].mxu0
        %v2588 = vadd.f32 0.0, %v2587
        %v2589 = vpop.f32.mrb[0].mxu0
        %v2590 = vpop.f32.mrb[0].mxu0
        %v2591 = vadd.f32 0.0, %v2590
        %v2592 = vpop.f32.mrb[0].mxu0
        %2593 = vdwg.mxu0
        %2594 = vmatprep.subr.bf16.mxu0 0
        %2595 = vmatpush1.bf16.msra.mxu0 %v2224
        %2596 = vmatprep.subr.bf16.mxu0 0
        %2597 = vmatpush1.bf16.msra.mxu0 0
        %2598 = vmatprep.subr.bf16.mxu0 0
        %2599 = vmatpush1.bf16.msra.mxu0 0
        %2600 = vmatprep.subr.bf16.mxu0 0
        %2601 = vmatpush1.bf16.msra.mxu0 0
        %2602 = vmatprep.subr.bf16.mxu0 0
        %2603 = vmatpush1.bf16.msra.mxu0 0
        %2604 = vmatprep.subr.bf16.mxu0 0
        %2605 = vmatpush1.bf16.msra.mxu0 0
        %2606 = vmatprep.subr.bf16.mxu0 0
        %2607 = vmatpush1.bf16.msra.mxu0 0
        %2608 = vmatprep.subr.bf16.mxu0 0
        %2609 = vmatpush1.bf16.msra.mxu0 0
        %2610 = vmatprep.subr.bf16.mxu0 0
        %2611 = vmatpush1.bf16.msra.mxu0 0
        %2612 = vmatprep.subr.bf16.mxu0 0
        %2613 = vmatpush1.bf16.msra.mxu0 0
        %2614 = vmatprep.subr.bf16.mxu0 0
        %2615 = vmatpush1.bf16.msra.mxu0 0
        %2616 = vmatprep.subr.bf16.mxu0 0
        %2617 = vmatpush1.bf16.msra.mxu0 0
        %2618 = vmatprep.subr.bf16.mxu0 0
        %2619 = vmatpush1.bf16.msra.mxu0 0
        %2620 = vmatprep.subr.bf16.mxu0 0
        %2621 = vmatpush1.bf16.msra.mxu0 0
        %2622 = vmatprep.subr.bf16.mxu0 0
        %2623 = vmatpush1.bf16.msra.mxu0 0
        %2624 = vmatprep.subr.bf16.mxu0 0
        %2625 = vmatpush1.bf16.msra.mxu0 0
        %2626 = vmatprep.mubr.bf16.mxu0 0
        %2627 = vmatmul.mubr.bf16.gmra.mrb[0].mxu0 %v952
        %v2628 = vpop.f32.mrb[0].mxu0
        %v2629 = vadd.f32 0.0, %v2628
        %v2630 = vpop.f32.mrb[0].mxu0
        %v2631 = vpop.f32.mrb[0].mxu0
        %v2632 = vadd.f32 0.0, %v2631
        %v2633 = vpop.f32.mrb[0].mxu0
        %2634 = vdwg.mxu0
        %v2635 = vmul.f32 %v1618, %v2260
        %v2636 = vmul.f32 %v1623, %v2263
        %v2637 = vmul.f32 %v1628, %v2301
        %v2638 = vmul.f32 %v1633, %v2304
        %v2639 = vmul.f32 %v1638, %v2342
        %v2640 = vmul.f32 %v1643, %v2345
        %v2641 = vmul.f32 %v1648, %v2383
        %v2642 = vmul.f32 %v1653, %v2386
        %v2643 = vmul.f32 %v1658, %v2424
        %v2644 = vmul.f32 %v1663, %v2427
        %v2645 = vmul.f32 %v1668, %v2465
        %v2646 = vmul.f32 %v1673, %v2468
        %v2647 = vmul.f32 %v1678, %v2506
        %v2648 = vmul.f32 %v1683, %v2509
        %v2649 = vmul.f32 %v1688, %v2547
        %v2650 = vmul.f32 %v1693, %v2550
        %v2651 = vmul.f32 %v1698, %v2588
        %v2652 = vmul.f32 %v1703, %v2591
        %v2653 = vmul.f32 %v1708, %v2629
        %v2654 = vmul.f32 %v1713, %v2632
        %2675 = vrot.lane.b32.xlu0 %v2175, 8
        %v2676 = vpop.permute.xlu0 %2675
        %2677 = vrot.lane.b32.xlu0 %v2176, 8
        %v2678 = vpop.permute.xlu0 %2677
        %2679 = vrot.lane.b32.xlu0 %v2177, 8
        %v2680 = vpop.permute.xlu0 %2679
        %2681 = vrot.lane.b32.xlu0 %v2178, 8
        %v2682 = vpop.permute.xlu0 %2681
        %2683 = vrot.lane.b32.xlu0 %v2179, 8
        %v2684 = vpop.permute.xlu0 %2683
        %2685 = vrot.lane.b32.xlu0 %v2180, 8
        %v2686 = vpop.permute.xlu0 %2685
        %2687 = vrot.lane.b32.xlu0 %v2181, 8
        %v2688 = vpop.permute.xlu0 %2687
        %2689 = vrot.lane.b32.xlu0 %v2182, 8
        %v2690 = vpop.permute.xlu0 %2689
        %2691 = vrot.lane.b32.xlu0 %v2183, 8
        %v2692 = vpop.permute.xlu0 %2691
        %2693 = vrot.lane.b32.xlu0 %v2184, 8
        %v2694 = vpop.permute.xlu0 %2693
        %2695 = vrot.lane.b32.xlu0 %v2185, 8
        %v2696 = vpop.permute.xlu0 %2695
        %2697 = vrot.lane.b32.xlu0 %v2186, 8
        %v2698 = vpop.permute.xlu0 %2697
        %2699 = vrot.lane.b32.xlu0 %v2187, 8
        %v2700 = vpop.permute.xlu0 %2699
        %2701 = vrot.lane.b32.xlu0 %v2188, 8
        %v2702 = vpop.permute.xlu0 %2701
        %2703 = vrot.lane.b32.xlu0 %v2189, 8
        %v2704 = vpop.permute.xlu0 %2703
        %2705 = vrot.lane.b32.xlu0 %v2190, 8
        %v2706 = vpop.permute.xlu0 %2705
        %2707 = vrot.lane.b32.xlu0 %v2191, 8
        %v2708 = vpop.permute.xlu0 %2707
        %2709 = vrot.lane.b32.xlu0 %v2192, 8
        %v2710 = vpop.permute.xlu0 %2709
        %2711 = vrot.lane.b32.xlu0 %v2193, 8
        %v2712 = vpop.permute.xlu0 %2711
        %2713 = vrot.lane.b32.xlu0 %v2194, 8
        %v2714 = vpop.permute.xlu0 %2713
        %2755 = vrot.lane.b32.xlu0 %v2635, 16
        %v2756 = vpop.permute.xlu0 %2755
        %2757 = vrot.lane.b32.xlu0 %v2636, 16
        %v2758 = vpop.permute.xlu0 %2757
        %2759 = vrot.lane.b32.xlu0 %v2637, 16
        %v2760 = vpop.permute.xlu0 %2759
        %2761 = vrot.lane.b32.xlu0 %v2638, 16
        %v2762 = vpop.permute.xlu0 %2761
        %2763 = vrot.lane.b32.xlu0 %v2639, 16
        %v2764 = vpop.permute.xlu0 %2763
        %2765 = vrot.lane.b32.xlu0 %v2640, 16
        %v2766 = vpop.permute.xlu0 %2765
        %2767 = vrot.lane.b32.xlu0 %v2641, 16
        %v2768 = vpop.permute.xlu0 %2767
        %2769 = vrot.lane.b32.xlu0 %v2642, 16
        %v2770 = vpop.permute.xlu0 %2769
        %2771 = vrot.lane.b32.xlu0 %v2643, 16
        %v2772 = vpop.permute.xlu0 %2771
        %2773 = vrot.lane.b32.xlu0 %v2644, 16
        %v2774 = vpop.permute.xlu0 %2773
        %2775 = vrot.lane.b32.xlu0 %v2645, 16
        %v2776 = vpop.permute.xlu0 %2775
        %2777 = vrot.lane.b32.xlu0 %v2646, 16
        %v2778 = vpop.permute.xlu0 %2777
        %2779 = vrot.lane.b32.xlu0 %v2647, 16
        %v2780 = vpop.permute.xlu0 %2779
        %2781 = vrot.lane.b32.xlu0 %v2648, 16
        %v2782 = vpop.permute.xlu0 %2781
        %2783 = vrot.lane.b32.xlu0 %v2649, 16
        %v2784 = vpop.permute.xlu0 %2783
        %2785 = vrot.lane.b32.xlu0 %v2650, 16
        %v2786 = vpop.permute.xlu0 %2785
        %2787 = vrot.lane.b32.xlu0 %v2651, 16
        %v2788 = vpop.permute.xlu0 %2787
        %2789 = vrot.lane.b32.xlu0 %v2652, 16
        %v2790 = vpop.permute.xlu0 %2789
        %2791 = vrot.lane.b32.xlu0 %v2653, 16
        %v2792 = vpop.permute.xlu0 %2791
        %2793 = vrot.lane.b32.xlu0 %v2654, 16
        %v2794 = vpop.permute.xlu0 %2793
        %vm2815 = vcmask 64512
        %v2816 = vsel %vm2815, %v1715, %v2676
        %v2817 = vsel %vm2815, %v1716, %v2678
        %v2818 = vsel %vm2815, %v1717, %v2680
        %v2819 = vsel %vm2815, %v1718, %v2682
        %v2820 = vsel %vm2815, %v1719, %v2684
        %v2821 = vsel %vm2815, %v1720, %v2686
        %v2822 = vsel %vm2815, %v1721, %v2688
        %v2823 = vsel %vm2815, %v1722, %v2690
        %v2824 = vsel %vm2815, %v1723, %v2692
        %v2825 = vsel %vm2815, %v1724, %v2694
        %v2826 = vsel %vm2815, %v1725, %v2696
        %v2827 = vsel %vm2815, %v1726, %v2698
        %v2828 = vsel %vm2815, %v1727, %v2700
        %v2829 = vsel %vm2815, %v1728, %v2702
        %v2830 = vsel %vm2815, %v1729, %v2704
        %v2831 = vsel %vm2815, %v1730, %v2706
        %v2832 = vsel %vm2815, %v1731, %v2708
        %v2833 = vsel %vm2815, %v1732, %v2710
        %v2834 = vsel %vm2815, %v1733, %v2712
        %v2835 = vsel %vm2815, %v1734, %v2714
        %v2836 = vsel %vm254, %v2816, %v2756
        %v2837 = vsel %vm254, %v2817, %v2758
        %v2838 = vsel %vm254, %v2818, %v2760
        %v2839 = vsel %vm254, %v2819, %v2762
        %v2840 = vsel %vm254, %v2820, %v2764
        %v2841 = vsel %vm254, %v2821, %v2766
        %v2842 = vsel %vm254, %v2822, %v2768
        %v2843 = vsel %vm254, %v2823, %v2770
        %v2844 = vsel %vm254, %v2824, %v2772
        %v2845 = vsel %vm254, %v2825, %v2774
        %v2846 = vsel %vm254, %v2826, %v2776
        %v2847 = vsel %vm254, %v2827, %v2778
        %v2848 = vsel %vm254, %v2828, %v2780
        %v2849 = vsel %vm254, %v2829, %v2782
        %v2850 = vsel %vm254, %v2830, %v2784
        %v2851 = vsel %vm254, %v2831, %v2786
        %v2852 = vsel %vm254, %v2832, %v2788
        %v2853 = vsel %vm254, %v2833, %v2790
        %v2854 = vsel %vm254, %v2834, %v2792
        %v2855 = vsel %vm254, %v2835, %v2794
        %v2856 = vpack.c.bf16 %v2837, %v2836
        %v2857 = vpack.c.bf16 %v2839, %v2838
        %v2858 = vpack.c.bf16 %v2841, %v2840
        %v2859 = vpack.c.bf16 %v2843, %v2842
        %v2860 = vpack.c.bf16 %v2845, %v2844
        %v2861 = vpack.c.bf16 %v2847, %v2846
        %v2862 = vpack.c.bf16 %v2849, %v2848
        %v2863 = vpack.c.bf16 %v2851, %v2850
        %v2864 = vpack.c.bf16 %v2853, %v2852
        %v2865 = vpack.c.bf16 %v2855, %v2854
        %v2866 = vpack.c.bf16 %v215, %v214
        %v2867 = vpack.c.bf16 %v217, %v216
        %v2868 = vpack.c.bf16 %v219, %v218
        %v2869 = vpack.c.bf16 %v221, %v220
        %v2870 = vpack.c.bf16 %v223, %v222
        %v2871 = vpack.c.bf16 %v225, %v224
        %v2872 = vpack.c.bf16 %v227, %v226
        %v2873 = vpack.c.bf16 %v229, %v228
        %v2874 = vpack.c.bf16 %v231, %v230
        %v2875 = vpack.c.bf16 %v233, %v232
        %2876 = vxpose.xlu0.c.b16.start [1/8] %v2866, 128
        %2877 = vxpose.xlu0.c.b16.cont [2/8] 0, 128
        %2878 = vxpose.xlu0.c.b16.cont [3/8] 0, 128
        %2879 = vxpose.xlu0.c.b16.cont [4/8] 0, 128
        %2880 = vxpose.xlu0.c.b16.cont [5/8] 0, 128
        %2881 = vxpose.xlu0.c.b16.cont [6/8] 0, 128
        %2882 = vxpose.xlu0.c.b16.cont [7/8] 0, 128
        %2883 = vxpose.xlu0.c.b16.end [8/8] 0, 128
        %v2884 = vpop.trf.xlu0
        %v2885 = vpop.trf.xlu0
        %v2886 = vpop.trf.xlu0
        %v2887 = vpop.trf.xlu0
        %v2888 = vpop.trf.xlu0
        %v2889 = vpop.trf.xlu0
        %v2890 = vpop.trf.xlu0
        %v2891 = vpop.trf.xlu0
        %v2893 = vsel %vm254, %v2884, 0
        %2895 = vmatprep.subr.bf16.mxu0 0
        %2896 = vmatpush1.bf16.msra.mxu0 %v2856
        %2897 = vmatprep.subr.bf16.mxu0 0
        %2898 = vmatpush1.bf16.msra.mxu0 0
        %2899 = vmatprep.subr.bf16.mxu0 0
        %2900 = vmatpush1.bf16.msra.mxu0 0
        %2901 = vmatprep.subr.bf16.mxu0 0
        %2902 = vmatpush1.bf16.msra.mxu0 0
        %2903 = vmatprep.subr.bf16.mxu0 0
        %2904 = vmatpush1.bf16.msra.mxu0 0
        %2905 = vmatprep.subr.bf16.mxu0 0
        %2906 = vmatpush1.bf16.msra.mxu0 0
        %2907 = vmatprep.subr.bf16.mxu0 0
        %2908 = vmatpush1.bf16.msra.mxu0 0
        %2909 = vmatprep.subr.bf16.mxu0 0
        %2910 = vmatpush1.bf16.msra.mxu0 0
        %2911 = vmatprep.subr.bf16.mxu0 0
        %2912 = vmatpush1.bf16.msra.mxu0 0
        %2913 = vmatprep.subr.bf16.mxu0 0
        %2914 = vmatpush1.bf16.msra.mxu0 0
        %2915 = vmatprep.subr.bf16.mxu0 0
        %2916 = vmatpush1.bf16.msra.mxu0 0
        %2917 = vmatprep.subr.bf16.mxu0 0
        %2918 = vmatpush1.bf16.msra.mxu0 0
        %2919 = vmatprep.subr.bf16.mxu0 0
        %2920 = vmatpush1.bf16.msra.mxu0 0
        %2921 = vmatprep.subr.bf16.mxu0 0
        %2922 = vmatpush1.bf16.msra.mxu0 0
        %2923 = vmatprep.subr.bf16.mxu0 0
        %2924 = vmatpush1.bf16.msra.mxu0 0
        %2925 = vmatprep.subr.bf16.mxu0 0
        %2926 = vmatpush1.bf16.msra.mxu0 0
        %2927 = vmatprep.mubr.bf16.mxu0 0
        %2928 = vmatmul.mubr.bf16.gmra.mrb[0].mxu0 %v2893
        %v2929 = vpop.f32.mrb[0].mxu0
        %v2930 = vadd.f32 0.0, %v2929
        %v2931 = vpop.f32.mrb[0].mxu0
        %v2932 = vpop.f32.mrb[0].mxu0
        %v2933 = vpop.f32.mrb[0].mxu0
        %2934 = vdwg.mxu0
        %2935 = vxpose.xlu0.c.b16.start [1/8] %v2867, 128
        %2936 = vxpose.xlu0.c.b16.cont [2/8] 0, 128
        %2937 = vxpose.xlu0.c.b16.cont [3/8] 0, 128
        %2938 = vxpose.xlu0.c.b16.cont [4/8] 0, 128
        %2939 = vxpose.xlu0.c.b16.cont [5/8] 0, 128
        %2940 = vxpose.xlu0.c.b16.cont [6/8] 0, 128
        %2941 = vxpose.xlu0.c.b16.cont [7/8] 0, 128
        %2942 = vxpose.xlu0.c.b16.end [8/8] 0, 128
        %v2943 = vpop.trf.xlu0
        %v2944 = vpop.trf.xlu0
        %v2945 = vpop.trf.xlu0
        %v2946 = vpop.trf.xlu0
        %v2947 = vpop.trf.xlu0
        %v2948 = vpop.trf.xlu0
        %v2949 = vpop.trf.xlu0
        %v2950 = vpop.trf.xlu0
        %v2952 = vsel %vm254, %v2943, 0
        %2954 = vmatprep.subr.bf16.mxu0 0
        %2955 = vmatpush1.bf16.msra.mxu0 %v2857
        %2956 = vmatprep.subr.bf16.mxu0 0
        %2957 = vmatpush1.bf16.msra.mxu0 0
        %2958 = vmatprep.subr.bf16.mxu0 0
        %2959 = vmatpush1.bf16.msra.mxu0 0
        %2960 = vmatprep.subr.bf16.mxu0 0
        %2961 = vmatpush1.bf16.msra.mxu0 0
        %2962 = vmatprep.subr.bf16.mxu0 0
        %2963 = vmatpush1.bf16.msra.mxu0 0
        %2964 = vmatprep.subr.bf16.mxu0 0
        %2965 = vmatpush1.bf16.msra.mxu0 0
        %2966 = vmatprep.subr.bf16.mxu0 0
        %2967 = vmatpush1.bf16.msra.mxu0 0
        %2968 = vmatprep.subr.bf16.mxu0 0
        %2969 = vmatpush1.bf16.msra.mxu0 0
        %2970 = vmatprep.subr.bf16.mxu0 0
        %2971 = vmatpush1.bf16.msra.mxu0 0
        %2972 = vmatprep.subr.bf16.mxu0 0
        %2973 = vmatpush1.bf16.msra.mxu0 0
        %2974 = vmatprep.subr.bf16.mxu0 0
        %2975 = vmatpush1.bf16.msra.mxu0 0
        %2976 = vmatprep.subr.bf16.mxu0 0
        %2977 = vmatpush1.bf16.msra.mxu0 0
        %2978 = vmatprep.subr.bf16.mxu0 0
        %2979 = vmatpush1.bf16.msra.mxu0 0
        %2980 = vmatprep.subr.bf16.mxu0 0
        %2981 = vmatpush1.bf16.msra.mxu0 0
        %2982 = vmatprep.subr.bf16.mxu0 0
        %2983 = vmatpush1.bf16.msra.mxu0 0
        %2984 = vmatprep.subr.bf16.mxu0 0
        %2985 = vmatpush1.bf16.msra.mxu0 0
        %2986 = vmatprep.mubr.bf16.mxu0 0
        %2987 = vmatmul.mubr.bf16.gmra.mrb[0].mxu0 %v2952
        %v2988 = vpop.f32.mrb[0].mxu0
        %v2989 = vadd.f32 0.0, %v2988
        %v2990 = vpop.f32.mrb[0].mxu0
        %v2991 = vpop.f32.mrb[0].mxu0
        %v2992 = vpop.f32.mrb[0].mxu0
        %2993 = vdwg.mxu0
        %2994 = vxpose.xlu0.c.b16.start [1/8] %v2868, 128
        %2995 = vxpose.xlu0.c.b16.cont [2/8] 0, 128
        %2996 = vxpose.xlu0.c.b16.cont [3/8] 0, 128
        %2997 = vxpose.xlu0.c.b16.cont [4/8] 0, 128
        %2998 = vxpose.xlu0.c.b16.cont [5/8] 0, 128
        %2999 = vxpose.xlu0.c.b16.cont [6/8] 0, 128
        %3000 = vxpose.xlu0.c.b16.cont [7/8] 0, 128
        %3001 = vxpose.xlu0.c.b16.end [8/8] 0, 128
        %v3002 = vpop.trf.xlu0
        %v3003 = vpop.trf.xlu0
        %v3004 = vpop.trf.xlu0
        %v3005 = vpop.trf.xlu0
        %v3006 = vpop.trf.xlu0
        %v3007 = vpop.trf.xlu0
        %v3008 = vpop.trf.xlu0
        %v3009 = vpop.trf.xlu0
        %v3011 = vsel %vm254, %v3002, 0
        %3013 = vmatprep.subr.bf16.mxu0 0
        %3014 = vmatpush1.bf16.msra.mxu0 %v2858
        %3015 = vmatprep.subr.bf16.mxu0 0
        %3016 = vmatpush1.bf16.msra.mxu0 0
        %3017 = vmatprep.subr.bf16.mxu0 0
        %3018 = vmatpush1.bf16.msra.mxu0 0
        %3019 = vmatprep.subr.bf16.mxu0 0
        %3020 = vmatpush1.bf16.msra.mxu0 0
        %3021 = vmatprep.subr.bf16.mxu0 0
        %3022 = vmatpush1.bf16.msra.mxu0 0
        %3023 = vmatprep.subr.bf16.mxu0 0
        %3024 = vmatpush1.bf16.msra.mxu0 0
        %3025 = vmatprep.subr.bf16.mxu0 0
        %3026 = vmatpush1.bf16.msra.mxu0 0
        %3027 = vmatprep.subr.bf16.mxu0 0
        %3028 = vmatpush1.bf16.msra.mxu0 0
        %3029 = vmatprep.subr.bf16.mxu0 0
        %3030 = vmatpush1.bf16.msra.mxu0 0
        %3031 = vmatprep.subr.bf16.mxu0 0
        %3032 = vmatpush1.bf16.msra.mxu0 0
        %3033 = vmatprep.subr.bf16.mxu0 0
        %3034 = vmatpush1.bf16.msra.mxu0 0
        %3035 = vmatprep.subr.bf16.mxu0 0
        %3036 = vmatpush1.bf16.msra.mxu0 0
        %3037 = vmatprep.subr.bf16.mxu0 0
        %3038 = vmatpush1.bf16.msra.mxu0 0
        %3039 = vmatprep.subr.bf16.mxu0 0
        %3040 = vmatpush1.bf16.msra.mxu0 0
        %3041 = vmatprep.subr.bf16.mxu0 0
        %3042 = vmatpush1.bf16.msra.mxu0 0
        %3043 = vmatprep.subr.bf16.mxu0 0
        %3044 = vmatpush1.bf16.msra.mxu0 0
        %3045 = vmatprep.mubr.bf16.mxu0 0
        %3046 = vmatmul.mubr.bf16.gmra.mrb[0].mxu0 %v3011
        %v3047 = vpop.f32.mrb[0].mxu0
        %v3048 = vadd.f32 0.0, %v3047
        %v3049 = vpop.f32.mrb[0].mxu0
        %v3050 = vpop.f32.mrb[0].mxu0
        %v3051 = vpop.f32.mrb[0].mxu0
        %3052 = vdwg.mxu0
        %3053 = vxpose.xlu0.c.b16.start [1/8] %v2869, 128
        %3054 = vxpose.xlu0.c.b16.cont [2/8] 0, 128
        %3055 = vxpose.xlu0.c.b16.cont [3/8] 0, 128
        %3056 = vxpose.xlu0.c.b16.cont [4/8] 0, 128
        %3057 = vxpose.xlu0.c.b16.cont [5/8] 0, 128
        %3058 = vxpose.xlu0.c.b16.cont [6/8] 0, 128
        %3059 = vxpose.xlu0.c.b16.cont [7/8] 0, 128
        %3060 = vxpose.xlu0.c.b16.end [8/8] 0, 128
        %v3061 = vpop.trf.xlu0
        %v3062 = vpop.trf.xlu0
        %v3063 = vpop.trf.xlu0
        %v3064 = vpop.trf.xlu0
        %v3065 = vpop.trf.xlu0
        %v3066 = vpop.trf.xlu0
        %v3067 = vpop.trf.xlu0
        %v3068 = vpop.trf.xlu0
        %v3070 = vsel %vm254, %v3061, 0
        %3072 = vmatprep.subr.bf16.mxu0 0
        %3073 = vmatpush1.bf16.msra.mxu0 %v2859
        %3074 = vmatprep.subr.bf16.mxu0 0
        %3075 = vmatpush1.bf16.msra.mxu0 0
        %3076 = vmatprep.subr.bf16.mxu0 0
        %3077 = vmatpush1.bf16.msra.mxu0 0
        %3078 = vmatprep.subr.bf16.mxu0 0
        %3079 = vmatpush1.bf16.msra.mxu0 0
        %3080 = vmatprep.subr.bf16.mxu0 0
        %3081 = vmatpush1.bf16.msra.mxu0 0
        %3082 = vmatprep.subr.bf16.mxu0 0
        %3083 = vmatpush1.bf16.msra.mxu0 0
        %3084 = vmatprep.subr.bf16.mxu0 0
        %3085 = vmatpush1.bf16.msra.mxu0 0
        %3086 = vmatprep.subr.bf16.mxu0 0
        %3087 = vmatpush1.bf16.msra.mxu0 0
        %3088 = vmatprep.subr.bf16.mxu0 0
        %3089 = vmatpush1.bf16.msra.mxu0 0
        %3090 = vmatprep.subr.bf16.mxu0 0
        %3091 = vmatpush1.bf16.msra.mxu0 0
        %3092 = vmatprep.subr.bf16.mxu0 0
        %3093 = vmatpush1.bf16.msra.mxu0 0
        %3094 = vmatprep.subr.bf16.mxu0 0
        %3095 = vmatpush1.bf16.msra.mxu0 0
        %3096 = vmatprep.subr.bf16.mxu0 0
        %3097 = vmatpush1.bf16.msra.mxu0 0
        %3098 = vmatprep.subr.bf16.mxu0 0
        %3099 = vmatpush1.bf16.msra.mxu0 0
        %3100 = vmatprep.subr.bf16.mxu0 0
        %3101 = vmatpush1.bf16.msra.mxu0 0
        %3102 = vmatprep.subr.bf16.mxu0 0
        %3103 = vmatpush1.bf16.msra.mxu0 0
        %3104 = vmatprep.mubr.bf16.mxu0 0
        %3105 = vmatmul.mubr.bf16.gmra.mrb[0].mxu0 %v3070
        %v3106 = vpop.f32.mrb[0].mxu0
        %v3107 = vadd.f32 0.0, %v3106
        %v3108 = vpop.f32.mrb[0].mxu0
        %v3109 = vpop.f32.mrb[0].mxu0
        %v3110 = vpop.f32.mrb[0].mxu0
        %3111 = vdwg.mxu0
        %3112 = vxpose.xlu0.c.b16.start [1/8] %v2870, 128
        %3113 = vxpose.xlu0.c.b16.cont [2/8] 0, 128
        %3114 = vxpose.xlu0.c.b16.cont [3/8] 0, 128
        %3115 = vxpose.xlu0.c.b16.cont [4/8] 0, 128
        %3116 = vxpose.xlu0.c.b16.cont [5/8] 0, 128
        %3117 = vxpose.xlu0.c.b16.cont [6/8] 0, 128
        %3118 = vxpose.xlu0.c.b16.cont [7/8] 0, 128
        %3119 = vxpose.xlu0.c.b16.end [8/8] 0, 128
        %v3120 = vpop.trf.xlu0
        %v3121 = vpop.trf.xlu0
        %v3122 = vpop.trf.xlu0
        %v3123 = vpop.trf.xlu0
        %v3124 = vpop.trf.xlu0
        %v3125 = vpop.trf.xlu0
        %v3126 = vpop.trf.xlu0
        %v3127 = vpop.trf.xlu0
        %v3129 = vsel %vm254, %v3120, 0
        %3131 = vmatprep.subr.bf16.mxu0 0
        %3132 = vmatpush1.bf16.msra.mxu0 %v2860
        %3133 = vmatprep.subr.bf16.mxu0 0
        %3134 = vmatpush1.bf16.msra.mxu0 0
        %3135 = vmatprep.subr.bf16.mxu0 0
        %3136 = vmatpush1.bf16.msra.mxu0 0
        %3137 = vmatprep.subr.bf16.mxu0 0
        %3138 = vmatpush1.bf16.msra.mxu0 0
        %3139 = vmatprep.subr.bf16.mxu0 0
        %3140 = vmatpush1.bf16.msra.mxu0 0
        %3141 = vmatprep.subr.bf16.mxu0 0
        %3142 = vmatpush1.bf16.msra.mxu0 0
        %3143 = vmatprep.subr.bf16.mxu0 0
        %3144 = vmatpush1.bf16.msra.mxu0 0
        %3145 = vmatprep.subr.bf16.mxu0 0
        %3146 = vmatpush1.bf16.msra.mxu0 0
        %3147 = vmatprep.subr.bf16.mxu0 0
        %3148 = vmatpush1.bf16.msra.mxu0 0
        %3149 = vmatprep.subr.bf16.mxu0 0
        %3150 = vmatpush1.bf16.msra.mxu0 0
        %3151 = vmatprep.subr.bf16.mxu0 0
        %3152 = vmatpush1.bf16.msra.mxu0 0
        %3153 = vmatprep.subr.bf16.mxu0 0
        %3154 = vmatpush1.bf16.msra.mxu0 0
        %3155 = vmatprep.subr.bf16.mxu0 0
        %3156 = vmatpush1.bf16.msra.mxu0 0
        %3157 = vmatprep.subr.bf16.mxu0 0
        %3158 = vmatpush1.bf16.msra.mxu0 0
        %3159 = vmatprep.subr.bf16.mxu0 0
        %3160 = vmatpush1.bf16.msra.mxu0 0
        %3161 = vmatprep.subr.bf16.mxu0 0
        %3162 = vmatpush1.bf16.msra.mxu0 0
        %3163 = vmatprep.mubr.bf16.mxu0 0
        %3164 = vmatmul.mubr.bf16.gmra.mrb[0].mxu0 %v3129
        %v3165 = vpop.f32.mrb[0].mxu0
        %v3166 = vadd.f32 0.0, %v3165
        %v3167 = vpop.f32.mrb[0].mxu0
        %v3168 = vpop.f32.mrb[0].mxu0
        %v3169 = vpop.f32.mrb[0].mxu0
        %3170 = vdwg.mxu0
        %3171 = vxpose.xlu0.c.b16.start [1/8] %v2871, 128
        %3172 = vxpose.xlu0.c.b16.cont [2/8] 0, 128
        %3173 = vxpose.xlu0.c.b16.cont [3/8] 0, 128
        %3174 = vxpose.xlu0.c.b16.cont [4/8] 0, 128
        %3175 = vxpose.xlu0.c.b16.cont [5/8] 0, 128
        %3176 = vxpose.xlu0.c.b16.cont [6/8] 0, 128
        %3177 = vxpose.xlu0.c.b16.cont [7/8] 0, 128
        %3178 = vxpose.xlu0.c.b16.end [8/8] 0, 128
        %v3179 = vpop.trf.xlu0
        %v3180 = vpop.trf.xlu0
        %v3181 = vpop.trf.xlu0
        %v3182 = vpop.trf.xlu0
        %v3183 = vpop.trf.xlu0
        %v3184 = vpop.trf.xlu0
        %v3185 = vpop.trf.xlu0
        %v3186 = vpop.trf.xlu0
        %v3188 = vsel %vm254, %v3179, 0
        %3190 = vmatprep.subr.bf16.mxu0 0
        %3191 = vmatpush1.bf16.msra.mxu0 %v2861
        %3192 = vmatprep.subr.bf16.mxu0 0
        %3193 = vmatpush1.bf16.msra.mxu0 0
        %3194 = vmatprep.subr.bf16.mxu0 0
        %3195 = vmatpush1.bf16.msra.mxu0 0
        %3196 = vmatprep.subr.bf16.mxu0 0
        %3197 = vmatpush1.bf16.msra.mxu0 0
        %3198 = vmatprep.subr.bf16.mxu0 0
        %3199 = vmatpush1.bf16.msra.mxu0 0
        %3200 = vmatprep.subr.bf16.mxu0 0
        %3201 = vmatpush1.bf16.msra.mxu0 0
        %3202 = vmatprep.subr.bf16.mxu0 0
        %3203 = vmatpush1.bf16.msra.mxu0 0
        %3204 = vmatprep.subr.bf16.mxu0 0
        %3205 = vmatpush1.bf16.msra.mxu0 0
        %3206 = vmatprep.subr.bf16.mxu0 0
        %3207 = vmatpush1.bf16.msra.mxu0 0
        %3208 = vmatprep.subr.bf16.mxu0 0
        %3209 = vmatpush1.bf16.msra.mxu0 0
        %3210 = vmatprep.subr.bf16.mxu0 0
        %3211 = vmatpush1.bf16.msra.mxu0 0
        %3212 = vmatprep.subr.bf16.mxu0 0
        %3213 = vmatpush1.bf16.msra.mxu0 0
        %3214 = vmatprep.subr.bf16.mxu0 0
        %3215 = vmatpush1.bf16.msra.mxu0 0
        %3216 = vmatprep.subr.bf16.mxu0 0
        %3217 = vmatpush1.bf16.msra.mxu0 0
        %3218 = vmatprep.subr.bf16.mxu0 0
        %3219 = vmatpush1.bf16.msra.mxu0 0
        %3220 = vmatprep.subr.bf16.mxu0 0
        %3221 = vmatpush1.bf16.msra.mxu0 0
        %3222 = vmatprep.mubr.bf16.mxu0 0
        %3223 = vmatmul.mubr.bf16.gmra.mrb[0].mxu0 %v3188
        %v3224 = vpop.f32.mrb[0].mxu0
        %v3225 = vadd.f32 0.0, %v3224
        %v3226 = vpop.f32.mrb[0].mxu0
        %v3227 = vpop.f32.mrb[0].mxu0
        %v3228 = vpop.f32.mrb[0].mxu0
        %3229 = vdwg.mxu0
        %3230 = vxpose.xlu0.c.b16.start [1/8] %v2872, 128
        %3231 = vxpose.xlu0.c.b16.cont [2/8] 0, 128
        %3232 = vxpose.xlu0.c.b16.cont [3/8] 0, 128
        %3233 = vxpose.xlu0.c.b16.cont [4/8] 0, 128
        %3234 = vxpose.xlu0.c.b16.cont [5/8] 0, 128
        %3235 = vxpose.xlu0.c.b16.cont [6/8] 0, 128
        %3236 = vxpose.xlu0.c.b16.cont [7/8] 0, 128
        %3237 = vxpose.xlu0.c.b16.end [8/8] 0, 128
        %v3238 = vpop.trf.xlu0
        %v3239 = vpop.trf.xlu0
        %v3240 = vpop.trf.xlu0
        %v3241 = vpop.trf.xlu0
        %v3242 = vpop.trf.xlu0
        %v3243 = vpop.trf.xlu0
        %v3244 = vpop.trf.xlu0
        %v3245 = vpop.trf.xlu0
        %v3247 = vsel %vm254, %v3238, 0
        %3249 = vmatprep.subr.bf16.mxu0 0
        %3250 = vmatpush1.bf16.msra.mxu0 %v2862
        %3251 = vmatprep.subr.bf16.mxu0 0
        %3252 = vmatpush1.bf16.msra.mxu0 0
        %3253 = vmatprep.subr.bf16.mxu0 0
        %3254 = vmatpush1.bf16.msra.mxu0 0
        %3255 = vmatprep.subr.bf16.mxu0 0
        %3256 = vmatpush1.bf16.msra.mxu0 0
        %3257 = vmatprep.subr.bf16.mxu0 0
        %3258 = vmatpush1.bf16.msra.mxu0 0
        %3259 = vmatprep.subr.bf16.mxu0 0
        %3260 = vmatpush1.bf16.msra.mxu0 0
        %3261 = vmatprep.subr.bf16.mxu0 0
        %3262 = vmatpush1.bf16.msra.mxu0 0
        %3263 = vmatprep.subr.bf16.mxu0 0
        %3264 = vmatpush1.bf16.msra.mxu0 0
        %3265 = vmatprep.subr.bf16.mxu0 0
        %3266 = vmatpush1.bf16.msra.mxu0 0
        %3267 = vmatprep.subr.bf16.mxu0 0
        %3268 = vmatpush1.bf16.msra.mxu0 0
        %3269 = vmatprep.subr.bf16.mxu0 0
        %3270 = vmatpush1.bf16.msra.mxu0 0
        %3271 = vmatprep.subr.bf16.mxu0 0
        %3272 = vmatpush1.bf16.msra.mxu0 0
        %3273 = vmatprep.subr.bf16.mxu0 0
        %3274 = vmatpush1.bf16.msra.mxu0 0
        %3275 = vmatprep.subr.bf16.mxu0 0
        %3276 = vmatpush1.bf16.msra.mxu0 0
        %3277 = vmatprep.subr.bf16.mxu0 0
        %3278 = vmatpush1.bf16.msra.mxu0 0
        %3279 = vmatprep.subr.bf16.mxu0 0
        %3280 = vmatpush1.bf16.msra.mxu0 0
        %3281 = vmatprep.mubr.bf16.mxu0 0
        %3282 = vmatmul.mubr.bf16.gmra.mrb[0].mxu0 %v3247
        %v3283 = vpop.f32.mrb[0].mxu0
        %v3284 = vadd.f32 0.0, %v3283
        %v3285 = vpop.f32.mrb[0].mxu0
        %v3286 = vpop.f32.mrb[0].mxu0
        %v3287 = vpop.f32.mrb[0].mxu0
        %3288 = vdwg.mxu0
        %3289 = vxpose.xlu0.c.b16.start [1/8] %v2873, 128
        %3290 = vxpose.xlu0.c.b16.cont [2/8] 0, 128
        %3291 = vxpose.xlu0.c.b16.cont [3/8] 0, 128
        %3292 = vxpose.xlu0.c.b16.cont [4/8] 0, 128
        %3293 = vxpose.xlu0.c.b16.cont [5/8] 0, 128
        %3294 = vxpose.xlu0.c.b16.cont [6/8] 0, 128
        %3295 = vxpose.xlu0.c.b16.cont [7/8] 0, 128
        %3296 = vxpose.xlu0.c.b16.end [8/8] 0, 128
        %v3297 = vpop.trf.xlu0
        %v3298 = vpop.trf.xlu0
        %v3299 = vpop.trf.xlu0
        %v3300 = vpop.trf.xlu0
        %v3301 = vpop.trf.xlu0
        %v3302 = vpop.trf.xlu0
        %v3303 = vpop.trf.xlu0
        %v3304 = vpop.trf.xlu0
        %v3306 = vsel %vm254, %v3297, 0
        %3308 = vmatprep.subr.bf16.mxu0 0
        %3309 = vmatpush1.bf16.msra.mxu0 %v2863
        %3310 = vmatprep.subr.bf16.mxu0 0
        %3311 = vmatpush1.bf16.msra.mxu0 0
        %3312 = vmatprep.subr.bf16.mxu0 0
        %3313 = vmatpush1.bf16.msra.mxu0 0
        %3314 = vmatprep.subr.bf16.mxu0 0
        %3315 = vmatpush1.bf16.msra.mxu0 0
        %3316 = vmatprep.subr.bf16.mxu0 0
        %3317 = vmatpush1.bf16.msra.mxu0 0
        %3318 = vmatprep.subr.bf16.mxu0 0
        %3319 = vmatpush1.bf16.msra.mxu0 0
        %3320 = vmatprep.subr.bf16.mxu0 0
        %3321 = vmatpush1.bf16.msra.mxu0 0
        %3322 = vmatprep.subr.bf16.mxu0 0
        %3323 = vmatpush1.bf16.msra.mxu0 0
        %3324 = vmatprep.subr.bf16.mxu0 0
        %3325 = vmatpush1.bf16.msra.mxu0 0
        %3326 = vmatprep.subr.bf16.mxu0 0
        %3327 = vmatpush1.bf16.msra.mxu0 0
        %3328 = vmatprep.subr.bf16.mxu0 0
        %3329 = vmatpush1.bf16.msra.mxu0 0
        %3330 = vmatprep.subr.bf16.mxu0 0
        %3331 = vmatpush1.bf16.msra.mxu0 0
        %3332 = vmatprep.subr.bf16.mxu0 0
        %3333 = vmatpush1.bf16.msra.mxu0 0
        %3334 = vmatprep.subr.bf16.mxu0 0
        %3335 = vmatpush1.bf16.msra.mxu0 0
        %3336 = vmatprep.subr.bf16.mxu0 0
        %3337 = vmatpush1.bf16.msra.mxu0 0
        %3338 = vmatprep.subr.bf16.mxu0 0
        %3339 = vmatpush1.bf16.msra.mxu0 0
        %3340 = vmatprep.mubr.bf16.mxu0 0
        %3341 = vmatmul.mubr.bf16.gmra.mrb[0].mxu0 %v3306
        %v3342 = vpop.f32.mrb[0].mxu0
        %v3343 = vadd.f32 0.0, %v3342
        %v3344 = vpop.f32.mrb[0].mxu0
        %v3345 = vpop.f32.mrb[0].mxu0
        %v3346 = vpop.f32.mrb[0].mxu0
        %3347 = vdwg.mxu0
        %3348 = vxpose.xlu0.c.b16.start [1/8] %v2874, 128
        %3349 = vxpose.xlu0.c.b16.cont [2/8] 0, 128
        %3350 = vxpose.xlu0.c.b16.cont [3/8] 0, 128
        %3351 = vxpose.xlu0.c.b16.cont [4/8] 0, 128
        %3352 = vxpose.xlu0.c.b16.cont [5/8] 0, 128
        %3353 = vxpose.xlu0.c.b16.cont [6/8] 0, 128
        %3354 = vxpose.xlu0.c.b16.cont [7/8] 0, 128
        %3355 = vxpose.xlu0.c.b16.end [8/8] 0, 128
        %v3356 = vpop.trf.xlu0
        %v3357 = vpop.trf.xlu0
        %v3358 = vpop.trf.xlu0
        %v3359 = vpop.trf.xlu0
        %v3360 = vpop.trf.xlu0
        %v3361 = vpop.trf.xlu0
        %v3362 = vpop.trf.xlu0
        %v3363 = vpop.trf.xlu0
        %v3365 = vsel %vm254, %v3356, 0
        %3367 = vmatprep.subr.bf16.mxu0 0
        %3368 = vmatpush1.bf16.msra.mxu0 %v2864
        %3369 = vmatprep.subr.bf16.mxu0 0
        %3370 = vmatpush1.bf16.msra.mxu0 0
        %3371 = vmatprep.subr.bf16.mxu0 0
        %3372 = vmatpush1.bf16.msra.mxu0 0
        %3373 = vmatprep.subr.bf16.mxu0 0
        %3374 = vmatpush1.bf16.msra.mxu0 0
        %3375 = vmatprep.subr.bf16.mxu0 0
        %3376 = vmatpush1.bf16.msra.mxu0 0
        %3377 = vmatprep.subr.bf16.mxu0 0
        %3378 = vmatpush1.bf16.msra.mxu0 0
        %3379 = vmatprep.subr.bf16.mxu0 0
        %3380 = vmatpush1.bf16.msra.mxu0 0
        %3381 = vmatprep.subr.bf16.mxu0 0
        %3382 = vmatpush1.bf16.msra.mxu0 0
        %3383 = vmatprep.subr.bf16.mxu0 0
        %3384 = vmatpush1.bf16.msra.mxu0 0
        %3385 = vmatprep.subr.bf16.mxu0 0
        %3386 = vmatpush1.bf16.msra.mxu0 0
        %3387 = vmatprep.subr.bf16.mxu0 0
        %3388 = vmatpush1.bf16.msra.mxu0 0
        %3389 = vmatprep.subr.bf16.mxu0 0
        %3390 = vmatpush1.bf16.msra.mxu0 0
        %3391 = vmatprep.subr.bf16.mxu0 0
        %3392 = vmatpush1.bf16.msra.mxu0 0
        %3393 = vmatprep.subr.bf16.mxu0 0
        %3394 = vmatpush1.bf16.msra.mxu0 0
        %3395 = vmatprep.subr.bf16.mxu0 0
        %3396 = vmatpush1.bf16.msra.mxu0 0
        %3397 = vmatprep.subr.bf16.mxu0 0
        %3398 = vmatpush1.bf16.msra.mxu0 0
        %3399 = vmatprep.mubr.bf16.mxu0 0
        %3400 = vmatmul.mubr.bf16.gmra.mrb[0].mxu0 %v3365
        %v3401 = vpop.f32.mrb[0].mxu0
        %v3402 = vadd.f32 0.0, %v3401
        %v3403 = vpop.f32.mrb[0].mxu0
        %v3404 = vpop.f32.mrb[0].mxu0
        %v3405 = vpop.f32.mrb[0].mxu0
        %3406 = vdwg.mxu0
        %3407 = vxpose.xlu0.c.b16.start [1/8] %v2875, 128
        %3408 = vxpose.xlu0.c.b16.cont [2/8] 0, 128
        %3409 = vxpose.xlu0.c.b16.cont [3/8] 0, 128
        %3410 = vxpose.xlu0.c.b16.cont [4/8] 0, 128
        %3411 = vxpose.xlu0.c.b16.cont [5/8] 0, 128
        %3412 = vxpose.xlu0.c.b16.cont [6/8] 0, 128
        %3413 = vxpose.xlu0.c.b16.cont [7/8] 0, 128
        %3414 = vxpose.xlu0.c.b16.end [8/8] 0, 128
        %v3415 = vpop.trf.xlu0
        %v3416 = vpop.trf.xlu0
        %v3417 = vpop.trf.xlu0
        %v3418 = vpop.trf.xlu0
        %v3419 = vpop.trf.xlu0
        %v3420 = vpop.trf.xlu0
        %v3421 = vpop.trf.xlu0
        %v3422 = vpop.trf.xlu0
        %v3424 = vsel %vm254, %v3415, 0
        %3426 = vmatprep.subr.bf16.mxu0 0
        %3427 = vmatpush1.bf16.msra.mxu0 %v2865
        %3428 = vmatprep.subr.bf16.mxu0 0
        %3429 = vmatpush1.bf16.msra.mxu0 0
        %3430 = vmatprep.subr.bf16.mxu0 0
        %3431 = vmatpush1.bf16.msra.mxu0 0
        %3432 = vmatprep.subr.bf16.mxu0 0
        %3433 = vmatpush1.bf16.msra.mxu0 0
        %3434 = vmatprep.subr.bf16.mxu0 0
        %3435 = vmatpush1.bf16.msra.mxu0 0
        %3436 = vmatprep.subr.bf16.mxu0 0
        %3437 = vmatpush1.bf16.msra.mxu0 0
        %3438 = vmatprep.subr.bf16.mxu0 0
        %3439 = vmatpush1.bf16.msra.mxu0 0
        %3440 = vmatprep.subr.bf16.mxu0 0
        %3441 = vmatpush1.bf16.msra.mxu0 0
        %3442 = vmatprep.subr.bf16.mxu0 0
        %3443 = vmatpush1.bf16.msra.mxu0 0
        %3444 = vmatprep.subr.bf16.mxu0 0
        %3445 = vmatpush1.bf16.msra.mxu0 0
        %3446 = vmatprep.subr.bf16.mxu0 0
        %3447 = vmatpush1.bf16.msra.mxu0 0
        %3448 = vmatprep.subr.bf16.mxu0 0
        %3449 = vmatpush1.bf16.msra.mxu0 0
        %3450 = vmatprep.subr.bf16.mxu0 0
        %3451 = vmatpush1.bf16.msra.mxu0 0
        %3452 = vmatprep.subr.bf16.mxu0 0
        %3453 = vmatpush1.bf16.msra.mxu0 0
        %3454 = vmatprep.subr.bf16.mxu0 0
        %3455 = vmatpush1.bf16.msra.mxu0 0
        %3456 = vmatprep.subr.bf16.mxu0 0
        %3457 = vmatpush1.bf16.msra.mxu0 0
        %3458 = vmatprep.mubr.bf16.mxu0 0
        %3459 = vmatmul.mubr.bf16.gmra.mrb[0].mxu0 %v3424
        %v3460 = vpop.f32.mrb[0].mxu0
        %v3461 = vadd.f32 0.0, %v3460
        %v3462 = vpop.f32.mrb[0].mxu0
        %v3463 = vpop.f32.mrb[0].mxu0
        %v3464 = vpop.f32.mrb[0].mxu0
        %3465 = vdwg.mxu0
        %v3466 = vsel %vm2815, %v214, 0.0
        %v3467 = vsel %vm2815, %v215, 0.0
        %v3468 = vadd.f32 %v3466, %v3467
        %v3469 = vrot.slane %v3468, 4
        %v3470 = vadd.f32 %v3468, %v3469
        %v3471 = vrot.slane %v3470, 2
        %v3472 = vadd.f32 %v3470, %v3471
        %v3473 = vrot.slane %v3472, 1
        %v3474 = vadd.f32 %v3472, %v3473
        %v3475 = vsel %vm2815, %v216, 0.0
        %v3476 = vsel %vm2815, %v217, 0.0
        %v3477 = vadd.f32 %v3475, %v3476
        %v3478 = vrot.slane %v3477, 4
        %v3479 = vadd.f32 %v3477, %v3478
        %v3480 = vrot.slane %v3479, 2
        %v3481 = vadd.f32 %v3479, %v3480
        %v3482 = vrot.slane %v3481, 1
        %v3483 = vadd.f32 %v3481, %v3482
        %v3484 = vsel %vm2815, %v218, 0.0
        %v3485 = vsel %vm2815, %v219, 0.0
        %v3486 = vadd.f32 %v3484, %v3485
        %v3487 = vrot.slane %v3486, 4
        %v3488 = vadd.f32 %v3486, %v3487
        %v3489 = vrot.slane %v3488, 2
        %v3490 = vadd.f32 %v3488, %v3489
        %v3491 = vrot.slane %v3490, 1
        %v3492 = vadd.f32 %v3490, %v3491
        %v3493 = vsel %vm2815, %v220, 0.0
        %v3494 = vsel %vm2815, %v221, 0.0
        %v3495 = vadd.f32 %v3493, %v3494
        %v3496 = vrot.slane %v3495, 4
        %v3497 = vadd.f32 %v3495, %v3496
        %v3498 = vrot.slane %v3497, 2
        %v3499 = vadd.f32 %v3497, %v3498
        %v3500 = vrot.slane %v3499, 1
        %v3501 = vadd.f32 %v3499, %v3500
        %v3502 = vsel %vm2815, %v222, 0.0
        %v3503 = vsel %vm2815, %v223, 0.0
        %v3504 = vadd.f32 %v3502, %v3503
        %v3505 = vrot.slane %v3504, 4
        %v3506 = vadd.f32 %v3504, %v3505
        %v3507 = vrot.slane %v3506, 2
        %v3508 = vadd.f32 %v3506, %v3507
        %v3509 = vrot.slane %v3508, 1
        %v3510 = vadd.f32 %v3508, %v3509
        %v3511 = vsel %vm2815, %v224, 0.0
        %v3512 = vsel %vm2815, %v225, 0.0
        %v3513 = vadd.f32 %v3511, %v3512
        %v3514 = vrot.slane %v3513, 4
        %v3515 = vadd.f32 %v3513, %v3514
        %v3516 = vrot.slane %v3515, 2
        %v3517 = vadd.f32 %v3515, %v3516
        %v3518 = vrot.slane %v3517, 1
        %v3519 = vadd.f32 %v3517, %v3518
        %v3520 = vsel %vm2815, %v226, 0.0
        %v3521 = vsel %vm2815, %v227, 0.0
        %v3522 = vadd.f32 %v3520, %v3521
        %v3523 = vrot.slane %v3522, 4
        %v3524 = vadd.f32 %v3522, %v3523
        %v3525 = vrot.slane %v3524, 2
        %v3526 = vadd.f32 %v3524, %v3525
        %v3527 = vrot.slane %v3526, 1
        %v3528 = vadd.f32 %v3526, %v3527
        %v3529 = vsel %vm2815, %v228, 0.0
        %v3530 = vsel %vm2815, %v229, 0.0
        %v3531 = vadd.f32 %v3529, %v3530
        %v3532 = vrot.slane %v3531, 4
        %v3533 = vadd.f32 %v3531, %v3532
        %v3534 = vrot.slane %v3533, 2
        %v3535 = vadd.f32 %v3533, %v3534
        %v3536 = vrot.slane %v3535, 1
        %v3537 = vadd.f32 %v3535, %v3536
        %v3538 = vsel %vm2815, %v230, 0.0
        %v3539 = vsel %vm2815, %v231, 0.0
        %v3540 = vadd.f32 %v3538, %v3539
        %v3541 = vrot.slane %v3540, 4
        %v3542 = vadd.f32 %v3540, %v3541
        %v3543 = vrot.slane %v3542, 2
        %v3544 = vadd.f32 %v3542, %v3543
        %v3545 = vrot.slane %v3544, 1
        %v3546 = vadd.f32 %v3544, %v3545
        %v3547 = vsel %vm2815, %v232, 0.0
        %v3548 = vsel %vm2815, %v233, 0.0
        %v3549 = vadd.f32 %v3547, %v3548
        %v3550 = vrot.slane %v3549, 4
        %v3551 = vadd.f32 %v3549, %v3550
        %v3552 = vrot.slane %v3551, 2
        %v3553 = vadd.f32 %v3551, %v3552
        %v3554 = vrot.slane %v3553, 1
        %v3555 = vadd.f32 %v3553, %v3554
        %3557 = vbcast.lane.b32.xlu0 %v3474, 256
        %v3558 = vpop.permute.xlu0 %3557
        %3560 = vbcast.lane.b32.xlu0 %v3483, 256
        %v3561 = vpop.permute.xlu0 %3560
        %3563 = vbcast.lane.b32.xlu0 %v3492, 256
        %v3564 = vpop.permute.xlu0 %3563
        %3566 = vbcast.lane.b32.xlu0 %v3501, 256
        %v3567 = vpop.permute.xlu0 %3566
        %3569 = vbcast.lane.b32.xlu0 %v3510, 256
        %v3570 = vpop.permute.xlu0 %3569
        %3572 = vbcast.lane.b32.xlu0 %v3519, 256
        %v3573 = vpop.permute.xlu0 %3572
        %3575 = vbcast.lane.b32.xlu0 %v3528, 256
        %v3576 = vpop.permute.xlu0 %3575
        %3578 = vbcast.lane.b32.xlu0 %v3537, 256
        %v3579 = vpop.permute.xlu0 %3578
        %3581 = vbcast.lane.b32.xlu0 %v3546, 256
        %v3582 = vpop.permute.xlu0 %3581
        %3584 = vbcast.lane.b32.xlu0 %v3555, 256
        %v3585 = vpop.permute.xlu0 %3584
        %vm3586 = vcmask 195584
        %v3587 = vsel %vm3586, %v2930, %v3558
        %v3588 = vsel %vm3586, %v2989, %v3561
        %v3589 = vsel %vm3586, %v3048, %v3564
        %v3590 = vsel %vm3586, %v3107, %v3567
        %v3591 = vsel %vm3586, %v3166, %v3570
        %v3592 = vsel %vm3586, %v3225, %v3573
        %v3593 = vsel %vm3586, %v3284, %v3576
        %v3594 = vsel %vm3586, %v3343, %v3579
        %v3595 = vsel %vm3586, %v3402, %v3582
        %v3596 = vsel %vm3586, %v3461, %v3585
        %3599 = vrot.lane.b32.xlu0 %v3588, 25
        %v3600 = vpop.permute.xlu0 %3599
        %3601 = vrot.lane.b32.xlu0 %v3593, 25
        %v3602 = vpop.permute.xlu0 %3601
        %3607 = vrot.lane.b32.xlu0 %v3589, 50
        %v3608 = vpop.permute.xlu0 %3607
        %3609 = vrot.lane.b32.xlu0 %v3594, 50
        %v3610 = vpop.permute.xlu0 %3609
        %3615 = vrot.lane.b32.xlu0 %v3590, 75
        %v3616 = vpop.permute.xlu0 %3615
        %3617 = vrot.lane.b32.xlu0 %v3595, 75
        %v3618 = vpop.permute.xlu0 %3617
        %3623 = vrot.lane.b32.xlu0 %v3591, 100
        %v3624 = vpop.permute.xlu0 %3623
        %3625 = vrot.lane.b32.xlu0 %v3596, 100
        %v3626 = vpop.permute.xlu0 %3625
        %vm3629 = vcmask 203776
        %v3630 = vsel %vm3629, %v3587, %v3600
        %v3631 = vsel %vm3629, %v3592, %v3602
        %vm3632 = vcmask 408576
        %v3633 = vsel %vm3632, %v3630, %v3608
        %v3634 = vsel %vm3632, %v3631, %v3610
        %vm3635 = vcmask 613376
        %v3636 = vsel %vm3635, %v3633, %v3616
        %v3637 = vsel %vm3635, %v3634, %v3618
        %vm3638 = vcmask 818176
        %v3639 = vsel %vm3638, %v3636, %v3624
        %v3640 = vsel %vm3638, %v3637, %v3626
        %vm3641 = vcmask 1022976
        %v3642 = vsel %vm3641, %v3639, 0.0
        %v3643 = vsel %vm3641, %v3640, 0.0
        %3644 = vst [vmem:[%s157] sm:$0xff] %v3642
        %3645 = vst [vmem:[%s157 + $0x8] sm:$0xff] %v3643
        %s3646 = sand.u32 %s76, 1
        %s3647 = scalar_lea.sflag [#allocation3], %s3646
        %s3648 = sand.u32 %s76, 1
        %s3649 = smul.addr %s3648, 16
        %s3650 = scalar_lea.vmem [#allocation2], %s3649
        // Predicated region
        $region29: #{tpu_custom_call.1} parent=27 // pred_check
          %p3651 = pneg %p86
        $region30: #{tpu_custom_call.1} parent=27 // pred_check_branch
          %3653 = sbr.rel (%p3651) target = $region32
        $region31: #{tpu_custom_call.1} parent=27 // pred_region
          %s3654 = smul.u32 2, %s16
          %s3656 = ssub.s32 256, 256
          %3657 = vsyncadd %s3647, %s3656
          %s3658 = smul.addr %s3654, 128
          %s3659 = scalar_lea.hbm %s2, %s3658
          %s3660 = sshll.u32 %s3650, 4
          %s3661 = int_to_ptr.vmem [resolvable:$true] %s3660
          %3666 = dma.vmem_to_hbm [thread:$0]  %s3661, 256, %s3659, %s3647, 128, 128, 8
        $region32: #{tpu_custom_call.1} parent=27 // pred_fallthru
          _
      $region28: #{tpu_custom_call.1} parent=5 // pred_fallthru
        _
      %p3667 = scmp.le.s32.totalorder 2, %s11
      // Predicated region
      $region33: #{tpu_custom_call.1} parent=5 // pred_check
        %p3668 = pneg %p3667
      $region34: #{tpu_custom_call.1} parent=5 // pred_check_branch
        %3670 = sbr.rel (%p3668) target = $region36
      $region35: #{tpu_custom_call.1} parent=5 // pred_region
        %s3671 = ssub.s32 %s11, 2
        // Predicated region
        $region37: #{tpu_custom_call.1} parent=35 // pred_check
          %p3672 = pneg %p92
        $region38: #{tpu_custom_call.1} parent=35 // pred_check_branch
          %3674 = sbr.rel (%p3672) target = $region40
        $region39: #{tpu_custom_call.1} parent=35 // pred_region
          %s3675 = sand.u32 %s77, 1
          %s3676 = scalar_lea.sflag [#allocation3], %s3675
          %s3677 = sand.u32 %s77, 1
          %s3678 = smul.addr %s3677, 16
          %s3679 = scalar_lea.vmem [#allocation2], %s3678
          %3680 = dma.done %s3676, 256
        $region40: #{tpu_custom_call.1} parent=35 // pred_fallthru
          _
      $region36: #{tpu_custom_call.1} parent=5 // pred_fallthru
        _
    $region6: #{tpu_custom_call.1} parent=1 // loop_footer
      %s15 = sadd.s32 1, %s11
    $region7: #{tpu_custom_call.1} parent=1 // loop_footer_branch
      %10 = sbr.rel target = $region3
    $region8: #{tpu_custom_call.1} parent=1 // loop_exit
      _
    %3681 = vsyncpa [#allocation3], 1
    %s3682 = scalar_lea.sflag [#allocation3], 1
    %3683 = vsyncpa %s3682, 1

</llo_original>
